<compile_context>
chip_gen: v7x
topology: tpu7x:2x2x1
jax: 0.10.0
libtpu: 0.0.40
codegen_flags: <defaults>
</compile_context>

<pallas_src>
import math
import functools

import jax
import jax.numpy as jnp
from jax import lax
from jax.experimental import pallas as pl
from jax.experimental.pallas import tpu as pltpu


# ----------------------------------------------------------------------------
# Pallas kernels
# ----------------------------------------------------------------------------
def _em_fused_kernel(feat_ref, mask_ref, mu0_ref, mu_out_ref, *,
                     stage_num, num_pro, kappa):
    """Fused fg/bg EM for one batch element.

    feat_ref: (C, N) bf16   mask_ref: (1, N) f32
    mu0_ref:  (2K, C) f32   mu_out_ref: (2K, C) f32
    Rows [0, K) of the prototype carry are the foreground chain (mask m),
    rows [K, 2K) the background chain (mask 1 - m).
    """
    feat = feat_ref[...]                          # (C, N) bf16
    m = mask_ref[...]                             # (1, N) f32
    k2 = 2 * num_pro

    row = lax.broadcasted_iota(jnp.int32, (k2, 1), 0)
    is_fg = row < num_pro                         # (2K, 1) bool
    # Per-row pixel mask (loop-invariant): fg rows see m, bg rows see 1 - m.
    mrow = jnp.where(is_fg, m, 1.0 - m)           # (2K, N) f32

    mu = mu0_ref[...]                             # (2K, C) f32 carry
    # stage_num is a static Python int -> fully unroll so MXU pushes, EUP exp
    # and XLU reduces interleave across iterations.
    for _ in range(stage_num):
        # z = kappa * mu @ x, with x = feat * per-half-mask.  Folding kappa
        # into the tiny (2K, C) carry is cheaper than scaling (2K, N) logits.
        # bf16 operands keep the full-rate MXU path; accumulate in f32.
        z = lax.dot_general((mu * kappa).astype(jnp.bfloat16), feat,
                            (((1,), (0,)), ((), ())),
                            preferred_element_type=jnp.float32)   # (2K, N) f32
        z = z * mrow
        # Softmax over the K prototypes of each half (per-half max for
        # numerical safety; sublane reduce along axis 0).
        max_f = jnp.max(jnp.where(is_fg, z, -jnp.inf), axis=0, keepdims=True)
        max_b = jnp.max(jnp.where(is_fg, -jnp.inf, z), axis=0, keepdims=True)
        e = jnp.exp(z - jnp.where(is_fg, max_f, max_b))
        s_f = jnp.sum(jnp.where(is_fg, e, 0.0), axis=0, keepdims=True)
        # One fewer (2K, N) select pass: s_b = sum(all) - sum(fg).
        s_b = jnp.sum(e, axis=0, keepdims=True) - s_f
        p = e * pl.reciprocal(jnp.where(is_fg, s_f, s_b), approx=True)
        # Normalize each prototype's responsibilities over N (lane reduce).
        r = jnp.sum(p, axis=1, keepdims=True)                     # (2K, 1)
        z_ = p * (1.0 / (1e-6 + r))
        # mu = (z_ * mask) @ x^T  -> (2K, C)   (shared feat for both chains)
        mu_new = lax.dot_general((z_ * mrow).astype(jnp.bfloat16), feat,
                                 (((1,), (1,)), ((), ())),
                                 preferred_element_type=jnp.float32)
        # L2-normalize each prototype over C (lane reduce), in f32.
        nrm = jnp.sqrt(jnp.sum(mu_new * mu_new, axis=1, keepdims=True))
        mu = mu_new * (1.0 / (1e-6 + nrm))

    mu_out_ref[...] = mu


def _disc_kernel(xq_ref, mu_ref, out_ref, *, num_pro):
    """Discriminative model for one (batch, N-tile).

    xq_ref: (C, TN) bf16   mu_ref: (2K, C) f32   out_ref: (2, TN) f32
    (row 0 = P_b, row 1 = P_f).  Softmax is over all 2K prototypes per pixel;
    fg mass is reduced with a sublane selector and P_b = 1 - P_f.
    """
    x = xq_ref[...]
    z = lax.dot_general(mu_ref[...].astype(jnp.bfloat16), x,
                        (((1,), (0,)), ((), ())),
                        preferred_element_type=jnp.float32)       # (2K, TN)
    zmax = jnp.max(z, axis=0, keepdims=True)
    e = jnp.exp(z - zmax)
    row = lax.broadcasted_iota(jnp.int32, (2 * num_pro, 1), 0)
    is_fg = row < num_pro
    s_f = jnp.sum(jnp.where(is_fg, e, 0.0), axis=0, keepdims=True)   # (1, TN)
    s_all = jnp.sum(e, axis=0, keepdims=True)                        # (1, TN)
    p_f = s_f / s_all
    p_b = 1.0 - p_f                    # exact per-pixel sum-to-1
    two = lax.broadcasted_iota(jnp.int32, (2, 1), 0)
    out_ref[...] = jnp.where(two == 0, p_b, p_f)                     # (2, TN)


# ----------------------------------------------------------------------------
# pallas_call wrappers
# ----------------------------------------------------------------------------
def _pick_n_tile(n, c, itemsize=2, per_buffer_budget=8 << 20):
    """Largest lane-dense (multiple-of-128) pixel tile whose (C, TN) query
    buffer fits the per-buffer budget.  N is padded up to a multiple of the
    tile in the wrapper, so ragged H*W (3136, 3600, ...) still gets pipeline
    depth / megacore sharding instead of one giant block."""
    n_pad128 = pl.cdiv(n, 128) * 128
    for t in (4096, 2048, 1024, 512, 256, 128):
        if t <= n_pad128 and c * t * itemsize <= per_buffer_budget:
            return t
    return 128


def _vmem_limit_bytes(block_bytes, tmp_bytes):
    """2x (double-buffered) input/output blocks + elementwise temporaries +
    headroom, clamped to [16 MiB, 112 MiB] so it is valid on every gen."""
    est = sum(2 * b for b in block_bytes) + tmp_bytes + (2 << 20)
    return int(min(max(est, 16 << 20), 112 << 20))


def _em_pallas(feat, mask, mu0_cat, stage_num, num_pro, kappa):
    """feat: (B, C, N)  mask: (B, 1, N) f32  mu0_cat: (2K, C) f32 -> (B, 2K, C)."""
    b, c, n = feat.shape
    k2 = mu0_cat.shape[0]
    # Stream the feature block in bf16: halves HBM DMA and the dominant VMEM
    # block (matters most under v7x's 64 MiB VMEM); mu / exp / reductions and
    # both dot accumulations stay f32 inside the kernel.
    feat = feat.astype(jnp.bfloat16)
    kern = functools.partial(_em_fused_kernel, stage_num=stage_num,
                             num_pro=num_pro, kappa=kappa)
    k2p = max(8, k2)                      # sublane-padded row count
    vmem = _vmem_limit_bytes(
        [c * n * 2,                       # feat block (bf16)
         8 * n * 4,                       # mask block (f32, 8-sublane padded)
         k2p * c * 4,                     # mu0 block
         k2p * c * 4],                    # mu output block
        tmp_bytes=10 * 8 * n * 4)         # (2K->8, N) f32 EM-stage temporaries
    # NOTE(v7x): grid=(B,) means B=1 leaves the second TensorCore idle for the
    # EM pass; the fused 2K-row carry is kept because splitting fg/bg would
    # double the MXU pushes for every B >= 2 (both (3,C) and (6,C) pad to 8
    # MXU rows).
    return pl.pallas_call(
        kern,
        out_shape=jax.ShapeDtypeStruct((b, k2, c), jnp.float32),
        grid=(b,),
        in_specs=[
            pl.BlockSpec((None, c, n), lambda i: (i, 0, 0)),
            pl.BlockSpec((None, 1, n), lambda i: (i, 0, 0)),
            pl.BlockSpec((k2, c), lambda i: (0, 0)),
        ],
        out_specs=pl.BlockSpec((None, k2, c), lambda i: (i, 0, 0)),
        compiler_params=pltpu.CompilerParams(
            dimension_semantics=("parallel",),
            vmem_limit_bytes=vmem),
    )(feat, mask, mu0_cat)


def _disc_pallas(xq, mu_cat, num_pro):
    """xq: (B, C, N)  mu_cat: (B, 2K, C) f32 -> prob: (B, 2, N) (row0=P_b, 1=P_f)."""
    b, c, n = xq.shape
    k2 = mu_cat.shape[1]
    tn = _pick_n_tile(n, c)
    n_pad = pl.cdiv(n, tn) * tn
    # The disc kernel is HBM-bound: stream xq in bf16 (softmax math stays f32).
    xq = xq.astype(jnp.bfloat16)
    if n_pad != n:
        # Zero-padded pixels produce a uniform softmax; sliced off below.
        xq = jnp.pad(xq, ((0, 0), (0, 0), (0, n_pad - n)))
    kern = functools.partial(_disc_kernel, num_pro=num_pro)
    k2p = max(8, k2)
    vmem = _vmem_limit_bytes(
        [c * tn * 2,                      # xq block (bf16)
         k2p * c * 4,                     # mu block
         8 * tn * 4],                     # output block (2 -> 8 sublanes)
        tmp_bytes=6 * 8 * tn * 4)
    prob = pl.pallas_call(
        kern,
        out_shape=jax.ShapeDtypeStruct((b, 2, n_pad), jnp.float32),
        # j (N-tile) innermost so the per-batch mu block is not re-DMA'd;
        # TN is a multiple of 128 so the (2, TN) output stays lane-dense.
        grid=(b, n_pad // tn),
        in_specs=[
            pl.BlockSpec((None, c, tn), lambda i, j: (i, 0, j)),
            pl.BlockSpec((None, k2, c), lambda i, j: (i, 0, 0)),
        ],
        out_specs=pl.BlockSpec((None, 2, tn), lambda i, j: (i, 0, j)),
        compiler_params=pltpu.CompilerParams(
            dimension_semantics=("parallel", "parallel"),
            vmem_limit_bytes=vmem),
    )(xq, mu_cat)
    return prob[:, :, :n] if n_pad != n else prob


# ----------------------------------------------------------------------------
# Plain-JAX glue
# ----------------------------------------------------------------------------
def _bilinear_resize_align_corners(x, out_h, out_w):
    """F.interpolate(x, (out_h, out_w), mode='bilinear', align_corners=True)."""
    b, c, in_h, in_w = x.shape
    if (in_h, in_w) == (out_h, out_w):
        return x
    ys = (jnp.linspace(0.0, in_h - 1.0, out_h)
          if out_h > 1 else jnp.zeros((1,), jnp.float32))
    xs = (jnp.linspace(0.0, in_w - 1.0, out_w)
          if out_w > 1 else jnp.zeros((1,), jnp.float32))
    y0 = jnp.clip(jnp.floor(ys).astype(jnp.int32), 0, in_h - 1)
    y1 = jnp.clip(y0 + 1, 0, in_h - 1)
    x0 = jnp.clip(jnp.floor(xs).astype(jnp.int32), 0, in_w - 1)
    x1 = jnp.clip(x0 + 1, 0, in_w - 1)
    wy = (ys - y0.astype(jnp.float32))[None, None, :, None]
    wx = (xs - x0.astype(jnp.float32))[None, None, None, :]

    def gather(yi, xi):
        return x[:, :, yi, :][:, :, :, xi]

    top = gather(y0, x0) * (1.0 - wx) + gather(y0, x1) * wx
    bot = gather(y1, x0) * (1.0 - wx) + gather(y1, x1) * wx
    return top * (1.0 - wy) + bot * wy


class PMMs:
    """JAX/Pallas port of the PyTorch PMMs module (forward pass only)."""

    def __init__(self, c, k=3, stage_num=10, key=None):
        self.stage_num = stage_num
        self.num_pro = k
        self.kappa = 20.0
        if key is None:
            key = jax.random.PRNGKey(0)
        # mu ~ N(0, sqrt(2/k)), then L2-norm over C (torch layout (1, C, K)).
        mu = jax.random.normal(key, (1, c, k), jnp.float32) * math.sqrt(2.0 / k)
        mu = mu / (1e-6 + jnp.sqrt(jnp.sum(mu * mu, axis=1, keepdims=True)))
        self.mu = mu
        # Kernel-side carry layout: stacked (2K, C) = [fg init ; bg init].
        mu_kc = jnp.transpose(mu[0])                        # (K, C)
        self.mu0_cat = jnp.concatenate([mu_kc, mu_kc], 0)   # (2K, C)

    def __call__(self, support_feature, support_mask, query_feature):
        prototypes, mu_f, mu_b = self.generate_prototype(support_feature,
                                                         support_mask)
        prob_map = self.discriminative_model(query_feature, mu_f, mu_b)
        return prototypes, prob_map

    def generate_prototype(self, feature, mask):
        b, c, h, w = feature.shape
        mask = _bilinear_resize_align_corners(mask, h, w)        # (B, 1, H, W)
        feat = feature.reshape(b, c, h * w)                      # (B, C, N)
        m = mask.reshape(b, 1, h * w)                            # (B, 1, N)
        # Single fused pallas_call runs both fg and bg EM chains.
        mu_cat = _em_pallas(feat, m, self.mu0_cat, self.stage_num,
                            self.num_pro, self.kappa)            # (B, 2K, C)
        mu_f = mu_cat[:, :self.num_pro, :]                       # (B, K, C)
        mu_b = mu_cat[:, self.num_pro:, :]                       # (B, K, C)
        protos = mu_f[:, :, :, None, None]                       # (B, K, C, 1, 1)
        prototypes = [protos[:, i] for i in range(self.num_pro)]
        return prototypes, mu_f, mu_b

    def discriminative_model(self, query_feature, mu_f, mu_b):
        b, c, h, w = query_feature.shape
        mu_cat = jnp.concatenate([mu_f, mu_b], axis=1)           # (B, 2K, C)
        xq = query_feature.reshape(b, c, h * w)                  # (B, C, N)
        prob = _disc_pallas(xq, mu_cat, self.num_pro)            # (B, 2, N)
        # Prob_map = cat([P_b, P_f], dim=1) -> (B, 2, H, W)
        return prob.reshape(b, 2, h, w)


# ----------------------------------------------------------------------------
# Example run
# ----------------------------------------------------------------------------
if __name__ == "__main__":
    key = jax.random.PRNGKey(0)
    k_mu, k_sf, k_sm, k_qf = jax.random.split(key, 4)

    B, C, H, W = 2, 32, 16, 16
    K = 3

    model = PMMs(c=C, k=K, stage_num=10, key=k_mu)

    support_feature = jax.random.normal(k_sf, (B, C, H, W), jnp.float32)
    # mask at a different spatial resolution to exercise the bilinear resize
    support_mask = jax.random.uniform(k_sm, (B, 1, 32, 32), jnp.float32)
    query_feature = jax.random.normal(k_qf, (B, C, H, W), jnp.float32)

    prototypes, prob_map = model(support_feature, support_mask, query_feature)
    prob_map = jax.block_until_ready(prob_map)
    prototypes = [jax.block_until_ready(p) for p in prototypes]

    assert prob_map.shape == (B, 2, H, W)
    assert len(prototypes) == K
    assert prototypes[0].shape == (B, C, 1, 1)
    assert bool(jnp.all(jnp.isfinite(prob_map)))
    assert bool(jnp.all(jnp.isfinite(jnp.stack(prototypes))))
    # P_b + P_f is a softmax split -> must sum to ~1 per pixel.
    assert bool(jnp.all(jnp.abs(jnp.sum(prob_map, axis=1) - 1.0) < 1e-3))

    print("KERNEL_OK")
</pallas_src>

<mosaic_0001>
module attributes {stable_mosaic.version = 11 : i64} {
  func.func @_em_fused_kernel(%arg0: i32, %arg1: memref<1x32x256xbf16, #tpu.memory_space<vmem>>, %arg2: memref<1x1x256xf32, #tpu.memory_space<vmem>>, %arg3: memref<6x32xf32, #tpu.memory_space<vmem>>, %arg4: memref<1x6x32xf32, #tpu.memory_space<vmem>>) attributes {dimension_semantics = [#tpu.dimension_semantics<parallel>], iteration_bounds = array<i64: 2>, scalar_prefetch = 0 : i64, scratch_operands = 0 : i64, tpu.core_type = #tpu.core_type<tc>, window_params = [{transform_indices = @transform_0, window_bounds = array<i64: 1, 32, 256>}, {transform_indices = @transform_1, window_bounds = array<i64: 1, 1, 256>}, {pipeline_mode = #tpu.pipeline_mode<synchronous>, transform_indices = @transform_2, window_bounds = array<i64: 6, 32>}, {transform_indices = @transform_3, window_bounds = array<i64: 1, 6, 32>}]} {
    %c0 = arith.constant 0 : index
    %c0_0 = arith.constant 0 : index
    %c0_1 = arith.constant 0 : index
    %0 = vector.load %arg1[%c0, %c0_0, %c0_1] : memref<1x32x256xbf16, #tpu.memory_space<vmem>>, vector<1x32x256xbf16>
    %1 = vector.shape_cast %0 : vector<1x32x256xbf16> to vector<32x256xbf16>
    %c0_2 = arith.constant 0 : index
    %c0_3 = arith.constant 0 : index
    %c0_4 = arith.constant 0 : index
    %2 = vector.load %arg2[%c0_2, %c0_3, %c0_4] : memref<1x1x256xf32, #tpu.memory_space<vmem>>, vector<1x1x256xf32>
    %3 = vector.shape_cast %2 : vector<1x1x256xf32> to vector<1x256xf32>
    %4 = tpu.iota {dimensions = array<i32: 0>} : vector<6x1xi32>
    %c3_i32 = arith.constant 3 : i32
    %5 = vector.broadcast %c3_i32 : i32 to vector<6x1xi32>
    %6 = arith.cmpi slt, %4, %5 : vector<6x1xi32>
    %cst = arith.constant 1.000000e+00 : f32
    %7 = vector.broadcast %cst : f32 to vector<1x256xf32>
    %8 = arith.subf %7, %3 : vector<1x256xf32>
    %9 = vector.shape_cast %6 : vector<6x1xi1> to vector<6x1xi1>
    %10 = vector.broadcast %9 : vector<6x1xi1> to vector<6x256xi1>
    %11 = vector.shape_cast %3 : vector<1x256xf32> to vector<1x256xf32>
    %12 = vector.broadcast %11 : vector<1x256xf32> to vector<6x256xf32>
    %13 = vector.shape_cast %8 : vector<1x256xf32> to vector<1x256xf32>
    %14 = vector.broadcast %13 : vector<1x256xf32> to vector<6x256xf32>
    %15 = arith.select %10, %12, %14 : vector<6x256xi1>, vector<6x256xf32>
    %c0_5 = arith.constant 0 : index
    %c0_6 = arith.constant 0 : index
    %16 = vector.load %arg3[%c0_5, %c0_6] : memref<6x32xf32, #tpu.memory_space<vmem>>, vector<6x32xf32>
    %cst_7 = arith.constant 2.000000e+01 : f32
    %17 = vector.broadcast %cst_7 : f32 to vector<6x32xf32>
    %18 = arith.mulf %16, %17 : vector<6x32xf32>
    %19 = arith.truncf %18 : vector<6x32xf32> to vector<6x32xbf16>
    %cst_8 = arith.constant dense<0.000000e+00> : vector<6x256xf32>
    %20 = tpu.matmul %19, %1, %cst_8 {dimension_numbers = #tpu.dot_dimension_numbers<[1], [0], [0], [1], [0, 0, 1, 1], [], []>} : vector<6x32xbf16>, vector<32x256xbf16>, vector<6x256xf32> -> vector<6x256xf32>
    %21 = arith.mulf %20, %15 : vector<6x256xf32>
    %cst_9 = arith.constant 0xFF800000 : f32
    %22 = vector.shape_cast %6 : vector<6x1xi1> to vector<6x1xi1>
    %23 = vector.broadcast %22 : vector<6x1xi1> to vector<6x256xi1>
    %24 = vector.broadcast %cst_9 : f32 to vector<6x256xf32>
    %25 = arith.select %23, %21, %24 : vector<6x256xi1>, vector<6x256xf32>
    %cst_10 = arith.constant dense<0xFF800000> : vector<256xf32>
    %26 = vector.multi_reduction <maximumf>, %25, %cst_10 [0] : vector<6x256xf32> to vector<256xf32>
    %27 = vector.shape_cast %26 : vector<256xf32> to vector<1x256xf32>
    %cst_11 = arith.constant 0xFF800000 : f32
    %28 = vector.shape_cast %6 : vector<6x1xi1> to vector<6x1xi1>
    %29 = vector.broadcast %28 : vector<6x1xi1> to vector<6x256xi1>
    %30 = vector.broadcast %cst_11 : f32 to vector<6x256xf32>
    %31 = arith.select %29, %30, %21 : vector<6x256xi1>, vector<6x256xf32>
    %cst_12 = arith.constant dense<0xFF800000> : vector<256xf32>
    %32 = vector.multi_reduction <maximumf>, %31, %cst_12 [0] : vector<6x256xf32> to vector<256xf32>
    %33 = vector.shape_cast %32 : vector<256xf32> to vector<1x256xf32>
    %34 = vector.shape_cast %6 : vector<6x1xi1> to vector<6x1xi1>
    %35 = vector.broadcast %34 : vector<6x1xi1> to vector<6x256xi1>
    %36 = vector.shape_cast %27 : vector<1x256xf32> to vector<1x256xf32>
    %37 = vector.broadcast %36 : vector<1x256xf32> to vector<6x256xf32>
    %38 = vector.shape_cast %33 : vector<1x256xf32> to vector<1x256xf32>
    %39 = vector.broadcast %38 : vector<1x256xf32> to vector<6x256xf32>
    %40 = arith.select %35, %37, %39 : vector<6x256xi1>, vector<6x256xf32>
    %41 = arith.subf %21, %40 : vector<6x256xf32>
    %42 = math.exp %41 : vector<6x256xf32>
    %cst_13 = arith.constant 0.000000e+00 : f32
    %43 = vector.shape_cast %6 : vector<6x1xi1> to vector<6x1xi1>
    %44 = vector.broadcast %43 : vector<6x1xi1> to vector<6x256xi1>
    %45 = vector.broadcast %cst_13 : f32 to vector<6x256xf32>
    %46 = arith.select %44, %42, %45 : vector<6x256xi1>, vector<6x256xf32>
    %cst_14 = arith.constant dense<0.000000e+00> : vector<256xf32>
    %47 = vector.multi_reduction <add>, %46, %cst_14 [0] : vector<6x256xf32> to vector<256xf32>
    %48 = vector.shape_cast %47 : vector<256xf32> to vector<1x256xf32>
    %cst_15 = arith.constant dense<0.000000e+00> : vector<256xf32>
    %49 = vector.multi_reduction <add>, %42, %cst_15 [0] : vector<6x256xf32> to vector<256xf32>
    %50 = vector.shape_cast %49 : vector<256xf32> to vector<1x256xf32>
    %51 = arith.subf %50, %48 : vector<1x256xf32>
    %52 = vector.shape_cast %6 : vector<6x1xi1> to vector<6x1xi1>
    %53 = vector.broadcast %52 : vector<6x1xi1> to vector<6x256xi1>
    %54 = vector.shape_cast %48 : vector<1x256xf32> to vector<1x256xf32>
    %55 = vector.broadcast %54 : vector<1x256xf32> to vector<6x256xf32>
    %56 = vector.shape_cast %51 : vector<1x256xf32> to vector<1x256xf32>
    %57 = vector.broadcast %56 : vector<1x256xf32> to vector<6x256xf32>
    %58 = arith.select %53, %55, %57 : vector<6x256xi1>, vector<6x256xf32>
    %59 = tpu.reciprocal %58 {approx = true} : vector<6x256xf32> -> vector<6x256xf32>
    %60 = arith.mulf %42, %59 : vector<6x256xf32>
    %cst_16 = arith.constant dense<0.000000e+00> : vector<6xf32>
    %61 = vector.multi_reduction <add>, %60, %cst_16 [1] : vector<6x256xf32> to vector<6xf32>
    %62 = vector.shape_cast %61 : vector<6xf32> to vector<6x1xf32>
    %cst_17 = arith.constant 9.99999997E-7 : f32
    %63 = vector.broadcast %cst_17 : f32 to vector<6x1xf32>
    %64 = arith.addf %63, %62 : vector<6x1xf32>
    %cst_18 = arith.constant 1.000000e+00 : f32
    %65 = vector.broadcast %cst_18 : f32 to vector<6x1xf32>
    %66 = arith.divf %65, %64 : vector<6x1xf32>
    %67 = vector.broadcast %66 : vector<6x1xf32> to vector<6x256xf32>
    %68 = arith.mulf %60, %67 : vector<6x256xf32>
    %69 = arith.mulf %68, %15 : vector<6x256xf32>
    %70 = arith.truncf %69 : vector<6x256xf32> to vector<6x256xbf16>
    %cst_19 = arith.constant dense<0.000000e+00> : vector<6x32xf32>
    %71 = tpu.matmul %70, %1, %cst_19 {dimension_numbers = #tpu.dot_dimension_numbers<[1], [1], [0], [0], [0, 0, 1, 0], [], []>} : vector<6x256xbf16>, vector<32x256xbf16>, vector<6x32xf32> -> vector<6x32xf32>
    %72 = arith.mulf %71, %71 : vector<6x32xf32>
    %cst_20 = arith.constant dense<0.000000e+00> : vector<6xf32>
    %73 = vector.multi_reduction <add>, %72, %cst_20 [1] : vector<6x32xf32> to vector<6xf32>
    %74 = vector.shape_cast %73 : vector<6xf32> to vector<6x1xf32>
    %75 = math.sqrt %74 : vector<6x1xf32>
    %cst_21 = arith.constant 9.99999997E-7 : f32
    %76 = vector.broadcast %cst_21 : f32 to vector<6x1xf32>
    %77 = arith.addf %76, %75 : vector<6x1xf32>
    %cst_22 = arith.constant 1.000000e+00 : f32
    %78 = vector.broadcast %cst_22 : f32 to vector<6x1xf32>
    %79 = arith.divf %78, %77 : vector<6x1xf32>
    %80 = vector.broadcast %79 : vector<6x1xf32> to vector<6x32xf32>
    %81 = arith.mulf %71, %80 : vector<6x32xf32>
    %cst_23 = arith.constant 2.000000e+01 : f32
    %82 = vector.broadcast %cst_23 : f32 to vector<6x32xf32>
    %83 = arith.mulf %81, %82 : vector<6x32xf32>
    %84 = arith.truncf %83 : vector<6x32xf32> to vector<6x32xbf16>
    %cst_24 = arith.constant dense<0.000000e+00> : vector<6x256xf32>
    %85 = tpu.matmul %84, %1, %cst_24 {dimension_numbers = #tpu.dot_dimension_numbers<[1], [0], [0], [1], [0, 0, 1, 1], [], []>} : vector<6x32xbf16>, vector<32x256xbf16>, vector<6x256xf32> -> vector<6x256xf32>
    %86 = arith.mulf %85, %15 : vector<6x256xf32>
    %cst_25 = arith.constant 0xFF800000 : f32
    %87 = vector.shape_cast %6 : vector<6x1xi1> to vector<6x1xi1>
    %88 = vector.broadcast %87 : vector<6x1xi1> to vector<6x256xi1>
    %89 = vector.broadcast %cst_25 : f32 to vector<6x256xf32>
    %90 = arith.select %88, %86, %89 : vector<6x256xi1>, vector<6x256xf32>
    %cst_26 = arith.constant dense<0xFF800000> : vector<256xf32>
    %91 = vector.multi_reduction <maximumf>, %90, %cst_26 [0] : vector<6x256xf32> to vector<256xf32>
    %92 = vector.shape_cast %91 : vector<256xf32> to vector<1x256xf32>
    %cst_27 = arith.constant 0xFF800000 : f32
    %93 = vector.shape_cast %6 : vector<6x1xi1> to vector<6x1xi1>
    %94 = vector.broadcast %93 : vector<6x1xi1> to vector<6x256xi1>
    %95 = vector.broadcast %cst_27 : f32 to vector<6x256xf32>
    %96 = arith.select %94, %95, %86 : vector<6x256xi1>, vector<6x256xf32>
    %cst_28 = arith.constant dense<0xFF800000> : vector<256xf32>
    %97 = vector.multi_reduction <maximumf>, %96, %cst_28 [0] : vector<6x256xf32> to vector<256xf32>
    %98 = vector.shape_cast %97 : vector<256xf32> to vector<1x256xf32>
    %99 = vector.shape_cast %6 : vector<6x1xi1> to vector<6x1xi1>
    %100 = vector.broadcast %99 : vector<6x1xi1> to vector<6x256xi1>
    %101 = vector.shape_cast %92 : vector<1x256xf32> to vector<1x256xf32>
    %102 = vector.broadcast %101 : vector<1x256xf32> to vector<6x256xf32>
    %103 = vector.shape_cast %98 : vector<1x256xf32> to vector<1x256xf32>
    %104 = vector.broadcast %103 : vector<1x256xf32> to vector<6x256xf32>
    %105 = arith.select %100, %102, %104 : vector<6x256xi1>, vector<6x256xf32>
    %106 = arith.subf %86, %105 : vector<6x256xf32>
    %107 = math.exp %106 : vector<6x256xf32>
    %cst_29 = arith.constant 0.000000e+00 : f32
    %108 = vector.shape_cast %6 : vector<6x1xi1> to vector<6x1xi1>
    %109 = vector.broadcast %108 : vector<6x1xi1> to vector<6x256xi1>
    %110 = vector.broadcast %cst_29 : f32 to vector<6x256xf32>
    %111 = arith.select %109, %107, %110 : vector<6x256xi1>, vector<6x256xf32>
    %cst_30 = arith.constant dense<0.000000e+00> : vector<256xf32>
    %112 = vector.multi_reduction <add>, %111, %cst_30 [0] : vector<6x256xf32> to vector<256xf32>
    %113 = vector.shape_cast %112 : vector<256xf32> to vector<1x256xf32>
    %cst_31 = arith.constant dense<0.000000e+00> : vector<256xf32>
    %114 = vector.multi_reduction <add>, %107, %cst_31 [0] : vector<6x256xf32> to vector<256xf32>
    %115 = vector.shape_cast %114 : vector<256xf32> to vector<1x256xf32>
    %116 = arith.subf %115, %113 : vector<1x256xf32>
    %117 = vector.shape_cast %6 : vector<6x1xi1> to vector<6x1xi1>
    %118 = vector.broadcast %117 : vector<6x1xi1> to vector<6x256xi1>
    %119 = vector.shape_cast %113 : vector<1x256xf32> to vector<1x256xf32>
    %120 = vector.broadcast %119 : vector<1x256xf32> to vector<6x256xf32>
    %121 = vector.shape_cast %116 : vector<1x256xf32> to vector<1x256xf32>
    %122 = vector.broadcast %121 : vector<1x256xf32> to vector<6x256xf32>
    %123 = arith.select %118, %120, %122 : vector<6x256xi1>, vector<6x256xf32>
    %124 = tpu.reciprocal %123 {approx = true} : vector<6x256xf32> -> vector<6x256xf32>
    %125 = arith.mulf %107, %124 : vector<6x256xf32>
    %cst_32 = arith.constant dense<0.000000e+00> : vector<6xf32>
    %126 = vector.multi_reduction <add>, %125, %cst_32 [1] : vector<6x256xf32> to vector<6xf32>
    %127 = vector.shape_cast %126 : vector<6xf32> to vector<6x1xf32>
    %cst_33 = arith.constant 9.99999997E-7 : f32
    %128 = vector.broadcast %cst_33 : f32 to vector<6x1xf32>
    %129 = arith.addf %128, %127 : vector<6x1xf32>
    %cst_34 = arith.constant 1.000000e+00 : f32
    %130 = vector.broadcast %cst_34 : f32 to vector<6x1xf32>
    %131 = arith.divf %130, %129 : vector<6x1xf32>
    %132 = vector.broadcast %131 : vector<6x1xf32> to vector<6x256xf32>
    %133 = arith.mulf %125, %132 : vector<6x256xf32>
    %134 = arith.mulf %133, %15 : vector<6x256xf32>
    %135 = arith.truncf %134 : vector<6x256xf32> to vector<6x256xbf16>
    %cst_35 = arith.constant dense<0.000000e+00> : vector<6x32xf32>
    %136 = tpu.matmul %135, %1, %cst_35 {dimension_numbers = #tpu.dot_dimension_numbers<[1], [1], [0], [0], [0, 0, 1, 0], [], []>} : vector<6x256xbf16>, vector<32x256xbf16>, vector<6x32xf32> -> vector<6x32xf32>
    %137 = arith.mulf %136, %136 : vector<6x32xf32>
    %cst_36 = arith.constant dense<0.000000e+00> : vector<6xf32>
    %138 = vector.multi_reduction <add>, %137, %cst_36 [1] : vector<6x32xf32> to vector<6xf32>
    %139 = vector.shape_cast %138 : vector<6xf32> to vector<6x1xf32>
    %140 = math.sqrt %139 : vector<6x1xf32>
    %cst_37 = arith.constant 9.99999997E-7 : f32
    %141 = vector.broadcast %cst_37 : f32 to vector<6x1xf32>
    %142 = arith.addf %141, %140 : vector<6x1xf32>
    %cst_38 = arith.constant 1.000000e+00 : f32
    %143 = vector.broadcast %cst_38 : f32 to vector<6x1xf32>
    %144 = arith.divf %143, %142 : vector<6x1xf32>
    %145 = vector.broadcast %144 : vector<6x1xf32> to vector<6x32xf32>
    %146 = arith.mulf %136, %145 : vector<6x32xf32>
    %cst_39 = arith.constant 2.000000e+01 : f32
    %147 = vector.broadcast %cst_39 : f32 to vector<6x32xf32>
    %148 = arith.mulf %146, %147 : vector<6x32xf32>
    %149 = arith.truncf %148 : vector<6x32xf32> to vector<6x32xbf16>
    %cst_40 = arith.constant dense<0.000000e+00> : vector<6x256xf32>
    %150 = tpu.matmul %149, %1, %cst_40 {dimension_numbers = #tpu.dot_dimension_numbers<[1], [0], [0], [1], [0, 0, 1, 1], [], []>} : vector<6x32xbf16>, vector<32x256xbf16>, vector<6x256xf32> -> vector<6x256xf32>
    %151 = arith.mulf %150, %15 : vector<6x256xf32>
    %cst_41 = arith.constant 0xFF800000 : f32
    %152 = vector.shape_cast %6 : vector<6x1xi1> to vector<6x1xi1>
    %153 = vector.broadcast %152 : vector<6x1xi1> to vector<6x256xi1>
    %154 = vector.broadcast %cst_41 : f32 to vector<6x256xf32>
    %155 = arith.select %153, %151, %154 : vector<6x256xi1>, vector<6x256xf32>
    %cst_42 = arith.constant dense<0xFF800000> : vector<256xf32>
    %156 = vector.multi_reduction <maximumf>, %155, %cst_42 [0] : vector<6x256xf32> to vector<256xf32>
    %157 = vector.shape_cast %156 : vector<256xf32> to vector<1x256xf32>
    %cst_43 = arith.constant 0xFF800000 : f32
    %158 = vector.shape_cast %6 : vector<6x1xi1> to vector<6x1xi1>
    %159 = vector.broadcast %158 : vector<6x1xi1> to vector<6x256xi1>
    %160 = vector.broadcast %cst_43 : f32 to vector<6x256xf32>
    %161 = arith.select %159, %160, %151 : vector<6x256xi1>, vector<6x256xf32>
    %cst_44 = arith.constant dense<0xFF800000> : vector<256xf32>
    %162 = vector.multi_reduction <maximumf>, %161, %cst_44 [0] : vector<6x256xf32> to vector<256xf32>
    %163 = vector.shape_cast %162 : vector<256xf32> to vector<1x256xf32>
    %164 = vector.shape_cast %6 : vector<6x1xi1> to vector<6x1xi1>
    %165 = vector.broadcast %164 : vector<6x1xi1> to vector<6x256xi1>
    %166 = vector.shape_cast %157 : vector<1x256xf32> to vector<1x256xf32>
    %167 = vector.broadcast %166 : vector<1x256xf32> to vector<6x256xf32>
    %168 = vector.shape_cast %163 : vector<1x256xf32> to vector<1x256xf32>
    %169 = vector.broadcast %168 : vector<1x256xf32> to vector<6x256xf32>
    %170 = arith.select %165, %167, %169 : vector<6x256xi1>, vector<6x256xf32>
    %171 = arith.subf %151, %170 : vector<6x256xf32>
    %172 = math.exp %171 : vector<6x256xf32>
    %cst_45 = arith.constant 0.000000e+00 : f32
    %173 = vector.shape_cast %6 : vector<6x1xi1> to vector<6x1xi1>
    %174 = vector.broadcast %173 : vector<6x1xi1> to vector<6x256xi1>
    %175 = vector.broadcast %cst_45 : f32 to vector<6x256xf32>
    %176 = arith.select %174, %172, %175 : vector<6x256xi1>, vector<6x256xf32>
    %cst_46 = arith.constant dense<0.000000e+00> : vector<256xf32>
    %177 = vector.multi_reduction <add>, %176, %cst_46 [0] : vector<6x256xf32> to vector<256xf32>
    %178 = vector.shape_cast %177 : vector<256xf32> to vector<1x256xf32>
    %cst_47 = arith.constant dense<0.000000e+00> : vector<256xf32>
    %179 = vector.multi_reduction <add>, %172, %cst_47 [0] : vector<6x256xf32> to vector<256xf32>
    %180 = vector.shape_cast %179 : vector<256xf32> to vector<1x256xf32>
    %181 = arith.subf %180, %178 : vector<1x256xf32>
    %182 = vector.shape_cast %6 : vector<6x1xi1> to vector<6x1xi1>
    %183 = vector.broadcast %182 : vector<6x1xi1> to vector<6x256xi1>
    %184 = vector.shape_cast %178 : vector<1x256xf32> to vector<1x256xf32>
    %185 = vector.broadcast %184 : vector<1x256xf32> to vector<6x256xf32>
    %186 = vector.shape_cast %181 : vector<1x256xf32> to vector<1x256xf32>
    %187 = vector.broadcast %186 : vector<1x256xf32> to vector<6x256xf32>
    %188 = arith.select %183, %185, %187 : vector<6x256xi1>, vector<6x256xf32>
    %189 = tpu.reciprocal %188 {approx = true} : vector<6x256xf32> -> vector<6x256xf32>
    %190 = arith.mulf %172, %189 : vector<6x256xf32>
    %cst_48 = arith.constant dense<0.000000e+00> : vector<6xf32>
    %191 = vector.multi_reduction <add>, %190, %cst_48 [1] : vector<6x256xf32> to vector<6xf32>
    %192 = vector.shape_cast %191 : vector<6xf32> to vector<6x1xf32>
    %cst_49 = arith.constant 9.99999997E-7 : f32
    %193 = vector.broadcast %cst_49 : f32 to vector<6x1xf32>
    %194 = arith.addf %193, %192 : vector<6x1xf32>
    %cst_50 = arith.constant 1.000000e+00 : f32
    %195 = vector.broadcast %cst_50 : f32 to vector<6x1xf32>
    %196 = arith.divf %195, %194 : vector<6x1xf32>
    %197 = vector.broadcast %196 : vector<6x1xf32> to vector<6x256xf32>
    %198 = arith.mulf %190, %197 : vector<6x256xf32>
    %199 = arith.mulf %198, %15 : vector<6x256xf32>
    %200 = arith.truncf %199 : vector<6x256xf32> to vector<6x256xbf16>
    %cst_51 = arith.constant dense<0.000000e+00> : vector<6x32xf32>
    %201 = tpu.matmul %200, %1, %cst_51 {dimension_numbers = #tpu.dot_dimension_numbers<[1], [1], [0], [0], [0, 0, 1, 0], [], []>} : vector<6x256xbf16>, vector<32x256xbf16>, vector<6x32xf32> -> vector<6x32xf32>
    %202 = arith.mulf %201, %201 : vector<6x32xf32>
    %cst_52 = arith.constant dense<0.000000e+00> : vector<6xf32>
    %203 = vector.multi_reduction <add>, %202, %cst_52 [1] : vector<6x32xf32> to vector<6xf32>
    %204 = vector.shape_cast %203 : vector<6xf32> to vector<6x1xf32>
    %205 = math.sqrt %204 : vector<6x1xf32>
    %cst_53 = arith.constant 9.99999997E-7 : f32
    %206 = vector.broadcast %cst_53 : f32 to vector<6x1xf32>
    %207 = arith.addf %206, %205 : vector<6x1xf32>
    %cst_54 = arith.constant 1.000000e+00 : f32
    %208 = vector.broadcast %cst_54 : f32 to vector<6x1xf32>
    %209 = arith.divf %208, %207 : vector<6x1xf32>
    %210 = vector.broadcast %209 : vector<6x1xf32> to vector<6x32xf32>
    %211 = arith.mulf %201, %210 : vector<6x32xf32>
    %cst_55 = arith.constant 2.000000e+01 : f32
    %212 = vector.broadcast %cst_55 : f32 to vector<6x32xf32>
    %213 = arith.mulf %211, %212 : vector<6x32xf32>
    %214 = arith.truncf %213 : vector<6x32xf32> to vector<6x32xbf16>
    %cst_56 = arith.constant dense<0.000000e+00> : vector<6x256xf32>
    %215 = tpu.matmul %214, %1, %cst_56 {dimension_numbers = #tpu.dot_dimension_numbers<[1], [0], [0], [1], [0, 0, 1, 1], [], []>} : vector<6x32xbf16>, vector<32x256xbf16>, vector<6x256xf32> -> vector<6x256xf32>
    %216 = arith.mulf %215, %15 : vector<6x256xf32>
    %cst_57 = arith.constant 0xFF800000 : f32
    %217 = vector.shape_cast %6 : vector<6x1xi1> to vector<6x1xi1>
    %218 = vector.broadcast %217 : vector<6x1xi1> to vector<6x256xi1>
    %219 = vector.broadcast %cst_57 : f32 to vector<6x256xf32>
    %220 = arith.select %218, %216, %219 : vector<6x256xi1>, vector<6x256xf32>
    %cst_58 = arith.constant dense<0xFF800000> : vector<256xf32>
    %221 = vector.multi_reduction <maximumf>, %220, %cst_58 [0] : vector<6x256xf32> to vector<256xf32>
    %222 = vector.shape_cast %221 : vector<256xf32> to vector<1x256xf32>
    %cst_59 = arith.constant 0xFF800000 : f32
    %223 = vector.shape_cast %6 : vector<6x1xi1> to vector<6x1xi1>
    %224 = vector.broadcast %223 : vector<6x1xi1> to vector<6x256xi1>
    %225 = vector.broadcast %cst_59 : f32 to vector<6x256xf32>
    %226 = arith.select %224, %225, %216 : vector<6x256xi1>, vector<6x256xf32>
    %cst_60 = arith.constant dense<0xFF800000> : vector<256xf32>
    %227 = vector.multi_reduction <maximumf>, %226, %cst_60 [0] : vector<6x256xf32> to vector<256xf32>
    %228 = vector.shape_cast %227 : vector<256xf32> to vector<1x256xf32>
    %229 = vector.shape_cast %6 : vector<6x1xi1> to vector<6x1xi1>
    %230 = vector.broadcast %229 : vector<6x1xi1> to vector<6x256xi1>
    %231 = vector.shape_cast %222 : vector<1x256xf32> to vector<1x256xf32>
    %232 = vector.broadcast %231 : vector<1x256xf32> to vector<6x256xf32>
    %233 = vector.shape_cast %228 : vector<1x256xf32> to vector<1x256xf32>
    %234 = vector.broadcast %233 : vector<1x256xf32> to vector<6x256xf32>
    %235 = arith.select %230, %232, %234 : vector<6x256xi1>, vector<6x256xf32>
    %236 = arith.subf %216, %235 : vector<6x256xf32>
    %237 = math.exp %236 : vector<6x256xf32>
    %cst_61 = arith.constant 0.000000e+00 : f32
    %238 = vector.shape_cast %6 : vector<6x1xi1> to vector<6x1xi1>
    %239 = vector.broadcast %238 : vector<6x1xi1> to vector<6x256xi1>
    %240 = vector.broadcast %cst_61 : f32 to vector<6x256xf32>
    %241 = arith.select %239, %237, %240 : vector<6x256xi1>, vector<6x256xf32>
    %cst_62 = arith.constant dense<0.000000e+00> : vector<256xf32>
    %242 = vector.multi_reduction <add>, %241, %cst_62 [0] : vector<6x256xf32> to vector<256xf32>
    %243 = vector.shape_cast %242 : vector<256xf32> to vector<1x256xf32>
    %cst_63 = arith.constant dense<0.000000e+00> : vector<256xf32>
    %244 = vector.multi_reduction <add>, %237, %cst_63 [0] : vector<6x256xf32> to vector<256xf32>
    %245 = vector.shape_cast %244 : vector<256xf32> to vector<1x256xf32>
    %246 = arith.subf %245, %243 : vector<1x256xf32>
    %247 = vector.shape_cast %6 : vector<6x1xi1> to vector<6x1xi1>
    %248 = vector.broadcast %247 : vector<6x1xi1> to vector<6x256xi1>
    %249 = vector.shape_cast %243 : vector<1x256xf32> to vector<1x256xf32>
    %250 = vector.broadcast %249 : vector<1x256xf32> to vector<6x256xf32>
    %251 = vector.shape_cast %246 : vector<1x256xf32> to vector<1x256xf32>
    %252 = vector.broadcast %251 : vector<1x256xf32> to vector<6x256xf32>
    %253 = arith.select %248, %250, %252 : vector<6x256xi1>, vector<6x256xf32>
    %254 = tpu.reciprocal %253 {approx = true} : vector<6x256xf32> -> vector<6x256xf32>
    %255 = arith.mulf %237, %254 : vector<6x256xf32>
    %cst_64 = arith.constant dense<0.000000e+00> : vector<6xf32>
    %256 = vector.multi_reduction <add>, %255, %cst_64 [1] : vector<6x256xf32> to vector<6xf32>
    %257 = vector.shape_cast %256 : vector<6xf32> to vector<6x1xf32>
    %cst_65 = arith.constant 9.99999997E-7 : f32
    %258 = vector.broadcast %cst_65 : f32 to vector<6x1xf32>
    %259 = arith.addf %258, %257 : vector<6x1xf32>
    %cst_66 = arith.constant 1.000000e+00 : f32
    %260 = vector.broadcast %cst_66 : f32 to vector<6x1xf32>
    %261 = arith.divf %260, %259 : vector<6x1xf32>
    %262 = vector.broadcast %261 : vector<6x1xf32> to vector<6x256xf32>
    %263 = arith.mulf %255, %262 : vector<6x256xf32>
    %264 = arith.mulf %263, %15 : vector<6x256xf32>
    %265 = arith.truncf %264 : vector<6x256xf32> to vector<6x256xbf16>
    %cst_67 = arith.constant dense<0.000000e+00> : vector<6x32xf32>
    %266 = tpu.matmul %265, %1, %cst_67 {dimension_numbers = #tpu.dot_dimension_numbers<[1], [1], [0], [0], [0, 0, 1, 0], [], []>} : vector<6x256xbf16>, vector<32x256xbf16>, vector<6x32xf32> -> vector<6x32xf32>
    %267 = arith.mulf %266, %266 : vector<6x32xf32>
    %cst_68 = arith.constant dense<0.000000e+00> : vector<6xf32>
    %268 = vector.multi_reduction <add>, %267, %cst_68 [1] : vector<6x32xf32> to vector<6xf32>
    %269 = vector.shape_cast %268 : vector<6xf32> to vector<6x1xf32>
    %270 = math.sqrt %269 : vector<6x1xf32>
    %cst_69 = arith.constant 9.99999997E-7 : f32
    %271 = vector.broadcast %cst_69 : f32 to vector<6x1xf32>
    %272 = arith.addf %271, %270 : vector<6x1xf32>
    %cst_70 = arith.constant 1.000000e+00 : f32
    %273 = vector.broadcast %cst_70 : f32 to vector<6x1xf32>
    %274 = arith.divf %273, %272 : vector<6x1xf32>
    %275 = vector.broadcast %274 : vector<6x1xf32> to vector<6x32xf32>
    %276 = arith.mulf %266, %275 : vector<6x32xf32>
    %cst_71 = arith.constant 2.000000e+01 : f32
    %277 = vector.broadcast %cst_71 : f32 to vector<6x32xf32>
    %278 = arith.mulf %276, %277 : vector<6x32xf32>
    %279 = arith.truncf %278 : vector<6x32xf32> to vector<6x32xbf16>
    %cst_72 = arith.constant dense<0.000000e+00> : vector<6x256xf32>
    %280 = tpu.matmul %279, %1, %cst_72 {dimension_numbers = #tpu.dot_dimension_numbers<[1], [0], [0], [1], [0, 0, 1, 1], [], []>} : vector<6x32xbf16>, vector<32x256xbf16>, vector<6x256xf32> -> vector<6x256xf32>
    %281 = arith.mulf %280, %15 : vector<6x256xf32>
    %cst_73 = arith.constant 0xFF800000 : f32
    %282 = vector.shape_cast %6 : vector<6x1xi1> to vector<6x1xi1>
    %283 = vector.broadcast %282 : vector<6x1xi1> to vector<6x256xi1>
    %284 = vector.broadcast %cst_73 : f32 to vector<6x256xf32>
    %285 = arith.select %283, %281, %284 : vector<6x256xi1>, vector<6x256xf32>
    %cst_74 = arith.constant dense<0xFF800000> : vector<256xf32>
    %286 = vector.multi_reduction <maximumf>, %285, %cst_74 [0] : vector<6x256xf32> to vector<256xf32>
    %287 = vector.shape_cast %286 : vector<256xf32> to vector<1x256xf32>
    %cst_75 = arith.constant 0xFF800000 : f32
    %288 = vector.shape_cast %6 : vector<6x1xi1> to vector<6x1xi1>
    %289 = vector.broadcast %288 : vector<6x1xi1> to vector<6x256xi1>
    %290 = vector.broadcast %cst_75 : f32 to vector<6x256xf32>
    %291 = arith.select %289, %290, %281 : vector<6x256xi1>, vector<6x256xf32>
    %cst_76 = arith.constant dense<0xFF800000> : vector<256xf32>
    %292 = vector.multi_reduction <maximumf>, %291, %cst_76 [0] : vector<6x256xf32> to vector<256xf32>
    %293 = vector.shape_cast %292 : vector<256xf32> to vector<1x256xf32>
    %294 = vector.shape_cast %6 : vector<6x1xi1> to vector<6x1xi1>
    %295 = vector.broadcast %294 : vector<6x1xi1> to vector<6x256xi1>
    %296 = vector.shape_cast %287 : vector<1x256xf32> to vector<1x256xf32>
    %297 = vector.broadcast %296 : vector<1x256xf32> to vector<6x256xf32>
    %298 = vector.shape_cast %293 : vector<1x256xf32> to vector<1x256xf32>
    %299 = vector.broadcast %298 : vector<1x256xf32> to vector<6x256xf32>
    %300 = arith.select %295, %297, %299 : vector<6x256xi1>, vector<6x256xf32>
    %301 = arith.subf %281, %300 : vector<6x256xf32>
    %302 = math.exp %301 : vector<6x256xf32>
    %cst_77 = arith.constant 0.000000e+00 : f32
    %303 = vector.shape_cast %6 : vector<6x1xi1> to vector<6x1xi1>
    %304 = vector.broadcast %303 : vector<6x1xi1> to vector<6x256xi1>
    %305 = vector.broadcast %cst_77 : f32 to vector<6x256xf32>
    %306 = arith.select %304, %302, %305 : vector<6x256xi1>, vector<6x256xf32>
    %cst_78 = arith.constant dense<0.000000e+00> : vector<256xf32>
    %307 = vector.multi_reduction <add>, %306, %cst_78 [0] : vector<6x256xf32> to vector<256xf32>
    %308 = vector.shape_cast %307 : vector<256xf32> to vector<1x256xf32>
    %cst_79 = arith.constant dense<0.000000e+00> : vector<256xf32>
    %309 = vector.multi_reduction <add>, %302, %cst_79 [0] : vector<6x256xf32> to vector<256xf32>
    %310 = vector.shape_cast %309 : vector<256xf32> to vector<1x256xf32>
    %311 = arith.subf %310, %308 : vector<1x256xf32>
    %312 = vector.shape_cast %6 : vector<6x1xi1> to vector<6x1xi1>
    %313 = vector.broadcast %312 : vector<6x1xi1> to vector<6x256xi1>
    %314 = vector.shape_cast %308 : vector<1x256xf32> to vector<1x256xf32>
    %315 = vector.broadcast %314 : vector<1x256xf32> to vector<6x256xf32>
    %316 = vector.shape_cast %311 : vector<1x256xf32> to vector<1x256xf32>
    %317 = vector.broadcast %316 : vector<1x256xf32> to vector<6x256xf32>
    %318 = arith.select %313, %315, %317 : vector<6x256xi1>, vector<6x256xf32>
    %319 = tpu.reciprocal %318 {approx = true} : vector<6x256xf32> -> vector<6x256xf32>
    %320 = arith.mulf %302, %319 : vector<6x256xf32>
    %cst_80 = arith.constant dense<0.000000e+00> : vector<6xf32>
    %321 = vector.multi_reduction <add>, %320, %cst_80 [1] : vector<6x256xf32> to vector<6xf32>
    %322 = vector.shape_cast %321 : vector<6xf32> to vector<6x1xf32>
    %cst_81 = arith.constant 9.99999997E-7 : f32
    %323 = vector.broadcast %cst_81 : f32 to vector<6x1xf32>
    %324 = arith.addf %323, %322 : vector<6x1xf32>
    %cst_82 = arith.constant 1.000000e+00 : f32
    %325 = vector.broadcast %cst_82 : f32 to vector<6x1xf32>
    %326 = arith.divf %325, %324 : vector<6x1xf32>
    %327 = vector.broadcast %326 : vector<6x1xf32> to vector<6x256xf32>
    %328 = arith.mulf %320, %327 : vector<6x256xf32>
    %329 = arith.mulf %328, %15 : vector<6x256xf32>
    %330 = arith.truncf %329 : vector<6x256xf32> to vector<6x256xbf16>
    %cst_83 = arith.constant dense<0.000000e+00> : vector<6x32xf32>
    %331 = tpu.matmul %330, %1, %cst_83 {dimension_numbers = #tpu.dot_dimension_numbers<[1], [1], [0], [0], [0, 0, 1, 0], [], []>} : vector<6x256xbf16>, vector<32x256xbf16>, vector<6x32xf32> -> vector<6x32xf32>
    %332 = arith.mulf %331, %331 : vector<6x32xf32>
    %cst_84 = arith.constant dense<0.000000e+00> : vector<6xf32>
    %333 = vector.multi_reduction <add>, %332, %cst_84 [1] : vector<6x32xf32> to vector<6xf32>
    %334 = vector.shape_cast %333 : vector<6xf32> to vector<6x1xf32>
    %335 = math.sqrt %334 : vector<6x1xf32>
    %cst_85 = arith.constant 9.99999997E-7 : f32
    %336 = vector.broadcast %cst_85 : f32 to vector<6x1xf32>
    %337 = arith.addf %336, %335 : vector<6x1xf32>
    %cst_86 = arith.constant 1.000000e+00 : f32
    %338 = vector.broadcast %cst_86 : f32 to vector<6x1xf32>
    %339 = arith.divf %338, %337 : vector<6x1xf32>
    %340 = vector.broadcast %339 : vector<6x1xf32> to vector<6x32xf32>
    %341 = arith.mulf %331, %340 : vector<6x32xf32>
    %cst_87 = arith.constant 2.000000e+01 : f32
    %342 = vector.broadcast %cst_87 : f32 to vector<6x32xf32>
    %343 = arith.mulf %341, %342 : vector<6x32xf32>
    %344 = arith.truncf %343 : vector<6x32xf32> to vector<6x32xbf16>
    %cst_88 = arith.constant dense<0.000000e+00> : vector<6x256xf32>
    %345 = tpu.matmul %344, %1, %cst_88 {dimension_numbers = #tpu.dot_dimension_numbers<[1], [0], [0], [1], [0, 0, 1, 1], [], []>} : vector<6x32xbf16>, vector<32x256xbf16>, vector<6x256xf32> -> vector<6x256xf32>
    %346 = arith.mulf %345, %15 : vector<6x256xf32>
    %cst_89 = arith.constant 0xFF800000 : f32
    %347 = vector.shape_cast %6 : vector<6x1xi1> to vector<6x1xi1>
    %348 = vector.broadcast %347 : vector<6x1xi1> to vector<6x256xi1>
    %349 = vector.broadcast %cst_89 : f32 to vector<6x256xf32>
    %350 = arith.select %348, %346, %349 : vector<6x256xi1>, vector<6x256xf32>
    %cst_90 = arith.constant dense<0xFF800000> : vector<256xf32>
    %351 = vector.multi_reduction <maximumf>, %350, %cst_90 [0] : vector<6x256xf32> to vector<256xf32>
    %352 = vector.shape_cast %351 : vector<256xf32> to vector<1x256xf32>
    %cst_91 = arith.constant 0xFF800000 : f32
    %353 = vector.shape_cast %6 : vector<6x1xi1> to vector<6x1xi1>
    %354 = vector.broadcast %353 : vector<6x1xi1> to vector<6x256xi1>
    %355 = vector.broadcast %cst_91 : f32 to vector<6x256xf32>
    %356 = arith.select %354, %355, %346 : vector<6x256xi1>, vector<6x256xf32>
    %cst_92 = arith.constant dense<0xFF800000> : vector<256xf32>
    %357 = vector.multi_reduction <maximumf>, %356, %cst_92 [0] : vector<6x256xf32> to vector<256xf32>
    %358 = vector.shape_cast %357 : vector<256xf32> to vector<1x256xf32>
    %359 = vector.shape_cast %6 : vector<6x1xi1> to vector<6x1xi1>
    %360 = vector.broadcast %359 : vector<6x1xi1> to vector<6x256xi1>
    %361 = vector.shape_cast %352 : vector<1x256xf32> to vector<1x256xf32>
    %362 = vector.broadcast %361 : vector<1x256xf32> to vector<6x256xf32>
    %363 = vector.shape_cast %358 : vector<1x256xf32> to vector<1x256xf32>
    %364 = vector.broadcast %363 : vector<1x256xf32> to vector<6x256xf32>
    %365 = arith.select %360, %362, %364 : vector<6x256xi1>, vector<6x256xf32>
    %366 = arith.subf %346, %365 : vector<6x256xf32>
    %367 = math.exp %366 : vector<6x256xf32>
    %cst_93 = arith.constant 0.000000e+00 : f32
    %368 = vector.shape_cast %6 : vector<6x1xi1> to vector<6x1xi1>
    %369 = vector.broadcast %368 : vector<6x1xi1> to vector<6x256xi1>
    %370 = vector.broadcast %cst_93 : f32 to vector<6x256xf32>
    %371 = arith.select %369, %367, %370 : vector<6x256xi1>, vector<6x256xf32>
    %cst_94 = arith.constant dense<0.000000e+00> : vector<256xf32>
    %372 = vector.multi_reduction <add>, %371, %cst_94 [0] : vector<6x256xf32> to vector<256xf32>
    %373 = vector.shape_cast %372 : vector<256xf32> to vector<1x256xf32>
    %cst_95 = arith.constant dense<0.000000e+00> : vector<256xf32>
    %374 = vector.multi_reduction <add>, %367, %cst_95 [0] : vector<6x256xf32> to vector<256xf32>
    %375 = vector.shape_cast %374 : vector<256xf32> to vector<1x256xf32>
    %376 = arith.subf %375, %373 : vector<1x256xf32>
    %377 = vector.shape_cast %6 : vector<6x1xi1> to vector<6x1xi1>
    %378 = vector.broadcast %377 : vector<6x1xi1> to vector<6x256xi1>
    %379 = vector.shape_cast %373 : vector<1x256xf32> to vector<1x256xf32>
    %380 = vector.broadcast %379 : vector<1x256xf32> to vector<6x256xf32>
    %381 = vector.shape_cast %376 : vector<1x256xf32> to vector<1x256xf32>
    %382 = vector.broadcast %381 : vector<1x256xf32> to vector<6x256xf32>
    %383 = arith.select %378, %380, %382 : vector<6x256xi1>, vector<6x256xf32>
    %384 = tpu.reciprocal %383 {approx = true} : vector<6x256xf32> -> vector<6x256xf32>
    %385 = arith.mulf %367, %384 : vector<6x256xf32>
    %cst_96 = arith.constant dense<0.000000e+00> : vector<6xf32>
    %386 = vector.multi_reduction <add>, %385, %cst_96 [1] : vector<6x256xf32> to vector<6xf32>
    %387 = vector.shape_cast %386 : vector<6xf32> to vector<6x1xf32>
    %cst_97 = arith.constant 9.99999997E-7 : f32
    %388 = vector.broadcast %cst_97 : f32 to vector<6x1xf32>
    %389 = arith.addf %388, %387 : vector<6x1xf32>
    %cst_98 = arith.constant 1.000000e+00 : f32
    %390 = vector.broadcast %cst_98 : f32 to vector<6x1xf32>
    %391 = arith.divf %390, %389 : vector<6x1xf32>
    %392 = vector.broadcast %391 : vector<6x1xf32> to vector<6x256xf32>
    %393 = arith.mulf %385, %392 : vector<6x256xf32>
    %394 = arith.mulf %393, %15 : vector<6x256xf32>
    %395 = arith.truncf %394 : vector<6x256xf32> to vector<6x256xbf16>
    %cst_99 = arith.constant dense<0.000000e+00> : vector<6x32xf32>
    %396 = tpu.matmul %395, %1, %cst_99 {dimension_numbers = #tpu.dot_dimension_numbers<[1], [1], [0], [0], [0, 0, 1, 0], [], []>} : vector<6x256xbf16>, vector<32x256xbf16>, vector<6x32xf32> -> vector<6x32xf32>
    %397 = arith.mulf %396, %396 : vector<6x32xf32>
    %cst_100 = arith.constant dense<0.000000e+00> : vector<6xf32>
    %398 = vector.multi_reduction <add>, %397, %cst_100 [1] : vector<6x32xf32> to vector<6xf32>
    %399 = vector.shape_cast %398 : vector<6xf32> to vector<6x1xf32>
    %400 = math.sqrt %399 : vector<6x1xf32>
    %cst_101 = arith.constant 9.99999997E-7 : f32
    %401 = vector.broadcast %cst_101 : f32 to vector<6x1xf32>
    %402 = arith.addf %401, %400 : vector<6x1xf32>
    %cst_102 = arith.constant 1.000000e+00 : f32
    %403 = vector.broadcast %cst_102 : f32 to vector<6x1xf32>
    %404 = arith.divf %403, %402 : vector<6x1xf32>
    %405 = vector.broadcast %404 : vector<6x1xf32> to vector<6x32xf32>
    %406 = arith.mulf %396, %405 : vector<6x32xf32>
    %cst_103 = arith.constant 2.000000e+01 : f32
    %407 = vector.broadcast %cst_103 : f32 to vector<6x32xf32>
    %408 = arith.mulf %406, %407 : vector<6x32xf32>
    %409 = arith.truncf %408 : vector<6x32xf32> to vector<6x32xbf16>
    %cst_104 = arith.constant dense<0.000000e+00> : vector<6x256xf32>
    %410 = tpu.matmul %409, %1, %cst_104 {dimension_numbers = #tpu.dot_dimension_numbers<[1], [0], [0], [1], [0, 0, 1, 1], [], []>} : vector<6x32xbf16>, vector<32x256xbf16>, vector<6x256xf32> -> vector<6x256xf32>
    %411 = arith.mulf %410, %15 : vector<6x256xf32>
    %cst_105 = arith.constant 0xFF800000 : f32
    %412 = vector.shape_cast %6 : vector<6x1xi1> to vector<6x1xi1>
    %413 = vector.broadcast %412 : vector<6x1xi1> to vector<6x256xi1>
    %414 = vector.broadcast %cst_105 : f32 to vector<6x256xf32>
    %415 = arith.select %413, %411, %414 : vector<6x256xi1>, vector<6x256xf32>
    %cst_106 = arith.constant dense<0xFF800000> : vector<256xf32>
    %416 = vector.multi_reduction <maximumf>, %415, %cst_106 [0] : vector<6x256xf32> to vector<256xf32>
    %417 = vector.shape_cast %416 : vector<256xf32> to vector<1x256xf32>
    %cst_107 = arith.constant 0xFF800000 : f32
    %418 = vector.shape_cast %6 : vector<6x1xi1> to vector<6x1xi1>
    %419 = vector.broadcast %418 : vector<6x1xi1> to vector<6x256xi1>
    %420 = vector.broadcast %cst_107 : f32 to vector<6x256xf32>
    %421 = arith.select %419, %420, %411 : vector<6x256xi1>, vector<6x256xf32>
    %cst_108 = arith.constant dense<0xFF800000> : vector<256xf32>
    %422 = vector.multi_reduction <maximumf>, %421, %cst_108 [0] : vector<6x256xf32> to vector<256xf32>
    %423 = vector.shape_cast %422 : vector<256xf32> to vector<1x256xf32>
    %424 = vector.shape_cast %6 : vector<6x1xi1> to vector<6x1xi1>
    %425 = vector.broadcast %424 : vector<6x1xi1> to vector<6x256xi1>
    %426 = vector.shape_cast %417 : vector<1x256xf32> to vector<1x256xf32>
    %427 = vector.broadcast %426 : vector<1x256xf32> to vector<6x256xf32>
    %428 = vector.shape_cast %423 : vector<1x256xf32> to vector<1x256xf32>
    %429 = vector.broadcast %428 : vector<1x256xf32> to vector<6x256xf32>
    %430 = arith.select %425, %427, %429 : vector<6x256xi1>, vector<6x256xf32>
    %431 = arith.subf %411, %430 : vector<6x256xf32>
    %432 = math.exp %431 : vector<6x256xf32>
    %cst_109 = arith.constant 0.000000e+00 : f32
    %433 = vector.shape_cast %6 : vector<6x1xi1> to vector<6x1xi1>
    %434 = vector.broadcast %433 : vector<6x1xi1> to vector<6x256xi1>
    %435 = vector.broadcast %cst_109 : f32 to vector<6x256xf32>
    %436 = arith.select %434, %432, %435 : vector<6x256xi1>, vector<6x256xf32>
    %cst_110 = arith.constant dense<0.000000e+00> : vector<256xf32>
    %437 = vector.multi_reduction <add>, %436, %cst_110 [0] : vector<6x256xf32> to vector<256xf32>
    %438 = vector.shape_cast %437 : vector<256xf32> to vector<1x256xf32>
    %cst_111 = arith.constant dense<0.000000e+00> : vector<256xf32>
    %439 = vector.multi_reduction <add>, %432, %cst_111 [0] : vector<6x256xf32> to vector<256xf32>
    %440 = vector.shape_cast %439 : vector<256xf32> to vector<1x256xf32>
    %441 = arith.subf %440, %438 : vector<1x256xf32>
    %442 = vector.shape_cast %6 : vector<6x1xi1> to vector<6x1xi1>
    %443 = vector.broadcast %442 : vector<6x1xi1> to vector<6x256xi1>
    %444 = vector.shape_cast %438 : vector<1x256xf32> to vector<1x256xf32>
    %445 = vector.broadcast %444 : vector<1x256xf32> to vector<6x256xf32>
    %446 = vector.shape_cast %441 : vector<1x256xf32> to vector<1x256xf32>
    %447 = vector.broadcast %446 : vector<1x256xf32> to vector<6x256xf32>
    %448 = arith.select %443, %445, %447 : vector<6x256xi1>, vector<6x256xf32>
    %449 = tpu.reciprocal %448 {approx = true} : vector<6x256xf32> -> vector<6x256xf32>
    %450 = arith.mulf %432, %449 : vector<6x256xf32>
    %cst_112 = arith.constant dense<0.000000e+00> : vector<6xf32>
    %451 = vector.multi_reduction <add>, %450, %cst_112 [1] : vector<6x256xf32> to vector<6xf32>
    %452 = vector.shape_cast %451 : vector<6xf32> to vector<6x1xf32>
    %cst_113 = arith.constant 9.99999997E-7 : f32
    %453 = vector.broadcast %cst_113 : f32 to vector<6x1xf32>
    %454 = arith.addf %453, %452 : vector<6x1xf32>
    %cst_114 = arith.constant 1.000000e+00 : f32
    %455 = vector.broadcast %cst_114 : f32 to vector<6x1xf32>
    %456 = arith.divf %455, %454 : vector<6x1xf32>
    %457 = vector.broadcast %456 : vector<6x1xf32> to vector<6x256xf32>
    %458 = arith.mulf %450, %457 : vector<6x256xf32>
    %459 = arith.mulf %458, %15 : vector<6x256xf32>
    %460 = arith.truncf %459 : vector<6x256xf32> to vector<6x256xbf16>
    %cst_115 = arith.constant dense<0.000000e+00> : vector<6x32xf32>
    %461 = tpu.matmul %460, %1, %cst_115 {dimension_numbers = #tpu.dot_dimension_numbers<[1], [1], [0], [0], [0, 0, 1, 0], [], []>} : vector<6x256xbf16>, vector<32x256xbf16>, vector<6x32xf32> -> vector<6x32xf32>
    %462 = arith.mulf %461, %461 : vector<6x32xf32>
    %cst_116 = arith.constant dense<0.000000e+00> : vector<6xf32>
    %463 = vector.multi_reduction <add>, %462, %cst_116 [1] : vector<6x32xf32> to vector<6xf32>
    %464 = vector.shape_cast %463 : vector<6xf32> to vector<6x1xf32>
    %465 = math.sqrt %464 : vector<6x1xf32>
    %cst_117 = arith.constant 9.99999997E-7 : f32
    %466 = vector.broadcast %cst_117 : f32 to vector<6x1xf32>
    %467 = arith.addf %466, %465 : vector<6x1xf32>
    %cst_118 = arith.constant 1.000000e+00 : f32
    %468 = vector.broadcast %cst_118 : f32 to vector<6x1xf32>
    %469 = arith.divf %468, %467 : vector<6x1xf32>
    %470 = vector.broadcast %469 : vector<6x1xf32> to vector<6x32xf32>
    %471 = arith.mulf %461, %470 : vector<6x32xf32>
    %cst_119 = arith.constant 2.000000e+01 : f32
    %472 = vector.broadcast %cst_119 : f32 to vector<6x32xf32>
    %473 = arith.mulf %471, %472 : vector<6x32xf32>
    %474 = arith.truncf %473 : vector<6x32xf32> to vector<6x32xbf16>
    %cst_120 = arith.constant dense<0.000000e+00> : vector<6x256xf32>
    %475 = tpu.matmul %474, %1, %cst_120 {dimension_numbers = #tpu.dot_dimension_numbers<[1], [0], [0], [1], [0, 0, 1, 1], [], []>} : vector<6x32xbf16>, vector<32x256xbf16>, vector<6x256xf32> -> vector<6x256xf32>
    %476 = arith.mulf %475, %15 : vector<6x256xf32>
    %cst_121 = arith.constant 0xFF800000 : f32
    %477 = vector.shape_cast %6 : vector<6x1xi1> to vector<6x1xi1>
    %478 = vector.broadcast %477 : vector<6x1xi1> to vector<6x256xi1>
    %479 = vector.broadcast %cst_121 : f32 to vector<6x256xf32>
    %480 = arith.select %478, %476, %479 : vector<6x256xi1>, vector<6x256xf32>
    %cst_122 = arith.constant dense<0xFF800000> : vector<256xf32>
    %481 = vector.multi_reduction <maximumf>, %480, %cst_122 [0] : vector<6x256xf32> to vector<256xf32>
    %482 = vector.shape_cast %481 : vector<256xf32> to vector<1x256xf32>
    %cst_123 = arith.constant 0xFF800000 : f32
    %483 = vector.shape_cast %6 : vector<6x1xi1> to vector<6x1xi1>
    %484 = vector.broadcast %483 : vector<6x1xi1> to vector<6x256xi1>
    %485 = vector.broadcast %cst_123 : f32 to vector<6x256xf32>
    %486 = arith.select %484, %485, %476 : vector<6x256xi1>, vector<6x256xf32>
    %cst_124 = arith.constant dense<0xFF800000> : vector<256xf32>
    %487 = vector.multi_reduction <maximumf>, %486, %cst_124 [0] : vector<6x256xf32> to vector<256xf32>
    %488 = vector.shape_cast %487 : vector<256xf32> to vector<1x256xf32>
    %489 = vector.shape_cast %6 : vector<6x1xi1> to vector<6x1xi1>
    %490 = vector.broadcast %489 : vector<6x1xi1> to vector<6x256xi1>
    %491 = vector.shape_cast %482 : vector<1x256xf32> to vector<1x256xf32>
    %492 = vector.broadcast %491 : vector<1x256xf32> to vector<6x256xf32>
    %493 = vector.shape_cast %488 : vector<1x256xf32> to vector<1x256xf32>
    %494 = vector.broadcast %493 : vector<1x256xf32> to vector<6x256xf32>
    %495 = arith.select %490, %492, %494 : vector<6x256xi1>, vector<6x256xf32>
    %496 = arith.subf %476, %495 : vector<6x256xf32>
    %497 = math.exp %496 : vector<6x256xf32>
    %cst_125 = arith.constant 0.000000e+00 : f32
    %498 = vector.shape_cast %6 : vector<6x1xi1> to vector<6x1xi1>
    %499 = vector.broadcast %498 : vector<6x1xi1> to vector<6x256xi1>
    %500 = vector.broadcast %cst_125 : f32 to vector<6x256xf32>
    %501 = arith.select %499, %497, %500 : vector<6x256xi1>, vector<6x256xf32>
    %cst_126 = arith.constant dense<0.000000e+00> : vector<256xf32>
    %502 = vector.multi_reduction <add>, %501, %cst_126 [0] : vector<6x256xf32> to vector<256xf32>
    %503 = vector.shape_cast %502 : vector<256xf32> to vector<1x256xf32>
    %cst_127 = arith.constant dense<0.000000e+00> : vector<256xf32>
    %504 = vector.multi_reduction <add>, %497, %cst_127 [0] : vector<6x256xf32> to vector<256xf32>
    %505 = vector.shape_cast %504 : vector<256xf32> to vector<1x256xf32>
    %506 = arith.subf %505, %503 : vector<1x256xf32>
    %507 = vector.shape_cast %6 : vector<6x1xi1> to vector<6x1xi1>
    %508 = vector.broadcast %507 : vector<6x1xi1> to vector<6x256xi1>
    %509 = vector.shape_cast %503 : vector<1x256xf32> to vector<1x256xf32>
    %510 = vector.broadcast %509 : vector<1x256xf32> to vector<6x256xf32>
    %511 = vector.shape_cast %506 : vector<1x256xf32> to vector<1x256xf32>
    %512 = vector.broadcast %511 : vector<1x256xf32> to vector<6x256xf32>
    %513 = arith.select %508, %510, %512 : vector<6x256xi1>, vector<6x256xf32>
    %514 = tpu.reciprocal %513 {approx = true} : vector<6x256xf32> -> vector<6x256xf32>
    %515 = arith.mulf %497, %514 : vector<6x256xf32>
    %cst_128 = arith.constant dense<0.000000e+00> : vector<6xf32>
    %516 = vector.multi_reduction <add>, %515, %cst_128 [1] : vector<6x256xf32> to vector<6xf32>
    %517 = vector.shape_cast %516 : vector<6xf32> to vector<6x1xf32>
    %cst_129 = arith.constant 9.99999997E-7 : f32
    %518 = vector.broadcast %cst_129 : f32 to vector<6x1xf32>
    %519 = arith.addf %518, %517 : vector<6x1xf32>
    %cst_130 = arith.constant 1.000000e+00 : f32
    %520 = vector.broadcast %cst_130 : f32 to vector<6x1xf32>
    %521 = arith.divf %520, %519 : vector<6x1xf32>
    %522 = vector.broadcast %521 : vector<6x1xf32> to vector<6x256xf32>
    %523 = arith.mulf %515, %522 : vector<6x256xf32>
    %524 = arith.mulf %523, %15 : vector<6x256xf32>
    %525 = arith.truncf %524 : vector<6x256xf32> to vector<6x256xbf16>
    %cst_131 = arith.constant dense<0.000000e+00> : vector<6x32xf32>
    %526 = tpu.matmul %525, %1, %cst_131 {dimension_numbers = #tpu.dot_dimension_numbers<[1], [1], [0], [0], [0, 0, 1, 0], [], []>} : vector<6x256xbf16>, vector<32x256xbf16>, vector<6x32xf32> -> vector<6x32xf32>
    %527 = arith.mulf %526, %526 : vector<6x32xf32>
    %cst_132 = arith.constant dense<0.000000e+00> : vector<6xf32>
    %528 = vector.multi_reduction <add>, %527, %cst_132 [1] : vector<6x32xf32> to vector<6xf32>
    %529 = vector.shape_cast %528 : vector<6xf32> to vector<6x1xf32>
    %530 = math.sqrt %529 : vector<6x1xf32>
    %cst_133 = arith.constant 9.99999997E-7 : f32
    %531 = vector.broadcast %cst_133 : f32 to vector<6x1xf32>
    %532 = arith.addf %531, %530 : vector<6x1xf32>
    %cst_134 = arith.constant 1.000000e+00 : f32
    %533 = vector.broadcast %cst_134 : f32 to vector<6x1xf32>
    %534 = arith.divf %533, %532 : vector<6x1xf32>
    %535 = vector.broadcast %534 : vector<6x1xf32> to vector<6x32xf32>
    %536 = arith.mulf %526, %535 : vector<6x32xf32>
    %cst_135 = arith.constant 2.000000e+01 : f32
    %537 = vector.broadcast %cst_135 : f32 to vector<6x32xf32>
    %538 = arith.mulf %536, %537 : vector<6x32xf32>
    %539 = arith.truncf %538 : vector<6x32xf32> to vector<6x32xbf16>
    %cst_136 = arith.constant dense<0.000000e+00> : vector<6x256xf32>
    %540 = tpu.matmul %539, %1, %cst_136 {dimension_numbers = #tpu.dot_dimension_numbers<[1], [0], [0], [1], [0, 0, 1, 1], [], []>} : vector<6x32xbf16>, vector<32x256xbf16>, vector<6x256xf32> -> vector<6x256xf32>
    %541 = arith.mulf %540, %15 : vector<6x256xf32>
    %cst_137 = arith.constant 0xFF800000 : f32
    %542 = vector.shape_cast %6 : vector<6x1xi1> to vector<6x1xi1>
    %543 = vector.broadcast %542 : vector<6x1xi1> to vector<6x256xi1>
    %544 = vector.broadcast %cst_137 : f32 to vector<6x256xf32>
    %545 = arith.select %543, %541, %544 : vector<6x256xi1>, vector<6x256xf32>
    %cst_138 = arith.constant dense<0xFF800000> : vector<256xf32>
    %546 = vector.multi_reduction <maximumf>, %545, %cst_138 [0] : vector<6x256xf32> to vector<256xf32>
    %547 = vector.shape_cast %546 : vector<256xf32> to vector<1x256xf32>
    %cst_139 = arith.constant 0xFF800000 : f32
    %548 = vector.shape_cast %6 : vector<6x1xi1> to vector<6x1xi1>
    %549 = vector.broadcast %548 : vector<6x1xi1> to vector<6x256xi1>
    %550 = vector.broadcast %cst_139 : f32 to vector<6x256xf32>
    %551 = arith.select %549, %550, %541 : vector<6x256xi1>, vector<6x256xf32>
    %cst_140 = arith.constant dense<0xFF800000> : vector<256xf32>
    %552 = vector.multi_reduction <maximumf>, %551, %cst_140 [0] : vector<6x256xf32> to vector<256xf32>
    %553 = vector.shape_cast %552 : vector<256xf32> to vector<1x256xf32>
    %554 = vector.shape_cast %6 : vector<6x1xi1> to vector<6x1xi1>
    %555 = vector.broadcast %554 : vector<6x1xi1> to vector<6x256xi1>
    %556 = vector.shape_cast %547 : vector<1x256xf32> to vector<1x256xf32>
    %557 = vector.broadcast %556 : vector<1x256xf32> to vector<6x256xf32>
    %558 = vector.shape_cast %553 : vector<1x256xf32> to vector<1x256xf32>
    %559 = vector.broadcast %558 : vector<1x256xf32> to vector<6x256xf32>
    %560 = arith.select %555, %557, %559 : vector<6x256xi1>, vector<6x256xf32>
    %561 = arith.subf %541, %560 : vector<6x256xf32>
    %562 = math.exp %561 : vector<6x256xf32>
    %cst_141 = arith.constant 0.000000e+00 : f32
    %563 = vector.shape_cast %6 : vector<6x1xi1> to vector<6x1xi1>
    %564 = vector.broadcast %563 : vector<6x1xi1> to vector<6x256xi1>
    %565 = vector.broadcast %cst_141 : f32 to vector<6x256xf32>
    %566 = arith.select %564, %562, %565 : vector<6x256xi1>, vector<6x256xf32>
    %cst_142 = arith.constant dense<0.000000e+00> : vector<256xf32>
    %567 = vector.multi_reduction <add>, %566, %cst_142 [0] : vector<6x256xf32> to vector<256xf32>
    %568 = vector.shape_cast %567 : vector<256xf32> to vector<1x256xf32>
    %cst_143 = arith.constant dense<0.000000e+00> : vector<256xf32>
    %569 = vector.multi_reduction <add>, %562, %cst_143 [0] : vector<6x256xf32> to vector<256xf32>
    %570 = vector.shape_cast %569 : vector<256xf32> to vector<1x256xf32>
    %571 = arith.subf %570, %568 : vector<1x256xf32>
    %572 = vector.shape_cast %6 : vector<6x1xi1> to vector<6x1xi1>
    %573 = vector.broadcast %572 : vector<6x1xi1> to vector<6x256xi1>
    %574 = vector.shape_cast %568 : vector<1x256xf32> to vector<1x256xf32>
    %575 = vector.broadcast %574 : vector<1x256xf32> to vector<6x256xf32>
    %576 = vector.shape_cast %571 : vector<1x256xf32> to vector<1x256xf32>
    %577 = vector.broadcast %576 : vector<1x256xf32> to vector<6x256xf32>
    %578 = arith.select %573, %575, %577 : vector<6x256xi1>, vector<6x256xf32>
    %579 = tpu.reciprocal %578 {approx = true} : vector<6x256xf32> -> vector<6x256xf32>
    %580 = arith.mulf %562, %579 : vector<6x256xf32>
    %cst_144 = arith.constant dense<0.000000e+00> : vector<6xf32>
    %581 = vector.multi_reduction <add>, %580, %cst_144 [1] : vector<6x256xf32> to vector<6xf32>
    %582 = vector.shape_cast %581 : vector<6xf32> to vector<6x1xf32>
    %cst_145 = arith.constant 9.99999997E-7 : f32
    %583 = vector.broadcast %cst_145 : f32 to vector<6x1xf32>
    %584 = arith.addf %583, %582 : vector<6x1xf32>
    %cst_146 = arith.constant 1.000000e+00 : f32
    %585 = vector.broadcast %cst_146 : f32 to vector<6x1xf32>
    %586 = arith.divf %585, %584 : vector<6x1xf32>
    %587 = vector.broadcast %586 : vector<6x1xf32> to vector<6x256xf32>
    %588 = arith.mulf %580, %587 : vector<6x256xf32>
    %589 = arith.mulf %588, %15 : vector<6x256xf32>
    %590 = arith.truncf %589 : vector<6x256xf32> to vector<6x256xbf16>
    %cst_147 = arith.constant dense<0.000000e+00> : vector<6x32xf32>
    %591 = tpu.matmul %590, %1, %cst_147 {dimension_numbers = #tpu.dot_dimension_numbers<[1], [1], [0], [0], [0, 0, 1, 0], [], []>} : vector<6x256xbf16>, vector<32x256xbf16>, vector<6x32xf32> -> vector<6x32xf32>
    %592 = arith.mulf %591, %591 : vector<6x32xf32>
    %cst_148 = arith.constant dense<0.000000e+00> : vector<6xf32>
    %593 = vector.multi_reduction <add>, %592, %cst_148 [1] : vector<6x32xf32> to vector<6xf32>
    %594 = vector.shape_cast %593 : vector<6xf32> to vector<6x1xf32>
    %595 = math.sqrt %594 : vector<6x1xf32>
    %cst_149 = arith.constant 9.99999997E-7 : f32
    %596 = vector.broadcast %cst_149 : f32 to vector<6x1xf32>
    %597 = arith.addf %596, %595 : vector<6x1xf32>
    %cst_150 = arith.constant 1.000000e+00 : f32
    %598 = vector.broadcast %cst_150 : f32 to vector<6x1xf32>
    %599 = arith.divf %598, %597 : vector<6x1xf32>
    %600 = vector.broadcast %599 : vector<6x1xf32> to vector<6x32xf32>
    %601 = arith.mulf %591, %600 : vector<6x32xf32>
    %cst_151 = arith.constant 2.000000e+01 : f32
    %602 = vector.broadcast %cst_151 : f32 to vector<6x32xf32>
    %603 = arith.mulf %601, %602 : vector<6x32xf32>
    %604 = arith.truncf %603 : vector<6x32xf32> to vector<6x32xbf16>
    %cst_152 = arith.constant dense<0.000000e+00> : vector<6x256xf32>
    %605 = tpu.matmul %604, %1, %cst_152 {dimension_numbers = #tpu.dot_dimension_numbers<[1], [0], [0], [1], [0, 0, 1, 1], [], []>} : vector<6x32xbf16>, vector<32x256xbf16>, vector<6x256xf32> -> vector<6x256xf32>
    %606 = arith.mulf %605, %15 : vector<6x256xf32>
    %cst_153 = arith.constant 0xFF800000 : f32
    %607 = vector.shape_cast %6 : vector<6x1xi1> to vector<6x1xi1>
    %608 = vector.broadcast %607 : vector<6x1xi1> to vector<6x256xi1>
    %609 = vector.broadcast %cst_153 : f32 to vector<6x256xf32>
    %610 = arith.select %608, %606, %609 : vector<6x256xi1>, vector<6x256xf32>
    %cst_154 = arith.constant dense<0xFF800000> : vector<256xf32>
    %611 = vector.multi_reduction <maximumf>, %610, %cst_154 [0] : vector<6x256xf32> to vector<256xf32>
    %612 = vector.shape_cast %611 : vector<256xf32> to vector<1x256xf32>
    %cst_155 = arith.constant 0xFF800000 : f32
    %613 = vector.shape_cast %6 : vector<6x1xi1> to vector<6x1xi1>
    %614 = vector.broadcast %613 : vector<6x1xi1> to vector<6x256xi1>
    %615 = vector.broadcast %cst_155 : f32 to vector<6x256xf32>
    %616 = arith.select %614, %615, %606 : vector<6x256xi1>, vector<6x256xf32>
    %cst_156 = arith.constant dense<0xFF800000> : vector<256xf32>
    %617 = vector.multi_reduction <maximumf>, %616, %cst_156 [0] : vector<6x256xf32> to vector<256xf32>
    %618 = vector.shape_cast %617 : vector<256xf32> to vector<1x256xf32>
    %619 = vector.shape_cast %6 : vector<6x1xi1> to vector<6x1xi1>
    %620 = vector.broadcast %619 : vector<6x1xi1> to vector<6x256xi1>
    %621 = vector.shape_cast %612 : vector<1x256xf32> to vector<1x256xf32>
    %622 = vector.broadcast %621 : vector<1x256xf32> to vector<6x256xf32>
    %623 = vector.shape_cast %618 : vector<1x256xf32> to vector<1x256xf32>
    %624 = vector.broadcast %623 : vector<1x256xf32> to vector<6x256xf32>
    %625 = arith.select %620, %622, %624 : vector<6x256xi1>, vector<6x256xf32>
    %626 = arith.subf %606, %625 : vector<6x256xf32>
    %627 = math.exp %626 : vector<6x256xf32>
    %cst_157 = arith.constant 0.000000e+00 : f32
    %628 = vector.shape_cast %6 : vector<6x1xi1> to vector<6x1xi1>
    %629 = vector.broadcast %628 : vector<6x1xi1> to vector<6x256xi1>
    %630 = vector.broadcast %cst_157 : f32 to vector<6x256xf32>
    %631 = arith.select %629, %627, %630 : vector<6x256xi1>, vector<6x256xf32>
    %cst_158 = arith.constant dense<0.000000e+00> : vector<256xf32>
    %632 = vector.multi_reduction <add>, %631, %cst_158 [0] : vector<6x256xf32> to vector<256xf32>
    %633 = vector.shape_cast %632 : vector<256xf32> to vector<1x256xf32>
    %cst_159 = arith.constant dense<0.000000e+00> : vector<256xf32>
    %634 = vector.multi_reduction <add>, %627, %cst_159 [0] : vector<6x256xf32> to vector<256xf32>
    %635 = vector.shape_cast %634 : vector<256xf32> to vector<1x256xf32>
    %636 = arith.subf %635, %633 : vector<1x256xf32>
    %637 = vector.shape_cast %6 : vector<6x1xi1> to vector<6x1xi1>
    %638 = vector.broadcast %637 : vector<6x1xi1> to vector<6x256xi1>
    %639 = vector.shape_cast %633 : vector<1x256xf32> to vector<1x256xf32>
    %640 = vector.broadcast %639 : vector<1x256xf32> to vector<6x256xf32>
    %641 = vector.shape_cast %636 : vector<1x256xf32> to vector<1x256xf32>
    %642 = vector.broadcast %641 : vector<1x256xf32> to vector<6x256xf32>
    %643 = arith.select %638, %640, %642 : vector<6x256xi1>, vector<6x256xf32>
    %644 = tpu.reciprocal %643 {approx = true} : vector<6x256xf32> -> vector<6x256xf32>
    %645 = arith.mulf %627, %644 : vector<6x256xf32>
    %cst_160 = arith.constant dense<0.000000e+00> : vector<6xf32>
    %646 = vector.multi_reduction <add>, %645, %cst_160 [1] : vector<6x256xf32> to vector<6xf32>
    %647 = vector.shape_cast %646 : vector<6xf32> to vector<6x1xf32>
    %cst_161 = arith.constant 9.99999997E-7 : f32
    %648 = vector.broadcast %cst_161 : f32 to vector<6x1xf32>
    %649 = arith.addf %648, %647 : vector<6x1xf32>
    %cst_162 = arith.constant 1.000000e+00 : f32
    %650 = vector.broadcast %cst_162 : f32 to vector<6x1xf32>
    %651 = arith.divf %650, %649 : vector<6x1xf32>
    %652 = vector.broadcast %651 : vector<6x1xf32> to vector<6x256xf32>
    %653 = arith.mulf %645, %652 : vector<6x256xf32>
    %654 = arith.mulf %653, %15 : vector<6x256xf32>
    %655 = arith.truncf %654 : vector<6x256xf32> to vector<6x256xbf16>
    %cst_163 = arith.constant dense<0.000000e+00> : vector<6x32xf32>
    %656 = tpu.matmul %655, %1, %cst_163 {dimension_numbers = #tpu.dot_dimension_numbers<[1], [1], [0], [0], [0, 0, 1, 0], [], []>} : vector<6x256xbf16>, vector<32x256xbf16>, vector<6x32xf32> -> vector<6x32xf32>
    %657 = arith.mulf %656, %656 : vector<6x32xf32>
    %cst_164 = arith.constant dense<0.000000e+00> : vector<6xf32>
    %658 = vector.multi_reduction <add>, %657, %cst_164 [1] : vector<6x32xf32> to vector<6xf32>
    %659 = vector.shape_cast %658 : vector<6xf32> to vector<6x1xf32>
    %660 = math.sqrt %659 : vector<6x1xf32>
    %cst_165 = arith.constant 9.99999997E-7 : f32
    %661 = vector.broadcast %cst_165 : f32 to vector<6x1xf32>
    %662 = arith.addf %661, %660 : vector<6x1xf32>
    %cst_166 = arith.constant 1.000000e+00 : f32
    %663 = vector.broadcast %cst_166 : f32 to vector<6x1xf32>
    %664 = arith.divf %663, %662 : vector<6x1xf32>
    %665 = vector.broadcast %664 : vector<6x1xf32> to vector<6x32xf32>
    %666 = arith.mulf %656, %665 : vector<6x32xf32>
    %c0_167 = arith.constant 0 : index
    %c0_168 = arith.constant 0 : index
    %c0_169 = arith.constant 0 : index
    %667 = vector.load %arg4[%c0_167, %c0_168, %c0_169] : memref<1x6x32xf32, #tpu.memory_space<vmem>>, vector<1x6x32xf32>
    %668 = vector.shape_cast %667 : vector<1x6x32xf32> to vector<6x32xf32>
    %669 = vector.shape_cast %666 : vector<6x32xf32> to vector<1x6x32xf32>
    tpu.vector_store %arg4[%c0_167, %c0_168, %c0_169], %669 {strides = array<i32>} : memref<1x6x32xf32, #tpu.memory_space<vmem>>, vector<1x6x32xf32>,
    return
  }
  func.func @transform_0(%arg0: i32) -> (i32, i32, i32) {
    %c0_i32 = arith.constant 0 : i32
    %c0_i32_0 = arith.constant 0 : i32
    %c0_i32_1 = arith.constant 0 : i32
    return %arg0, %c0_i32, %c0_i32_0 : i32, i32, i32
  }
  func.func @transform_1(%arg0: i32) -> (i32, i32, i32) {
    %c0_i32 = arith.constant 0 : i32
    %c0_i32_0 = arith.constant 0 : i32
    %c0_i32_1 = arith.constant 0 : i32
    return %arg0, %c0_i32, %c0_i32_0 : i32, i32, i32
  }
  func.func @transform_2(%arg0: i32) -> (i32, i32) {
    %c0_i32 = arith.constant 0 : i32
    %c0_i32_0 = arith.constant 0 : i32
    %c0_i32_1 = arith.constant 0 : i32
    return %c0_i32, %c0_i32_0 : i32, i32
  }
  func.func @transform_3(%arg0: i32) -> (i32, i32, i32) {
    %c0_i32 = arith.constant 0 : i32
    %c0_i32_0 = arith.constant 0 : i32
    %c0_i32_1 = arith.constant 0 : i32
    return %arg0, %c0_i32, %c0_i32_0 : i32, i32, i32
  }
}

</mosaic_0001>

<llo_original>
// kernel: tpu_custom_call.1
$region0: #{tpu_custom_call.1}
  #allocation0 [shape = 'u32[]', space=smem, size = 0x4, offset = 0x4, fixed_abs, tag = 'smem constant byte address 0x4 - core index']
  #allocation1 [shape = 'u32[144,128]{1,0:T(1,128)}', space=vmem, size = 0x12000, scoped, tag = 'internal scratch']
  %s0 = inlined_call_operand.hbm [shape: bf16[2,32,256], index: 0, kind: input, shape index: {}]
  %s1 = inlined_call_operand.hbm [shape: f32[2,1,256], index: 1, kind: input, shape index: {}]
  %s2 = inlined_call_operand.hbm [shape: f32[6,32], index: 2, kind: input, shape index: {}]
  %s3 = inlined_call_operand.vmem [shape: f32[2,6,32], index: 3, kind: output, shape index: {}]
  %s4 = sld [smem:[#allocation0]]
  $region57: #{tpu_custom_call.1} parent=0
    _
  %s6 = ssub.s32 1, %s4
  %s7 = scalar_select 0, %s6, %s4
  $region1: #{tpu_custom_call.1} parent=0
    #allocation2 [shape = 'u8[32768]{0}', space=vmem, size = 0x8000, scoped, tag = 'input window, operand 0']
    #allocation3 [shape = 's32[2]{0}', space=sflag, size = 0x8, scoped, tag = 'scoped memory for tpu_custom_call.1']
    #allocation4 [shape = 'u8[2048]{0}', space=vmem, size = 0x800, scoped, tag = 'input window, operand 1']
    #allocation5 [shape = 's32[2]{0}', space=sflag, size = 0x8, scoped, tag = 'scoped memory for tpu_custom_call.1']
    #allocation6 [shape = 'u8[4096]{0}', space=vmem, size = 0x1000, scoped, tag = 'input window, operand 2, single buffered']
    %8 = vsyncpa [#allocation3], 0
    %s9 = scalar_lea.sflag [#allocation3], 1
    %10 = vsyncpa %s9, 0
    %11 = vsyncpa [#allocation5], 0
    %s12 = scalar_lea.sflag [#allocation5], 1
    %13 = vsyncpa %s12, 0
    loop: start=0, step=1, limit=4
    $region2: #{tpu_custom_call.1} parent=1 // loop_pre_header
      _
    $region3: #{tpu_custom_call.1} parent=1 // loop_header
      %s15 = sphi 0, %s19
      %p16 = scmp.ge.s32.totalorder %s15, 4
      %s25 = sphi 0, %s27
      %s28 = sphi 0, %s25
      %s29 = sphi 0, %s28
      %s45 = sphi 0, %s29
      %s51 = sphi 0, %s53
      %s54 = sphi 0, %s51
      %s55 = sphi 0, %s54
      %s71 = sphi 0, %s55
      %s75 = sphi 0, %s75
      %s77 = sphi 0, %s75
      %s78 = sphi 0, %s77
      %s92 = sphi 0, %s78
      %s98 = sphi 0, %s100
      %s101 = sphi 0, %s98
      %s102 = sphi 0, %s101
      %s118 = sphi 0, %s102
    $region4: #{tpu_custom_call.1} parent=1 // loop_header_branch
      %18 = sbr.rel (%p16) target = $region8
    $region5: #{tpu_custom_call.1} parent=1 // loop_body
      %s20 = ssub.s32 %s15, 1
      %s21 = ssub.s32 %s15, 2
      %s22 = sadd.s32 %s15, 1
      %s23 = ssub.s32 %s15, %s22
      %p24 = scmp.eq.s32.totalorder %s23, 0
      %s26 = sadd.s32 %s25, 1
      %s27 = scalar_select %p24, %s25, %s26
      %p30 = pneg %p24
      %p31 = scmp.eq.s32.totalorder %s15, 1
      %p32 = por %p30, %p31
      %p33 = scmp.ne.s32.totalorder %s25, %s28
      %p34 = scmp.eq.s32.totalorder %s15, 0
      %p35 = por %p33, %p34
      %p36 = scmp.ne.s32.totalorder %s25, %s28
      %p37 = scmp.eq.s32.totalorder %s20, 1
      %p38 = por %p36, %p37
      %p39 = scmp.ne.s32.totalorder %s28, %s29
      %p40 = scmp.eq.s32.totalorder %s20, 0
      %p41 = por %p39, %p40
      %p42 = scmp.ne.s32.totalorder %s28, %s29
      %p43 = scmp.eq.s32.totalorder %s21, 1
      %p44 = por %p42, %p43
      %p46 = scmp.ne.s32.totalorder %s29, %s45
      %p47 = scmp.eq.s32.totalorder %s21, 0
      %p48 = por %p46, %p47
      %s49 = ssub.s32 %s15, %s22
      %p50 = scmp.eq.s32.totalorder %s49, 0
      %s52 = sadd.s32 %s51, 1
      %s53 = scalar_select %p50, %s51, %s52
      %p56 = pneg %p50
      %p57 = scmp.eq.s32.totalorder %s15, 1
      %p58 = por %p56, %p57
      %p59 = scmp.ne.s32.totalorder %s51, %s54
      %p60 = scmp.eq.s32.totalorder %s15, 0
      %p61 = por %p59, %p60
      %p62 = scmp.ne.s32.totalorder %s51, %s54
      %p63 = scmp.eq.s32.totalorder %s20, 1
      %p64 = por %p62, %p63
      %p65 = scmp.ne.s32.totalorder %s54, %s55
      %p66 = scmp.eq.s32.totalorder %s20, 0
      %p67 = por %p65, %p66
      %p68 = scmp.ne.s32.totalorder %s54, %s55
      %p69 = scmp.eq.s32.totalorder %s21, 1
      %p70 = por %p68, %p69
      %p72 = scmp.ne.s32.totalorder %s55, %s71
      %p73 = scmp.eq.s32.totalorder %s21, 0
      %p74 = por %p72, %p73
      %s76 = sadd.s32 %s75, 1
      %p79 = scmp.eq.s32.totalorder %s15, 1
      %p80 = scmp.ne.s32.totalorder %s75, %s77
      %p81 = scmp.eq.s32.totalorder %s15, 0
      %p82 = por %p80, %p81
      %p83 = scmp.ne.s32.totalorder %s75, %s77
      %p84 = scmp.eq.s32.totalorder %s20, 1
      %p85 = por %p83, %p84
      %p86 = scmp.ne.s32.totalorder %s77, %s78
      %p87 = scmp.eq.s32.totalorder %s20, 0
      %p88 = por %p86, %p87
      %p89 = scmp.ne.s32.totalorder %s77, %s78
      %p90 = scmp.eq.s32.totalorder %s21, 1
      %p91 = por %p89, %p90
      %p93 = scmp.ne.s32.totalorder %s78, %s92
      %p94 = scmp.eq.s32.totalorder %s21, 0
      %p95 = por %p93, %p94
      %s96 = ssub.s32 %s15, %s22
      %p97 = scmp.eq.s32.totalorder %s96, 0
      %s99 = sadd.s32 %s98, 1
      %s100 = scalar_select %p97, %s98, %s99
      %p103 = pneg %p97
      %p104 = scmp.eq.s32.totalorder %s15, 1
      %p105 = por %p103, %p104
      %p106 = scmp.ne.s32.totalorder %s98, %s101
      %p107 = scmp.eq.s32.totalorder %s15, 0
      %p108 = por %p106, %p107
      %p109 = scmp.ne.s32.totalorder %s98, %s101
      %p110 = scmp.eq.s32.totalorder %s20, 1
      %p111 = por %p109, %p110
      %p112 = scmp.ne.s32.totalorder %s101, %s102
      %p113 = scmp.eq.s32.totalorder %s20, 0
      %p114 = por %p112, %p113
      %p115 = scmp.ne.s32.totalorder %s101, %s102
      %p116 = scmp.eq.s32.totalorder %s21, 1
      %p117 = por %p115, %p116
      %p119 = scmp.ne.s32.totalorder %s102, %s118
      %p120 = scmp.eq.s32.totalorder %s21, 0
      %p121 = por %p119, %p120
      %p122 = scmp.le.s32.totalorder 1, %s15
      %p123 = scmp.lt.s32.totalorder %s15, 3
      %p124 = pnand %p122, %p123
      %p125 = pneg %p124
      // Predicated region
      $region9: #{tpu_custom_call.1} parent=5 // pred_check
        _
      $region10: #{tpu_custom_call.1} parent=5 // pred_check_branch
        %127 = sbr.rel (%p124) target = $region12
      $region11: #{tpu_custom_call.1} parent=5 // pred_region
        %s128 = ssub.s32 %s15, 1
        // Predicated region
        $region13: #{tpu_custom_call.1} parent=11 // pred_check
          %p129 = pneg %p88
        $region14: #{tpu_custom_call.1} parent=11 // pred_check_branch
          %131 = sbr.rel (%p129) target = $region16
        $region15: #{tpu_custom_call.1} parent=11 // pred_region
          %s133 = ssub.s32 128, 128
          %134 = vsyncadd [#allocation5], %s133
          %s136 = sshll.u32 [#allocation6], 4
          %s137 = int_to_ptr.vmem [resolvable:$true] %s136
          %139 = dma.hbm_to_vmem [thread:$0]  %s2, 128, %s137, [#allocation5]
        $region16: #{tpu_custom_call.1} parent=11 // pred_fallthru
          _
      $region12: #{tpu_custom_call.1} parent=5 // pred_fallthru
        _
      %p140 = scmp.lt.s32.totalorder %s15, 2
      // Predicated region
      $region17: #{tpu_custom_call.1} parent=5 // pred_check
        %p141 = pneg %p140
      $region18: #{tpu_custom_call.1} parent=5 // pred_check_branch
        %143 = sbr.rel (%p141) target = $region20
      $region19: #{tpu_custom_call.1} parent=5 // pred_region
        // Predicated region
        $region21: #{tpu_custom_call.1} parent=19 // pred_check
          %p144 = pneg %p35
        $region22: #{tpu_custom_call.1} parent=19 // pred_check_branch
          %146 = sbr.rel (%p144) target = $region24
        $region23: #{tpu_custom_call.1} parent=19 // pred_region
          %s147 = sand.u32 %s25, 1
          %s148 = scalar_lea.sflag [#allocation3], %s147
          %s149 = sand.u32 %s25, 1
          %s150 = smul.addr %s149, 32
          %s151 = scalar_lea.vmem [#allocation2], %s150
          %s153 = ssub.s32 512, 512
          %154 = vsyncadd %s148, %s153
          %s155 = smul.addr %s15, 8
          %s156 = smul.addr %s155, 64
          %s157 = scalar_lea.hbm %s0, %s156
          %s158 = sshll.u32 %s151, 4
          %s159 = int_to_ptr.vmem [resolvable:$true] %s158
          %164 = dma.hbm_to_vmem [thread:$0]  %s157, 512, %s159, %s148, 128, 128, 8
        $region24: #{tpu_custom_call.1} parent=19 // pred_fallthru
          _
        // Predicated region
        $region25: #{tpu_custom_call.1} parent=19 // pred_check
          %p165 = pneg %p61
        $region26: #{tpu_custom_call.1} parent=19 // pred_check_branch
          %167 = sbr.rel (%p165) target = $region28
        $region27: #{tpu_custom_call.1} parent=19 // pred_region
          %s168 = sand.u32 %s15, 1
          %s169 = scalar_lea.sflag [#allocation5], %s168
          %s170 = sand.u32 %s51, 1
          %s171 = smul.addr %s170, 2
          %s172 = scalar_lea.vmem [#allocation4], %s171
          %s174 = ssub.s32 32, 32
          %175 = vsyncadd %s169, %s174
          %s176 = smul.addr %s15, 2
          %s177 = smul.addr %s176, 16
          %s178 = scalar_lea.hbm %s1, %s177
          %s180 = sshll.u32 %s172, 4
          %s181 = int_to_ptr.vmem [resolvable:$true] %s180
          %183 = dma.hbm_to_vmem [thread:$0]  %s178, 32, %s181, %s169
        $region28: #{tpu_custom_call.1} parent=19 // pred_fallthru
          _
      $region20: #{tpu_custom_call.1} parent=5 // pred_fallthru
        _
      %p184 = scmp.le.s32.totalorder 1, %s15
      %p185 = scmp.lt.s32.totalorder %s15, 3
      %p186 = pnand %p184, %p185
      %p187 = pneg %p186
      // Predicated region
      $region29: #{tpu_custom_call.1} parent=5 // pred_check
        _
      $region30: #{tpu_custom_call.1} parent=5 // pred_check_branch
        %189 = sbr.rel (%p186) target = $region32
      $region31: #{tpu_custom_call.1} parent=5 // pred_region
        %s190 = ssub.s32 %s15, 1
        %s191 = sand.u32 %s28, 1
        %s192 = scalar_lea.sflag [#allocation3], %s191
        %s193 = sand.u32 %s28, 1
        %s194 = smul.addr %s193, 32
        %s195 = scalar_lea.vmem [#allocation2], %s194
        // Predicated region
        $region33: #{tpu_custom_call.1} parent=31 // pred_check
          %p196 = pneg %p41
        $region34: #{tpu_custom_call.1} parent=31 // pred_check_branch
          %198 = sbr.rel (%p196) target = $region36
        $region35: #{tpu_custom_call.1} parent=31 // pred_region
          %199 = dma.done %s192, 512
        $region36: #{tpu_custom_call.1} parent=31 // pred_fallthru
          _
        %s200 = sand.u32 %s20, 1
        %s201 = scalar_lea.sflag [#allocation5], %s200
        %s202 = sand.u32 %s54, 1
        %s203 = smul.addr %s202, 2
        %s204 = scalar_lea.vmem [#allocation4], %s203
        // Predicated region
        $region37: #{tpu_custom_call.1} parent=31 // pred_check
          %p205 = pneg %p67
        $region38: #{tpu_custom_call.1} parent=31 // pred_check_branch
          %207 = sbr.rel (%p205) target = $region40
        $region39: #{tpu_custom_call.1} parent=31 // pred_region
          %208 = dma.done %s201, 32
        $region40: #{tpu_custom_call.1} parent=31 // pred_fallthru
          _
        // Predicated region
        $region41: #{tpu_custom_call.1} parent=31 // pred_check
          %p209 = pneg %p88
        $region42: #{tpu_custom_call.1} parent=31 // pred_check_branch
          %211 = sbr.rel (%p209) target = $region44
        $region43: #{tpu_custom_call.1} parent=31 // pred_region
          %212 = dma.done [#allocation5], 128
        $region44: #{tpu_custom_call.1} parent=31 // pred_fallthru
          _
        %s213 = sand.u32 %s28, 1
        %s214 = scalar_lea.sflag [#allocation3], %s213
        %s215 = sand.u32 %s28, 1
        %s216 = smul.addr %s215, 32
        %s217 = scalar_lea.vmem [#allocation2], %s216
        %p218 = pneg %p41
        %p219 = pneg %p38
        %s220 = sand.u32 %s20, 1
        %s221 = scalar_lea.sflag [#allocation5], %s220
        %s222 = sand.u32 %s54, 1
        %s223 = smul.addr %s222, 2
        %s224 = scalar_lea.vmem [#allocation4], %s223
        %p225 = pneg %p67
        %p226 = pneg %p64
        %p227 = pneg %p88
        %p228 = pneg %p85
        %p229 = pneg %p114
        %p230 = pneg %p111
        %p231 = scmp.lt.s32.totalorder %s20, 1
        %s232 = scalar_select %p231, %s20, 1
        %s233 = smul.addr %s232, 8
        %s234 = scalar_lea.vmem %s3, %s233
        %p235 = scmp.lt.s32.totalorder %s20, 1
        %s236 = scalar_select %p235, %s20, 1
        %s237 = smul.addr %s236, 8
        %s238 = scalar_lea.vmem %s3, %s237
        %v240 = vld [vmem:[%s195] sm:$0xff]
        %v241 = vld [vmem:[%s195 + $0x8] sm:$0xff]
        %v242 = vld [vmem:[%s195 + $0x10] sm:$0xff]
        %v243 = vld [vmem:[%s195 + $0x18] sm:$0xff]
        %v244 = vld [vmem:[%s204] sm:$0x3]
        %v245 = vlaneseq
        %v246 = vshrl.u32 %v245, 7
        %vm247 = vcmp.lt.s32.totalorder %v246, 3
        %v248 = vsub.f32 1.0, %v244
        %v249 = vsel %vm247, 1, 0
        %vm250 = vcmp.eq.s32.totalorder %v249, 1
        %v252 = vlaneseq
        %v253 = vshrl.u32 %v252, 7
        %v254 = vsub.s32 0, %v253
        %v255 = vrot.slane %v244, %v254
        %v256 = vlaneseq
        %v257 = vshrl.u32 %v256, 7
        %v258 = vsub.s32 1, %v257
        %v259 = vrot.slane %v244, %v258
        %v263 = vlaneseq
        %v264 = vshrl.u32 %v263, 7
        %v265 = vsub.s32 0, %v264
        %v266 = vrot.slane %v248, %v265
        %v267 = vlaneseq
        %v268 = vshrl.u32 %v267, 7
        %v269 = vsub.s32 1, %v268
        %v270 = vrot.slane %v248, %v269
        %v273 = vsel %vm250, %v255, %v266
        %v274 = vsel %vm250, %v259, %v270
        %v275 = vld [vmem:[#allocation6] sm:$0x3f]
        %v276 = vmul.f32 %v275, 20.0
        %v277 = vpack.c.bf16 %v276, %v276
        %v282 = vunpack.c.l.b16 %v240
        %v283 = vunpack.c.h.b16 %v240
        %v284 = vunpack.c.l.b16 %v241
        %v285 = vunpack.c.h.b16 %v241
        %v286 = vunpack.c.l.b16 %v242
        %v287 = vunpack.c.h.b16 %v242
        %v288 = vunpack.c.l.b16 %v243
        %v289 = vunpack.c.h.b16 %v243
        %v290 = vpack.c.b16 %v284, %v282
        %v291 = vpack.c.b16 %v285, %v283
        %v292 = vpack.c.b16 %v288, %v286
        %v293 = vpack.c.b16 %v289, %v287
        %vm298 = vcmask 261120
        %v300 = vsel %vm298, %v277, 0
        %302 = vmatprep.subr.bf16.mxu0 %v291
        %303 = vmatpush1.bf16.msra.mxu0 %v290
        %304 = vmatprep.subr.bf16.mxu0 %v293
        %305 = vmatpush1.bf16.msra.mxu0 %v292
        %306 = vmatprep.subr.bf16.mxu0 0
        %307 = vmatpush1.bf16.msra.mxu0 0
        %308 = vmatprep.subr.bf16.mxu0 0
        %309 = vmatpush1.bf16.msra.mxu0 0
        %310 = vmatprep.subr.bf16.mxu0 0
        %311 = vmatpush1.bf16.msra.mxu0 0
        %312 = vmatprep.subr.bf16.mxu0 0
        %313 = vmatpush1.bf16.msra.mxu0 0
        %314 = vmatprep.subr.bf16.mxu0 0
        %315 = vmatpush1.bf16.msra.mxu0 0
        %316 = vmatprep.subr.bf16.mxu0 0
        %317 = vmatpush1.bf16.msra.mxu0 0
        %318 = vmatprep.subr.bf16.mxu0 0
        %319 = vmatpush1.bf16.msra.mxu0 0
        %320 = vmatprep.subr.bf16.mxu0 0
        %321 = vmatpush1.bf16.msra.mxu0 0
        %322 = vmatprep.subr.bf16.mxu0 0
        %323 = vmatpush1.bf16.msra.mxu0 0
        %324 = vmatprep.subr.bf16.mxu0 0
        %325 = vmatpush1.bf16.msra.mxu0 0
        %326 = vmatprep.subr.bf16.mxu0 0
        %327 = vmatpush1.bf16.msra.mxu0 0
        %328 = vmatprep.subr.bf16.mxu0 0
        %329 = vmatpush1.bf16.msra.mxu0 0
        %330 = vmatprep.subr.bf16.mxu0 0
        %331 = vmatpush1.bf16.msra.mxu0 0
        %332 = vmatprep.subr.bf16.mxu0 0
        %333 = vmatpush1.bf16.msra.mxu0 0
        %334 = vmatprep.mubr.bf16.mxu0 0
        %335 = vmatmul.mubr.bf16.gmra.mrb[0].mxu0 %v300
        %v336 = vpop.f32.mrb[0].mxu0
        %v337 = vadd.f32 0.0, %v336
        %v338 = vpop.f32.mrb[0].mxu0
        %v339 = vadd.f32 0.0, %v338
        %v340 = vpop.f32.mrb[0].mxu0
        %v341 = vpop.f32.mrb[0].mxu0
        %342 = vdwg.mxu0
        %v343 = vmul.f32 %v337, %v273
        %v344 = vmul.f32 %v339, %v274
        %v345 = vsel %vm250, %v343, -inf
        %v346 = vsel %vm250, %v344, -inf
        %vm347 = vcmask 1045504
        %v348 = vsel %vm347, %v345, -inf
        %v349 = vrot.slane %v348, 4
        %v350 = vmax.f32 %v348, %v349
        %v351 = vrot.slane %v350, 2
        %v352 = vmax.f32 %v350, %v351
        %v353 = vrot.slane %v352, 1
        %v354 = vmax.f32 %v352, %v353
        %v355 = vsel %vm347, %v346, -inf
        %v356 = vrot.slane %v355, 4
        %v357 = vmax.f32 %v355, %v356
        %v358 = vrot.slane %v357, 2
        %v359 = vmax.f32 %v357, %v358
        %v360 = vrot.slane %v359, 1
        %v361 = vmax.f32 %v359, %v360
        %v362 = vsel %vm250, -inf, %v343
        %v363 = vsel %vm250, -inf, %v344
        %v364 = vsel %vm347, %v362, -inf
        %v365 = vrot.slane %v364, 4
        %v366 = vmax.f32 %v364, %v365
        %v367 = vrot.slane %v366, 2
        %v368 = vmax.f32 %v366, %v367
        %v369 = vrot.slane %v368, 1
        %v370 = vmax.f32 %v368, %v369
        %v371 = vsel %vm347, %v363, -inf
        %v372 = vrot.slane %v371, 4
        %v373 = vmax.f32 %v371, %v372
        %v374 = vrot.slane %v373, 2
        %v375 = vmax.f32 %v373, %v374
        %v376 = vrot.slane %v375, 1
        %v377 = vmax.f32 %v375, %v376
        %v378 = vsel %vm250, %v354, %v370
        %v379 = vsel %vm250, %v361, %v377
        %v380 = vsub.f32 %v343, %v378
        %v381 = vsub.f32 %v344, %v379
        %v382 = vmul.f32 %v380, 1.442695
        %v383 = vpow.pop %v382
        %v384 = vmul.f32 %v381, 1.442695
        %v385 = vpow.pop %v384
        %v386 = vsel %vm250, %v383, 0.0
        %v387 = vsel %vm250, %v385, 0.0
        %v388 = vsel %vm347, %v386, 0.0
        %v389 = vrot.slane %v388, 4
        %v390 = vadd.f32 %v388, %v389
        %v391 = vrot.slane %v390, 2
        %v392 = vadd.f32 %v390, %v391
        %v393 = vrot.slane %v392, 1
        %v394 = vadd.f32 %v392, %v393
        %v395 = vsel %vm347, %v387, 0.0
        %v396 = vrot.slane %v395, 4
        %v397 = vadd.f32 %v395, %v396
        %v398 = vrot.slane %v397, 2
        %v399 = vadd.f32 %v397, %v398
        %v400 = vrot.slane %v399, 1
        %v401 = vadd.f32 %v399, %v400
        %v402 = vsel %vm347, %v383, 0.0
        %v403 = vrot.slane %v402, 4
        %v404 = vadd.f32 %v402, %v403
        %v405 = vrot.slane %v404, 2
        %v406 = vadd.f32 %v404, %v405
        %v407 = vrot.slane %v406, 1
        %v408 = vadd.f32 %v406, %v407
        %v409 = vsel %vm347, %v385, 0.0
        %v410 = vrot.slane %v409, 4
        %v411 = vadd.f32 %v409, %v410
        %v412 = vrot.slane %v411, 2
        %v413 = vadd.f32 %v411, %v412
        %v414 = vrot.slane %v413, 1
        %v415 = vadd.f32 %v413, %v414
        %v416 = vsub.f32 %v408, %v394
        %v417 = vsub.f32 %v415, %v401
        %v418 = vsel %vm250, %v394, %v416
        %v419 = vsel %vm250, %v401, %v417
        %v420 = vrcp.pop %v418
        %v421 = vrcp.pop %v419
        %v422 = vmul.f32 %v383, %v420
        %v423 = vmul.f32 %v385, %v421
        %v424 = vsel %vm347, %v422, 0.0
        %v425 = vsel %vm347, %v423, 0.0
        %v426 = vadd.f32 %v424, %v425
        %427 = vadd.xlane.f32.xlu0 %v426
        %v428 = vpop.xlane.xlu0 %427
        %v429 = vadd.f32 %v428, 1e-06
        %v430 = vrcp.pop %v429
        %v431 = vmul.f32 1.0, %v430
        %v432 = vmul.f32 %v422, %v431
        %v433 = vmul.f32 %v423, %v431
        %v434 = vmul.f32 %v432, %v273
        %v435 = vmul.f32 %v433, %v274
        %v436 = vpack.c.bf16 %v434, %v434
        %v437 = vpack.c.bf16 %v435, %v435
        %438 = vmatprep.subr.bf16.mxu0 %v291
        %439 = vmatpush1.bf16.xpose.msra.mxu0 %v290
        %440 = vmatprep.subr.bf16.mxu0 %v293
        %441 = vmatpush1.bf16.xpose.msra.mxu0 %v292
        %442 = vmatprep.subr.bf16.mxu0 0
        %443 = vmatpush1.bf16.xpose.msra.mxu0 0
        %444 = vmatprep.subr.bf16.mxu0 0
        %445 = vmatpush1.bf16.xpose.msra.mxu0 0
        %446 = vmatprep.subr.bf16.mxu0 0
        %447 = vmatpush1.bf16.xpose.msra.mxu0 0
        %448 = vmatprep.subr.bf16.mxu0 0
        %449 = vmatpush1.bf16.xpose.msra.mxu0 0
        %450 = vmatprep.subr.bf16.mxu0 0
        %451 = vmatpush1.bf16.xpose.msra.mxu0 0
        %452 = vmatprep.subr.bf16.mxu0 0
        %453 = vmatpush1.bf16.xpose.msra.mxu0 0
        %454 = vmatprep.subr.bf16.mxu0 0
        %455 = vmatpush1.bf16.xpose.msra.mxu0 0
        %456 = vmatprep.subr.bf16.mxu0 0
        %457 = vmatpush1.bf16.xpose.msra.mxu0 0
        %458 = vmatprep.subr.bf16.mxu0 0
        %459 = vmatpush1.bf16.xpose.msra.mxu0 0
        %460 = vmatprep.subr.bf16.mxu0 0
        %461 = vmatpush1.bf16.xpose.msra.mxu0 0
        %462 = vmatprep.subr.bf16.mxu0 0
        %463 = vmatpush1.bf16.xpose.msra.mxu0 0
        %464 = vmatprep.subr.bf16.mxu0 0
        %465 = vmatpush1.bf16.xpose.msra.mxu0 0
        %466 = vmatprep.subr.bf16.mxu0 0
        %467 = vmatpush1.bf16.xpose.msra.mxu0 0
        %468 = vmatprep.subr.bf16.mxu0 0
        %469 = vmatpush1.bf16.xpose.msra.mxu0 0
        %470 = vmatprep.mubr.bf16.mxu0 %v437
        %471 = vmatmul.mubr.bf16.gmra.mrb[0].mxu0 %v436
        %v472 = vpop.f32.mrb[0].mxu0
        %v473 = vadd.f32 0.0, %v472
        %v474 = vpop.f32.mrb[0].mxu0
        %v475 = vpop.f32.mrb[0].mxu0
        %v476 = vpop.f32.mrb[0].mxu0
        %477 = vdwg.mxu0
        %v478 = vmul.f32 %v473, %v473
        %vm479 = vcmask 259072
        %v480 = vsel %vm479, %v478, 0.0
        %481 = vadd.xlane.f32.xlu0 %v480
        %v482 = vpop.xlane.xlu0 %481
        %v483 = vrsqrt.pop %v482
        %v484 = vmul.f32 %v482, %v483
        %vm485 = vcmp.eq.f32.partialorder %v482, inf
        %v486 = vsel %vm485, %v482, %v484
        %vm487 = vcmp.eq.f32.partialorder %v482, 0.0
        %v488 = vand.u32 %v482, 2147483648
        %v489 = vsel %vm487, %v488, %v486
        %v490 = vadd.f32 %v489, 1e-06
        %v491 = vrcp.pop %v490
        %v492 = vmul.f32 1.0, %v491
        %v493 = vmul.f32 %v473, %v492
        %v494 = vmul.f32 %v493, 20.0
        %v495 = vpack.c.bf16 %v494, %v494
        %v497 = vsel %vm298, %v495, 0
        %499 = vmatprep.subr.bf16.mxu0 %v291
        %500 = vmatpush1.bf16.msra.mxu0 %v290
        %501 = vmatprep.subr.bf16.mxu0 %v293
        %502 = vmatpush1.bf16.msra.mxu0 %v292
        %503 = vmatprep.subr.bf16.mxu0 0
        %504 = vmatpush1.bf16.msra.mxu0 0
        %505 = vmatprep.subr.bf16.mxu0 0
        %506 = vmatpush1.bf16.msra.mxu0 0
        %507 = vmatprep.subr.bf16.mxu0 0
        %508 = vmatpush1.bf16.msra.mxu0 0
        %509 = vmatprep.subr.bf16.mxu0 0
        %510 = vmatpush1.bf16.msra.mxu0 0
        %511 = vmatprep.subr.bf16.mxu0 0
        %512 = vmatpush1.bf16.msra.mxu0 0
        %513 = vmatprep.subr.bf16.mxu0 0
        %514 = vmatpush1.bf16.msra.mxu0 0
        %515 = vmatprep.subr.bf16.mxu0 0
        %516 = vmatpush1.bf16.msra.mxu0 0
        %517 = vmatprep.subr.bf16.mxu0 0
        %518 = vmatpush1.bf16.msra.mxu0 0
        %519 = vmatprep.subr.bf16.mxu0 0
        %520 = vmatpush1.bf16.msra.mxu0 0
        %521 = vmatprep.subr.bf16.mxu0 0
        %522 = vmatpush1.bf16.msra.mxu0 0
        %523 = vmatprep.subr.bf16.mxu0 0
        %524 = vmatpush1.bf16.msra.mxu0 0
        %525 = vmatprep.subr.bf16.mxu0 0
        %526 = vmatpush1.bf16.msra.mxu0 0
        %527 = vmatprep.subr.bf16.mxu0 0
        %528 = vmatpush1.bf16.msra.mxu0 0
        %529 = vmatprep.subr.bf16.mxu0 0
        %530 = vmatpush1.bf16.msra.mxu0 0
        %531 = vmatprep.mubr.bf16.mxu0 0
        %532 = vmatmul.mubr.bf16.gmra.mrb[0].mxu0 %v497
        %v533 = vpop.f32.mrb[0].mxu0
        %v534 = vadd.f32 0.0, %v533
        %v535 = vpop.f32.mrb[0].mxu0
        %v536 = vadd.f32 0.0, %v535
        %v537 = vpop.f32.mrb[0].mxu0
        %v538 = vpop.f32.mrb[0].mxu0
        %539 = vdwg.mxu0
        %v540 = vmul.f32 %v534, %v273
        %v541 = vmul.f32 %v536, %v274
        %v542 = vsel %vm250, %v540, -inf
        %v543 = vsel %vm250, %v541, -inf
        %v544 = vsel %vm347, %v542, -inf
        %v545 = vrot.slane %v544, 4
        %v546 = vmax.f32 %v544, %v545
        %v547 = vrot.slane %v546, 2
        %v548 = vmax.f32 %v546, %v547
        %v549 = vrot.slane %v548, 1
        %v550 = vmax.f32 %v548, %v549
        %v551 = vsel %vm347, %v543, -inf
        %v552 = vrot.slane %v551, 4
        %v553 = vmax.f32 %v551, %v552
        %v554 = vrot.slane %v553, 2
        %v555 = vmax.f32 %v553, %v554
        %v556 = vrot.slane %v555, 1
        %v557 = vmax.f32 %v555, %v556
        %v558 = vsel %vm250, -inf, %v540
        %v559 = vsel %vm250, -inf, %v541
        %v560 = vsel %vm347, %v558, -inf
        %v561 = vrot.slane %v560, 4
        %v562 = vmax.f32 %v560, %v561
        %v563 = vrot.slane %v562, 2
        %v564 = vmax.f32 %v562, %v563
        %v565 = vrot.slane %v564, 1
        %v566 = vmax.f32 %v564, %v565
        %v567 = vsel %vm347, %v559, -inf
        %v568 = vrot.slane %v567, 4
        %v569 = vmax.f32 %v567, %v568
        %v570 = vrot.slane %v569, 2
        %v571 = vmax.f32 %v569, %v570
        %v572 = vrot.slane %v571, 1
        %v573 = vmax.f32 %v571, %v572
        %v574 = vsel %vm250, %v550, %v566
        %v575 = vsel %vm250, %v557, %v573
        %v576 = vsub.f32 %v540, %v574
        %v577 = vsub.f32 %v541, %v575
        %v578 = vmul.f32 %v576, 1.442695
        %v579 = vpow.pop %v578
        %v580 = vmul.f32 %v577, 1.442695
        %v581 = vpow.pop %v580
        %v582 = vsel %vm250, %v579, 0.0
        %v583 = vsel %vm250, %v581, 0.0
        %v584 = vsel %vm347, %v582, 0.0
        %v585 = vrot.slane %v584, 4
        %v586 = vadd.f32 %v584, %v585
        %v587 = vrot.slane %v586, 2
        %v588 = vadd.f32 %v586, %v587
        %v589 = vrot.slane %v588, 1
        %v590 = vadd.f32 %v588, %v589
        %v591 = vsel %vm347, %v583, 0.0
        %v592 = vrot.slane %v591, 4
        %v593 = vadd.f32 %v591, %v592
        %v594 = vrot.slane %v593, 2
        %v595 = vadd.f32 %v593, %v594
        %v596 = vrot.slane %v595, 1
        %v597 = vadd.f32 %v595, %v596
        %v598 = vsel %vm347, %v579, 0.0
        %v599 = vrot.slane %v598, 4
        %v600 = vadd.f32 %v598, %v599
        %v601 = vrot.slane %v600, 2
        %v602 = vadd.f32 %v600, %v601
        %v603 = vrot.slane %v602, 1
        %v604 = vadd.f32 %v602, %v603
        %v605 = vsel %vm347, %v581, 0.0
        %v606 = vrot.slane %v605, 4
        %v607 = vadd.f32 %v605, %v606
        %v608 = vrot.slane %v607, 2
        %v609 = vadd.f32 %v607, %v608
        %v610 = vrot.slane %v609, 1
        %v611 = vadd.f32 %v609, %v610
        %v612 = vsub.f32 %v604, %v590
        %v613 = vsub.f32 %v611, %v597
        %v614 = vsel %vm250, %v590, %v612
        %v615 = vsel %vm250, %v597, %v613
        %v616 = vrcp.pop %v614
        %v617 = vrcp.pop %v615
        %v618 = vmul.f32 %v579, %v616
        %v619 = vmul.f32 %v581, %v617
        %v620 = vsel %vm347, %v618, 0.0
        %v621 = vsel %vm347, %v619, 0.0
        %v622 = vadd.f32 %v620, %v621
        %623 = vadd.xlane.f32.xlu0 %v622
        %v624 = vpop.xlane.xlu0 %623
        %v625 = vadd.f32 %v624, 1e-06
        %v626 = vrcp.pop %v625
        %v627 = vmul.f32 1.0, %v626
        %v628 = vmul.f32 %v618, %v627
        %v629 = vmul.f32 %v619, %v627
        %v630 = vmul.f32 %v628, %v273
        %v631 = vmul.f32 %v629, %v274
        %v632 = vpack.c.bf16 %v630, %v630
        %v633 = vpack.c.bf16 %v631, %v631
        %634 = vmatprep.subr.bf16.mxu0 %v291
        %635 = vmatpush1.bf16.xpose.msra.mxu0 %v290
        %636 = vmatprep.subr.bf16.mxu0 %v293
        %637 = vmatpush1.bf16.xpose.msra.mxu0 %v292
        %638 = vmatprep.subr.bf16.mxu0 0
        %639 = vmatpush1.bf16.xpose.msra.mxu0 0
        %640 = vmatprep.subr.bf16.mxu0 0
        %641 = vmatpush1.bf16.xpose.msra.mxu0 0
        %642 = vmatprep.subr.bf16.mxu0 0
        %643 = vmatpush1.bf16.xpose.msra.mxu0 0
        %644 = vmatprep.subr.bf16.mxu0 0
        %645 = vmatpush1.bf16.xpose.msra.mxu0 0
        %646 = vmatprep.subr.bf16.mxu0 0
        %647 = vmatpush1.bf16.xpose.msra.mxu0 0
        %648 = vmatprep.subr.bf16.mxu0 0
        %649 = vmatpush1.bf16.xpose.msra.mxu0 0
        %650 = vmatprep.subr.bf16.mxu0 0
        %651 = vmatpush1.bf16.xpose.msra.mxu0 0
        %652 = vmatprep.subr.bf16.mxu0 0
        %653 = vmatpush1.bf16.xpose.msra.mxu0 0
        %654 = vmatprep.subr.bf16.mxu0 0
        %655 = vmatpush1.bf16.xpose.msra.mxu0 0
        %656 = vmatprep.subr.bf16.mxu0 0
        %657 = vmatpush1.bf16.xpose.msra.mxu0 0
        %658 = vmatprep.subr.bf16.mxu0 0
        %659 = vmatpush1.bf16.xpose.msra.mxu0 0
        %660 = vmatprep.subr.bf16.mxu0 0
        %661 = vmatpush1.bf16.xpose.msra.mxu0 0
        %662 = vmatprep.subr.bf16.mxu0 0
        %663 = vmatpush1.bf16.xpose.msra.mxu0 0
        %664 = vmatprep.subr.bf16.mxu0 0
        %665 = vmatpush1.bf16.xpose.msra.mxu0 0
        %666 = vmatprep.mubr.bf16.mxu0 %v633
        %667 = vmatmul.mubr.bf16.gmra.mrb[0].mxu0 %v632
        %v668 = vpop.f32.mrb[0].mxu0
        %v669 = vadd.f32 0.0, %v668
        %v670 = vpop.f32.mrb[0].mxu0
        %v671 = vpop.f32.mrb[0].mxu0
        %v672 = vpop.f32.mrb[0].mxu0
        %673 = vdwg.mxu0
        %v674 = vmul.f32 %v669, %v669
        %v675 = vsel %vm479, %v674, 0.0
        %676 = vadd.xlane.f32.xlu0 %v675
        %v677 = vpop.xlane.xlu0 %676
        %v678 = vrsqrt.pop %v677
        %v679 = vmul.f32 %v677, %v678
        %vm680 = vcmp.eq.f32.partialorder %v677, inf
        %v681 = vsel %vm680, %v677, %v679
        %vm682 = vcmp.eq.f32.partialorder %v677, 0.0
        %v683 = vand.u32 %v677, 2147483648
        %v684 = vsel %vm682, %v683, %v681
        %v685 = vadd.f32 %v684, 1e-06
        %v686 = vrcp.pop %v685
        %v687 = vmul.f32 1.0, %v686
        %v688 = vmul.f32 %v669, %v687
        %v689 = vmul.f32 %v688, 20.0
        %v690 = vpack.c.bf16 %v689, %v689
        %v692 = vsel %vm298, %v690, 0
        %694 = vmatprep.subr.bf16.mxu0 %v291
        %695 = vmatpush1.bf16.msra.mxu0 %v290
        %696 = vmatprep.subr.bf16.mxu0 %v293
        %697 = vmatpush1.bf16.msra.mxu0 %v292
        %698 = vmatprep.subr.bf16.mxu0 0
        %699 = vmatpush1.bf16.msra.mxu0 0
        %700 = vmatprep.subr.bf16.mxu0 0
        %701 = vmatpush1.bf16.msra.mxu0 0
        %702 = vmatprep.subr.bf16.mxu0 0
        %703 = vmatpush1.bf16.msra.mxu0 0
        %704 = vmatprep.subr.bf16.mxu0 0
        %705 = vmatpush1.bf16.msra.mxu0 0
        %706 = vmatprep.subr.bf16.mxu0 0
        %707 = vmatpush1.bf16.msra.mxu0 0
        %708 = vmatprep.subr.bf16.mxu0 0
        %709 = vmatpush1.bf16.msra.mxu0 0
        %710 = vmatprep.subr.bf16.mxu0 0
        %711 = vmatpush1.bf16.msra.mxu0 0
        %712 = vmatprep.subr.bf16.mxu0 0
        %713 = vmatpush1.bf16.msra.mxu0 0
        %714 = vmatprep.subr.bf16.mxu0 0
        %715 = vmatpush1.bf16.msra.mxu0 0
        %716 = vmatprep.subr.bf16.mxu0 0
        %717 = vmatpush1.bf16.msra.mxu0 0
        %718 = vmatprep.subr.bf16.mxu0 0
        %719 = vmatpush1.bf16.msra.mxu0 0
        %720 = vmatprep.subr.bf16.mxu0 0
        %721 = vmatpush1.bf16.msra.mxu0 0
        %722 = vmatprep.subr.bf16.mxu0 0
        %723 = vmatpush1.bf16.msra.mxu0 0
        %724 = vmatprep.subr.bf16.mxu0 0
        %725 = vmatpush1.bf16.msra.mxu0 0
        %726 = vmatprep.mubr.bf16.mxu0 0
        %727 = vmatmul.mubr.bf16.gmra.mrb[0].mxu0 %v692
        %v728 = vpop.f32.mrb[0].mxu0
        %v729 = vadd.f32 0.0, %v728
        %v730 = vpop.f32.mrb[0].mxu0
        %v731 = vadd.f32 0.0, %v730
        %v732 = vpop.f32.mrb[0].mxu0
        %v733 = vpop.f32.mrb[0].mxu0
        %734 = vdwg.mxu0
        %v735 = vmul.f32 %v729, %v273
        %v736 = vmul.f32 %v731, %v274
        %v737 = vsel %vm250, %v735, -inf
        %v738 = vsel %vm250, %v736, -inf
        %v739 = vsel %vm347, %v737, -inf
        %v740 = vrot.slane %v739, 4
        %v741 = vmax.f32 %v739, %v740
        %v742 = vrot.slane %v741, 2
        %v743 = vmax.f32 %v741, %v742
        %v744 = vrot.slane %v743, 1
        %v745 = vmax.f32 %v743, %v744
        %v746 = vsel %vm347, %v738, -inf
        %v747 = vrot.slane %v746, 4
        %v748 = vmax.f32 %v746, %v747
        %v749 = vrot.slane %v748, 2
        %v750 = vmax.f32 %v748, %v749
        %v751 = vrot.slane %v750, 1
        %v752 = vmax.f32 %v750, %v751
        %v753 = vsel %vm250, -inf, %v735
        %v754 = vsel %vm250, -inf, %v736
        %v755 = vsel %vm347, %v753, -inf
        %v756 = vrot.slane %v755, 4
        %v757 = vmax.f32 %v755, %v756
        %v758 = vrot.slane %v757, 2
        %v759 = vmax.f32 %v757, %v758
        %v760 = vrot.slane %v759, 1
        %v761 = vmax.f32 %v759, %v760
        %v762 = vsel %vm347, %v754, -inf
        %v763 = vrot.slane %v762, 4
        %v764 = vmax.f32 %v762, %v763
        %v765 = vrot.slane %v764, 2
        %v766 = vmax.f32 %v764, %v765
        %v767 = vrot.slane %v766, 1
        %v768 = vmax.f32 %v766, %v767
        %v769 = vsel %vm250, %v745, %v761
        %v770 = vsel %vm250, %v752, %v768
        %v771 = vsub.f32 %v735, %v769
        %v772 = vsub.f32 %v736, %v770
        %v773 = vmul.f32 %v771, 1.442695
        %v774 = vpow.pop %v773
        %v775 = vmul.f32 %v772, 1.442695
        %v776 = vpow.pop %v775
        %v777 = vsel %vm250, %v774, 0.0
        %v778 = vsel %vm250, %v776, 0.0
        %v779 = vsel %vm347, %v777, 0.0
        %v780 = vrot.slane %v779, 4
        %v781 = vadd.f32 %v779, %v780
        %v782 = vrot.slane %v781, 2
        %v783 = vadd.f32 %v781, %v782
        %v784 = vrot.slane %v783, 1
        %v785 = vadd.f32 %v783, %v784
        %v786 = vsel %vm347, %v778, 0.0
        %v787 = vrot.slane %v786, 4
        %v788 = vadd.f32 %v786, %v787
        %v789 = vrot.slane %v788, 2
        %v790 = vadd.f32 %v788, %v789
        %v791 = vrot.slane %v790, 1
        %v792 = vadd.f32 %v790, %v791
        %v793 = vsel %vm347, %v774, 0.0
        %v794 = vrot.slane %v793, 4
        %v795 = vadd.f32 %v793, %v794
        %v796 = vrot.slane %v795, 2
        %v797 = vadd.f32 %v795, %v796
        %v798 = vrot.slane %v797, 1
        %v799 = vadd.f32 %v797, %v798
        %v800 = vsel %vm347, %v776, 0.0
        %v801 = vrot.slane %v800, 4
        %v802 = vadd.f32 %v800, %v801
        %v803 = vrot.slane %v802, 2
        %v804 = vadd.f32 %v802, %v803
        %v805 = vrot.slane %v804, 1
        %v806 = vadd.f32 %v804, %v805
        %v807 = vsub.f32 %v799, %v785
        %v808 = vsub.f32 %v806, %v792
        %v809 = vsel %vm250, %v785, %v807
        %v810 = vsel %vm250, %v792, %v808
        %v811 = vrcp.pop %v809
        %v812 = vrcp.pop %v810
        %v813 = vmul.f32 %v774, %v811
        %v814 = vmul.f32 %v776, %v812
        %v815 = vsel %vm347, %v813, 0.0
        %v816 = vsel %vm347, %v814, 0.0
        %v817 = vadd.f32 %v815, %v816
        %818 = vadd.xlane.f32.xlu0 %v817
        %v819 = vpop.xlane.xlu0 %818
        %v820 = vadd.f32 %v819, 1e-06
        %v821 = vrcp.pop %v820
        %v822 = vmul.f32 1.0, %v821
        %v823 = vmul.f32 %v813, %v822
        %v824 = vmul.f32 %v814, %v822
        %v825 = vmul.f32 %v823, %v273
        %v826 = vmul.f32 %v824, %v274
        %v827 = vpack.c.bf16 %v825, %v825
        %v828 = vpack.c.bf16 %v826, %v826
        %829 = vmatprep.subr.bf16.mxu0 %v291
        %830 = vmatpush1.bf16.xpose.msra.mxu0 %v290
        %831 = vmatprep.subr.bf16.mxu0 %v293
        %832 = vmatpush1.bf16.xpose.msra.mxu0 %v292
        %833 = vmatprep.subr.bf16.mxu0 0
        %834 = vmatpush1.bf16.xpose.msra.mxu0 0
        %835 = vmatprep.subr.bf16.mxu0 0
        %836 = vmatpush1.bf16.xpose.msra.mxu0 0
        %837 = vmatprep.subr.bf16.mxu0 0
        %838 = vmatpush1.bf16.xpose.msra.mxu0 0
        %839 = vmatprep.subr.bf16.mxu0 0
        %840 = vmatpush1.bf16.xpose.msra.mxu0 0
        %841 = vmatprep.subr.bf16.mxu0 0
        %842 = vmatpush1.bf16.xpose.msra.mxu0 0
        %843 = vmatprep.subr.bf16.mxu0 0
        %844 = vmatpush1.bf16.xpose.msra.mxu0 0
        %845 = vmatprep.subr.bf16.mxu0 0
        %846 = vmatpush1.bf16.xpose.msra.mxu0 0
        %847 = vmatprep.subr.bf16.mxu0 0
        %848 = vmatpush1.bf16.xpose.msra.mxu0 0
        %849 = vmatprep.subr.bf16.mxu0 0
        %850 = vmatpush1.bf16.xpose.msra.mxu0 0
        %851 = vmatprep.subr.bf16.mxu0 0
        %852 = vmatpush1.bf16.xpose.msra.mxu0 0
        %853 = vmatprep.subr.bf16.mxu0 0
        %854 = vmatpush1.bf16.xpose.msra.mxu0 0
        %855 = vmatprep.subr.bf16.mxu0 0
        %856 = vmatpush1.bf16.xpose.msra.mxu0 0
        %857 = vmatprep.subr.bf16.mxu0 0
        %858 = vmatpush1.bf16.xpose.msra.mxu0 0
        %859 = vmatprep.subr.bf16.mxu0 0
        %860 = vmatpush1.bf16.xpose.msra.mxu0 0
        %861 = vmatprep.mubr.bf16.mxu0 %v828
        %862 = vmatmul.mubr.bf16.gmra.mrb[0].mxu0 %v827
        %v863 = vpop.f32.mrb[0].mxu0
        %v864 = vadd.f32 0.0, %v863
        %v865 = vpop.f32.mrb[0].mxu0
        %v866 = vpop.f32.mrb[0].mxu0
        %v867 = vpop.f32.mrb[0].mxu0
        %868 = vdwg.mxu0
        %v869 = vmul.f32 %v864, %v864
        %v870 = vsel %vm479, %v869, 0.0
        %871 = vadd.xlane.f32.xlu0 %v870
        %v872 = vpop.xlane.xlu0 %871
        %v873 = vrsqrt.pop %v872
        %v874 = vmul.f32 %v872, %v873
        %vm875 = vcmp.eq.f32.partialorder %v872, inf
        %v876 = vsel %vm875, %v872, %v874
        %vm877 = vcmp.eq.f32.partialorder %v872, 0.0
        %v878 = vand.u32 %v872, 2147483648
        %v879 = vsel %vm877, %v878, %v876
        %v880 = vadd.f32 %v879, 1e-06
        %v881 = vrcp.pop %v880
        %v882 = vmul.f32 1.0, %v881
        %v883 = vmul.f32 %v864, %v882
        %v884 = vmul.f32 %v883, 20.0
        %v885 = vpack.c.bf16 %v884, %v884
        %v887 = vsel %vm298, %v885, 0
        %889 = vmatprep.subr.bf16.mxu0 %v291
        %890 = vmatpush1.bf16.msra.mxu0 %v290
        %891 = vmatprep.subr.bf16.mxu0 %v293
        %892 = vmatpush1.bf16.msra.mxu0 %v292
        %893 = vmatprep.subr.bf16.mxu0 0
        %894 = vmatpush1.bf16.msra.mxu0 0
        %895 = vmatprep.subr.bf16.mxu0 0
        %896 = vmatpush1.bf16.msra.mxu0 0
        %897 = vmatprep.subr.bf16.mxu0 0
        %898 = vmatpush1.bf16.msra.mxu0 0
        %899 = vmatprep.subr.bf16.mxu0 0
        %900 = vmatpush1.bf16.msra.mxu0 0
        %901 = vmatprep.subr.bf16.mxu0 0
        %902 = vmatpush1.bf16.msra.mxu0 0
        %903 = vmatprep.subr.bf16.mxu0 0
        %904 = vmatpush1.bf16.msra.mxu0 0
        %905 = vmatprep.subr.bf16.mxu0 0
        %906 = vmatpush1.bf16.msra.mxu0 0
        %907 = vmatprep.subr.bf16.mxu0 0
        %908 = vmatpush1.bf16.msra.mxu0 0
        %909 = vmatprep.subr.bf16.mxu0 0
        %910 = vmatpush1.bf16.msra.mxu0 0
        %911 = vmatprep.subr.bf16.mxu0 0
        %912 = vmatpush1.bf16.msra.mxu0 0
        %913 = vmatprep.subr.bf16.mxu0 0
        %914 = vmatpush1.bf16.msra.mxu0 0
        %915 = vmatprep.subr.bf16.mxu0 0
        %916 = vmatpush1.bf16.msra.mxu0 0
        %917 = vmatprep.subr.bf16.mxu0 0
        %918 = vmatpush1.bf16.msra.mxu0 0
        %919 = vmatprep.subr.bf16.mxu0 0
        %920 = vmatpush1.bf16.msra.mxu0 0
        %921 = vmatprep.mubr.bf16.mxu0 0
        %922 = vmatmul.mubr.bf16.gmra.mrb[0].mxu0 %v887
        %v923 = vpop.f32.mrb[0].mxu0
        %v924 = vadd.f32 0.0, %v923
        %v925 = vpop.f32.mrb[0].mxu0
        %v926 = vadd.f32 0.0, %v925
        %v927 = vpop.f32.mrb[0].mxu0
        %v928 = vpop.f32.mrb[0].mxu0
        %929 = vdwg.mxu0
        %v930 = vmul.f32 %v924, %v273
        %v931 = vmul.f32 %v926, %v274
        %v932 = vsel %vm250, %v930, -inf
        %v933 = vsel %vm250, %v931, -inf
        %v934 = vsel %vm347, %v932, -inf
        %v935 = vrot.slane %v934, 4
        %v936 = vmax.f32 %v934, %v935
        %v937 = vrot.slane %v936, 2
        %v938 = vmax.f32 %v936, %v937
        %v939 = vrot.slane %v938, 1
        %v940 = vmax.f32 %v938, %v939
        %v941 = vsel %vm347, %v933, -inf
        %v942 = vrot.slane %v941, 4
        %v943 = vmax.f32 %v941, %v942
        %v944 = vrot.slane %v943, 2
        %v945 = vmax.f32 %v943, %v944
        %v946 = vrot.slane %v945, 1
        %v947 = vmax.f32 %v945, %v946
        %v948 = vsel %vm250, -inf, %v930
        %v949 = vsel %vm250, -inf, %v931
        %v950 = vsel %vm347, %v948, -inf
        %v951 = vrot.slane %v950, 4
        %v952 = vmax.f32 %v950, %v951
        %v953 = vrot.slane %v952, 2
        %v954 = vmax.f32 %v952, %v953
        %v955 = vrot.slane %v954, 1
        %v956 = vmax.f32 %v954, %v955
        %v957 = vsel %vm347, %v949, -inf
        %v958 = vrot.slane %v957, 4
        %v959 = vmax.f32 %v957, %v958
        %v960 = vrot.slane %v959, 2
        %v961 = vmax.f32 %v959, %v960
        %v962 = vrot.slane %v961, 1
        %v963 = vmax.f32 %v961, %v962
        %v964 = vsel %vm250, %v940, %v956
        %v965 = vsel %vm250, %v947, %v963
        %v966 = vsub.f32 %v930, %v964
        %v967 = vsub.f32 %v931, %v965
        %v968 = vmul.f32 %v966, 1.442695
        %v969 = vpow.pop %v968
        %v970 = vmul.f32 %v967, 1.442695
        %v971 = vpow.pop %v970
        %v972 = vsel %vm250, %v969, 0.0
        %v973 = vsel %vm250, %v971, 0.0
        %v974 = vsel %vm347, %v972, 0.0
        %v975 = vrot.slane %v974, 4
        %v976 = vadd.f32 %v974, %v975
        %v977 = vrot.slane %v976, 2
        %v978 = vadd.f32 %v976, %v977
        %v979 = vrot.slane %v978, 1
        %v980 = vadd.f32 %v978, %v979
        %v981 = vsel %vm347, %v973, 0.0
        %v982 = vrot.slane %v981, 4
        %v983 = vadd.f32 %v981, %v982
        %v984 = vrot.slane %v983, 2
        %v985 = vadd.f32 %v983, %v984
        %v986 = vrot.slane %v985, 1
        %v987 = vadd.f32 %v985, %v986
        %v988 = vsel %vm347, %v969, 0.0
        %v989 = vrot.slane %v988, 4
        %v990 = vadd.f32 %v988, %v989
        %v991 = vrot.slane %v990, 2
        %v992 = vadd.f32 %v990, %v991
        %v993 = vrot.slane %v992, 1
        %v994 = vadd.f32 %v992, %v993
        %v995 = vsel %vm347, %v971, 0.0
        %v996 = vrot.slane %v995, 4
        %v997 = vadd.f32 %v995, %v996
        %v998 = vrot.slane %v997, 2
        %v999 = vadd.f32 %v997, %v998
        %v1000 = vrot.slane %v999, 1
        %v1001 = vadd.f32 %v999, %v1000
        %v1002 = vsub.f32 %v994, %v980
        %v1003 = vsub.f32 %v1001, %v987
        %v1004 = vsel %vm250, %v980, %v1002
        %v1005 = vsel %vm250, %v987, %v1003
        %v1006 = vrcp.pop %v1004
        %v1007 = vrcp.pop %v1005
        %v1008 = vmul.f32 %v969, %v1006
        %v1009 = vmul.f32 %v971, %v1007
        %v1010 = vsel %vm347, %v1008, 0.0
        %v1011 = vsel %vm347, %v1009, 0.0
        %v1012 = vadd.f32 %v1010, %v1011
        %1013 = vadd.xlane.f32.xlu0 %v1012
        %v1014 = vpop.xlane.xlu0 %1013
        %v1015 = vadd.f32 %v1014, 1e-06
        %v1016 = vrcp.pop %v1015
        %v1017 = vmul.f32 1.0, %v1016
        %v1018 = vmul.f32 %v1008, %v1017
        %v1019 = vmul.f32 %v1009, %v1017
        %v1020 = vmul.f32 %v1018, %v273
        %v1021 = vmul.f32 %v1019, %v274
        %v1022 = vpack.c.bf16 %v1020, %v1020
        %v1023 = vpack.c.bf16 %v1021, %v1021
        %1024 = vmatprep.subr.bf16.mxu0 %v291
        %1025 = vmatpush1.bf16.xpose.msra.mxu0 %v290
        %1026 = vmatprep.subr.bf16.mxu0 %v293
        %1027 = vmatpush1.bf16.xpose.msra.mxu0 %v292
        %1028 = vmatprep.subr.bf16.mxu0 0
        %1029 = vmatpush1.bf16.xpose.msra.mxu0 0
        %1030 = vmatprep.subr.bf16.mxu0 0
        %1031 = vmatpush1.bf16.xpose.msra.mxu0 0
        %1032 = vmatprep.subr.bf16.mxu0 0
        %1033 = vmatpush1.bf16.xpose.msra.mxu0 0
        %1034 = vmatprep.subr.bf16.mxu0 0
        %1035 = vmatpush1.bf16.xpose.msra.mxu0 0
        %1036 = vmatprep.subr.bf16.mxu0 0
        %1037 = vmatpush1.bf16.xpose.msra.mxu0 0
        %1038 = vmatprep.subr.bf16.mxu0 0
        %1039 = vmatpush1.bf16.xpose.msra.mxu0 0
        %1040 = vmatprep.subr.bf16.mxu0 0
        %1041 = vmatpush1.bf16.xpose.msra.mxu0 0
        %1042 = vmatprep.subr.bf16.mxu0 0
        %1043 = vmatpush1.bf16.xpose.msra.mxu0 0
        %1044 = vmatprep.subr.bf16.mxu0 0
        %1045 = vmatpush1.bf16.xpose.msra.mxu0 0
        %1046 = vmatprep.subr.bf16.mxu0 0
        %1047 = vmatpush1.bf16.xpose.msra.mxu0 0
        %1048 = vmatprep.subr.bf16.mxu0 0
        %1049 = vmatpush1.bf16.xpose.msra.mxu0 0
        %1050 = vmatprep.subr.bf16.mxu0 0
        %1051 = vmatpush1.bf16.xpose.msra.mxu0 0
        %1052 = vmatprep.subr.bf16.mxu0 0
        %1053 = vmatpush1.bf16.xpose.msra.mxu0 0
        %1054 = vmatprep.subr.bf16.mxu0 0
        %1055 = vmatpush1.bf16.xpose.msra.mxu0 0
        %1056 = vmatprep.mubr.bf16.mxu0 %v1023
        %1057 = vmatmul.mubr.bf16.gmra.mrb[0].mxu0 %v1022
        %v1058 = vpop.f32.mrb[0].mxu0
        %v1059 = vadd.f32 0.0, %v1058
        %v1060 = vpop.f32.mrb[0].mxu0
        %v1061 = vpop.f32.mrb[0].mxu0
        %v1062 = vpop.f32.mrb[0].mxu0
        %1063 = vdwg.mxu0
        %v1064 = vmul.f32 %v1059, %v1059
        %v1065 = vsel %vm479, %v1064, 0.0
        %1066 = vadd.xlane.f32.xlu0 %v1065
        %v1067 = vpop.xlane.xlu0 %1066
        %v1068 = vrsqrt.pop %v1067
        %v1069 = vmul.f32 %v1067, %v1068
        %vm1070 = vcmp.eq.f32.partialorder %v1067, inf
        %v1071 = vsel %vm1070, %v1067, %v1069
        %vm1072 = vcmp.eq.f32.partialorder %v1067, 0.0
        %v1073 = vand.u32 %v1067, 2147483648
        %v1074 = vsel %vm1072, %v1073, %v1071
        %v1075 = vadd.f32 %v1074, 1e-06
        %v1076 = vrcp.pop %v1075
        %v1077 = vmul.f32 1.0, %v1076
        %v1078 = vmul.f32 %v1059, %v1077
        %v1079 = vmul.f32 %v1078, 20.0
        %v1080 = vpack.c.bf16 %v1079, %v1079
        %v1082 = vsel %vm298, %v1080, 0
        %1084 = vmatprep.subr.bf16.mxu0 %v291
        %1085 = vmatpush1.bf16.msra.mxu0 %v290
        %1086 = vmatprep.subr.bf16.mxu0 %v293
        %1087 = vmatpush1.bf16.msra.mxu0 %v292
        %1088 = vmatprep.subr.bf16.mxu0 0
        %1089 = vmatpush1.bf16.msra.mxu0 0
        %1090 = vmatprep.subr.bf16.mxu0 0
        %1091 = vmatpush1.bf16.msra.mxu0 0
        %1092 = vmatprep.subr.bf16.mxu0 0
        %1093 = vmatpush1.bf16.msra.mxu0 0
        %1094 = vmatprep.subr.bf16.mxu0 0
        %1095 = vmatpush1.bf16.msra.mxu0 0
        %1096 = vmatprep.subr.bf16.mxu0 0
        %1097 = vmatpush1.bf16.msra.mxu0 0
        %1098 = vmatprep.subr.bf16.mxu0 0
        %1099 = vmatpush1.bf16.msra.mxu0 0
        %1100 = vmatprep.subr.bf16.mxu0 0
        %1101 = vmatpush1.bf16.msra.mxu0 0
        %1102 = vmatprep.subr.bf16.mxu0 0
        %1103 = vmatpush1.bf16.msra.mxu0 0
        %1104 = vmatprep.subr.bf16.mxu0 0
        %1105 = vmatpush1.bf16.msra.mxu0 0
        %1106 = vmatprep.subr.bf16.mxu0 0
        %1107 = vmatpush1.bf16.msra.mxu0 0
        %1108 = vmatprep.subr.bf16.mxu0 0
        %1109 = vmatpush1.bf16.msra.mxu0 0
        %1110 = vmatprep.subr.bf16.mxu0 0
        %1111 = vmatpush1.bf16.msra.mxu0 0
        %1112 = vmatprep.subr.bf16.mxu0 0
        %1113 = vmatpush1.bf16.msra.mxu0 0
        %1114 = vmatprep.subr.bf16.mxu0 0
        %1115 = vmatpush1.bf16.msra.mxu0 0
        %1116 = vmatprep.mubr.bf16.mxu0 0
        %1117 = vmatmul.mubr.bf16.gmra.mrb[0].mxu0 %v1082
        %v1118 = vpop.f32.mrb[0].mxu0
        %v1119 = vadd.f32 0.0, %v1118
        %v1120 = vpop.f32.mrb[0].mxu0
        %v1121 = vadd.f32 0.0, %v1120
        %v1122 = vpop.f32.mrb[0].mxu0
        %v1123 = vpop.f32.mrb[0].mxu0
        %1124 = vdwg.mxu0
        %v1125 = vmul.f32 %v1119, %v273
        %v1126 = vmul.f32 %v1121, %v274
        %v1127 = vsel %vm250, %v1125, -inf
        %v1128 = vsel %vm250, %v1126, -inf
        %v1129 = vsel %vm347, %v1127, -inf
        %v1130 = vrot.slane %v1129, 4
        %v1131 = vmax.f32 %v1129, %v1130
        %v1132 = vrot.slane %v1131, 2
        %v1133 = vmax.f32 %v1131, %v1132
        %v1134 = vrot.slane %v1133, 1
        %v1135 = vmax.f32 %v1133, %v1134
        %v1136 = vsel %vm347, %v1128, -inf
        %v1137 = vrot.slane %v1136, 4
        %v1138 = vmax.f32 %v1136, %v1137
        %v1139 = vrot.slane %v1138, 2
        %v1140 = vmax.f32 %v1138, %v1139
        %v1141 = vrot.slane %v1140, 1
        %v1142 = vmax.f32 %v1140, %v1141
        %v1143 = vsel %vm250, -inf, %v1125
        %v1144 = vsel %vm250, -inf, %v1126
        %v1145 = vsel %vm347, %v1143, -inf
        %v1146 = vrot.slane %v1145, 4
        %v1147 = vmax.f32 %v1145, %v1146
        %v1148 = vrot.slane %v1147, 2
        %v1149 = vmax.f32 %v1147, %v1148
        %v1150 = vrot.slane %v1149, 1
        %v1151 = vmax.f32 %v1149, %v1150
        %v1152 = vsel %vm347, %v1144, -inf
        %v1153 = vrot.slane %v1152, 4
        %v1154 = vmax.f32 %v1152, %v1153
        %v1155 = vrot.slane %v1154, 2
        %v1156 = vmax.f32 %v1154, %v1155
        %v1157 = vrot.slane %v1156, 1
        %v1158 = vmax.f32 %v1156, %v1157
        %v1159 = vsel %vm250, %v1135, %v1151
        %v1160 = vsel %vm250, %v1142, %v1158
        %v1161 = vsub.f32 %v1125, %v1159
        %v1162 = vsub.f32 %v1126, %v1160
        %v1163 = vmul.f32 %v1161, 1.442695
        %v1164 = vpow.pop %v1163
        %v1165 = vmul.f32 %v1162, 1.442695
        %v1166 = vpow.pop %v1165
        %v1167 = vsel %vm250, %v1164, 0.0
        %v1168 = vsel %vm250, %v1166, 0.0
        %v1169 = vsel %vm347, %v1167, 0.0
        %v1170 = vrot.slane %v1169, 4
        %v1171 = vadd.f32 %v1169, %v1170
        %v1172 = vrot.slane %v1171, 2
        %v1173 = vadd.f32 %v1171, %v1172
        %v1174 = vrot.slane %v1173, 1
        %v1175 = vadd.f32 %v1173, %v1174
        %v1176 = vsel %vm347, %v1168, 0.0
        %v1177 = vrot.slane %v1176, 4
        %v1178 = vadd.f32 %v1176, %v1177
        %v1179 = vrot.slane %v1178, 2
        %v1180 = vadd.f32 %v1178, %v1179
        %v1181 = vrot.slane %v1180, 1
        %v1182 = vadd.f32 %v1180, %v1181
        %v1183 = vsel %vm347, %v1164, 0.0
        %v1184 = vrot.slane %v1183, 4
        %v1185 = vadd.f32 %v1183, %v1184
        %v1186 = vrot.slane %v1185, 2
        %v1187 = vadd.f32 %v1185, %v1186
        %v1188 = vrot.slane %v1187, 1
        %v1189 = vadd.f32 %v1187, %v1188
        %v1190 = vsel %vm347, %v1166, 0.0
        %v1191 = vrot.slane %v1190, 4
        %v1192 = vadd.f32 %v1190, %v1191
        %v1193 = vrot.slane %v1192, 2
        %v1194 = vadd.f32 %v1192, %v1193
        %v1195 = vrot.slane %v1194, 1
        %v1196 = vadd.f32 %v1194, %v1195
        %v1197 = vsub.f32 %v1189, %v1175
        %v1198 = vsub.f32 %v1196, %v1182
        %v1199 = vsel %vm250, %v1175, %v1197
        %v1200 = vsel %vm250, %v1182, %v1198
        %v1201 = vrcp.pop %v1199
        %v1202 = vrcp.pop %v1200
        %v1203 = vmul.f32 %v1164, %v1201
        %v1204 = vmul.f32 %v1166, %v1202
        %v1205 = vsel %vm347, %v1203, 0.0
        %v1206 = vsel %vm347, %v1204, 0.0
        %v1207 = vadd.f32 %v1205, %v1206
        %1208 = vadd.xlane.f32.xlu0 %v1207
        %v1209 = vpop.xlane.xlu0 %1208
        %v1210 = vadd.f32 %v1209, 1e-06
        %v1211 = vrcp.pop %v1210
        %v1212 = vmul.f32 1.0, %v1211
        %v1213 = vmul.f32 %v1203, %v1212
        %v1214 = vmul.f32 %v1204, %v1212
        %v1215 = vmul.f32 %v1213, %v273
        %v1216 = vmul.f32 %v1214, %v274
        %v1217 = vpack.c.bf16 %v1215, %v1215
        %v1218 = vpack.c.bf16 %v1216, %v1216
        %1219 = vmatprep.subr.bf16.mxu0 %v291
        %1220 = vmatpush1.bf16.xpose.msra.mxu0 %v290
        %1221 = vmatprep.subr.bf16.mxu0 %v293
        %1222 = vmatpush1.bf16.xpose.msra.mxu0 %v292
        %1223 = vmatprep.subr.bf16.mxu0 0
        %1224 = vmatpush1.bf16.xpose.msra.mxu0 0
        %1225 = vmatprep.subr.bf16.mxu0 0
        %1226 = vmatpush1.bf16.xpose.msra.mxu0 0
        %1227 = vmatprep.subr.bf16.mxu0 0
        %1228 = vmatpush1.bf16.xpose.msra.mxu0 0
        %1229 = vmatprep.subr.bf16.mxu0 0
        %1230 = vmatpush1.bf16.xpose.msra.mxu0 0
        %1231 = vmatprep.subr.bf16.mxu0 0
        %1232 = vmatpush1.bf16.xpose.msra.mxu0 0
        %1233 = vmatprep.subr.bf16.mxu0 0
        %1234 = vmatpush1.bf16.xpose.msra.mxu0 0
        %1235 = vmatprep.subr.bf16.mxu0 0
        %1236 = vmatpush1.bf16.xpose.msra.mxu0 0
        %1237 = vmatprep.subr.bf16.mxu0 0
        %1238 = vmatpush1.bf16.xpose.msra.mxu0 0
        %1239 = vmatprep.subr.bf16.mxu0 0
        %1240 = vmatpush1.bf16.xpose.msra.mxu0 0
        %1241 = vmatprep.subr.bf16.mxu0 0
        %1242 = vmatpush1.bf16.xpose.msra.mxu0 0
        %1243 = vmatprep.subr.bf16.mxu0 0
        %1244 = vmatpush1.bf16.xpose.msra.mxu0 0
        %1245 = vmatprep.subr.bf16.mxu0 0
        %1246 = vmatpush1.bf16.xpose.msra.mxu0 0
        %1247 = vmatprep.subr.bf16.mxu0 0
        %1248 = vmatpush1.bf16.xpose.msra.mxu0 0
        %1249 = vmatprep.subr.bf16.mxu0 0
        %1250 = vmatpush1.bf16.xpose.msra.mxu0 0
        %1251 = vmatprep.mubr.bf16.mxu0 %v1218
        %1252 = vmatmul.mubr.bf16.gmra.mrb[0].mxu0 %v1217
        %v1253 = vpop.f32.mrb[0].mxu0
        %v1254 = vadd.f32 0.0, %v1253
        %v1255 = vpop.f32.mrb[0].mxu0
        %v1256 = vpop.f32.mrb[0].mxu0
        %v1257 = vpop.f32.mrb[0].mxu0
        %1258 = vdwg.mxu0
        %v1259 = vmul.f32 %v1254, %v1254
        %v1260 = vsel %vm479, %v1259, 0.0
        %1261 = vadd.xlane.f32.xlu0 %v1260
        %v1262 = vpop.xlane.xlu0 %1261
        %v1263 = vrsqrt.pop %v1262
        %v1264 = vmul.f32 %v1262, %v1263
        %vm1265 = vcmp.eq.f32.partialorder %v1262, inf
        %v1266 = vsel %vm1265, %v1262, %v1264
        %vm1267 = vcmp.eq.f32.partialorder %v1262, 0.0
        %v1268 = vand.u32 %v1262, 2147483648
        %v1269 = vsel %vm1267, %v1268, %v1266
        %v1270 = vadd.f32 %v1269, 1e-06
        %v1271 = vrcp.pop %v1270
        %v1272 = vmul.f32 1.0, %v1271
        %v1273 = vmul.f32 %v1254, %v1272
        %v1274 = vmul.f32 %v1273, 20.0
        %v1275 = vpack.c.bf16 %v1274, %v1274
        %v1277 = vsel %vm298, %v1275, 0
        %1279 = vmatprep.subr.bf16.mxu0 %v291
        %1280 = vmatpush1.bf16.msra.mxu0 %v290
        %1281 = vmatprep.subr.bf16.mxu0 %v293
        %1282 = vmatpush1.bf16.msra.mxu0 %v292
        %1283 = vmatprep.subr.bf16.mxu0 0
        %1284 = vmatpush1.bf16.msra.mxu0 0
        %1285 = vmatprep.subr.bf16.mxu0 0
        %1286 = vmatpush1.bf16.msra.mxu0 0
        %1287 = vmatprep.subr.bf16.mxu0 0
        %1288 = vmatpush1.bf16.msra.mxu0 0
        %1289 = vmatprep.subr.bf16.mxu0 0
        %1290 = vmatpush1.bf16.msra.mxu0 0
        %1291 = vmatprep.subr.bf16.mxu0 0
        %1292 = vmatpush1.bf16.msra.mxu0 0
        %1293 = vmatprep.subr.bf16.mxu0 0
        %1294 = vmatpush1.bf16.msra.mxu0 0
        %1295 = vmatprep.subr.bf16.mxu0 0
        %1296 = vmatpush1.bf16.msra.mxu0 0
        %1297 = vmatprep.subr.bf16.mxu0 0
        %1298 = vmatpush1.bf16.msra.mxu0 0
        %1299 = vmatprep.subr.bf16.mxu0 0
        %1300 = vmatpush1.bf16.msra.mxu0 0
        %1301 = vmatprep.subr.bf16.mxu0 0
        %1302 = vmatpush1.bf16.msra.mxu0 0
        %1303 = vmatprep.subr.bf16.mxu0 0
        %1304 = vmatpush1.bf16.msra.mxu0 0
        %1305 = vmatprep.subr.bf16.mxu0 0
        %1306 = vmatpush1.bf16.msra.mxu0 0
        %1307 = vmatprep.subr.bf16.mxu0 0
        %1308 = vmatpush1.bf16.msra.mxu0 0
        %1309 = vmatprep.subr.bf16.mxu0 0
        %1310 = vmatpush1.bf16.msra.mxu0 0
        %1311 = vmatprep.mubr.bf16.mxu0 0
        %1312 = vmatmul.mubr.bf16.gmra.mrb[0].mxu0 %v1277
        %v1313 = vpop.f32.mrb[0].mxu0
        %v1314 = vadd.f32 0.0, %v1313
        %v1315 = vpop.f32.mrb[0].mxu0
        %v1316 = vadd.f32 0.0, %v1315
        %v1317 = vpop.f32.mrb[0].mxu0
        %v1318 = vpop.f32.mrb[0].mxu0
        %1319 = vdwg.mxu0
        %v1320 = vmul.f32 %v1314, %v273
        %v1321 = vmul.f32 %v1316, %v274
        %v1322 = vsel %vm250, %v1320, -inf
        %v1323 = vsel %vm250, %v1321, -inf
        %v1324 = vsel %vm347, %v1322, -inf
        %v1325 = vrot.slane %v1324, 4
        %v1326 = vmax.f32 %v1324, %v1325
        %v1327 = vrot.slane %v1326, 2
        %v1328 = vmax.f32 %v1326, %v1327
        %v1329 = vrot.slane %v1328, 1
        %v1330 = vmax.f32 %v1328, %v1329
        %v1331 = vsel %vm347, %v1323, -inf
        %v1332 = vrot.slane %v1331, 4
        %v1333 = vmax.f32 %v1331, %v1332
        %v1334 = vrot.slane %v1333, 2
        %v1335 = vmax.f32 %v1333, %v1334
        %v1336 = vrot.slane %v1335, 1
        %v1337 = vmax.f32 %v1335, %v1336
        %v1338 = vsel %vm250, -inf, %v1320
        %v1339 = vsel %vm250, -inf, %v1321
        %v1340 = vsel %vm347, %v1338, -inf
        %v1341 = vrot.slane %v1340, 4
        %v1342 = vmax.f32 %v1340, %v1341
        %v1343 = vrot.slane %v1342, 2
        %v1344 = vmax.f32 %v1342, %v1343
        %v1345 = vrot.slane %v1344, 1
        %v1346 = vmax.f32 %v1344, %v1345
        %v1347 = vsel %vm347, %v1339, -inf
        %v1348 = vrot.slane %v1347, 4
        %v1349 = vmax.f32 %v1347, %v1348
        %v1350 = vrot.slane %v1349, 2
        %v1351 = vmax.f32 %v1349, %v1350
        %v1352 = vrot.slane %v1351, 1
        %v1353 = vmax.f32 %v1351, %v1352
        %v1354 = vsel %vm250, %v1330, %v1346
        %v1355 = vsel %vm250, %v1337, %v1353
        %v1356 = vsub.f32 %v1320, %v1354
        %v1357 = vsub.f32 %v1321, %v1355
        %v1358 = vmul.f32 %v1356, 1.442695
        %v1359 = vpow.pop %v1358
        %v1360 = vmul.f32 %v1357, 1.442695
        %v1361 = vpow.pop %v1360
        %v1362 = vsel %vm250, %v1359, 0.0
        %v1363 = vsel %vm250, %v1361, 0.0
        %v1364 = vsel %vm347, %v1362, 0.0
        %v1365 = vrot.slane %v1364, 4
        %v1366 = vadd.f32 %v1364, %v1365
        %v1367 = vrot.slane %v1366, 2
        %v1368 = vadd.f32 %v1366, %v1367
        %v1369 = vrot.slane %v1368, 1
        %v1370 = vadd.f32 %v1368, %v1369
        %v1371 = vsel %vm347, %v1363, 0.0
        %v1372 = vrot.slane %v1371, 4
        %v1373 = vadd.f32 %v1371, %v1372
        %v1374 = vrot.slane %v1373, 2
        %v1375 = vadd.f32 %v1373, %v1374
        %v1376 = vrot.slane %v1375, 1
        %v1377 = vadd.f32 %v1375, %v1376
        %v1378 = vsel %vm347, %v1359, 0.0
        %v1379 = vrot.slane %v1378, 4
        %v1380 = vadd.f32 %v1378, %v1379
        %v1381 = vrot.slane %v1380, 2
        %v1382 = vadd.f32 %v1380, %v1381
        %v1383 = vrot.slane %v1382, 1
        %v1384 = vadd.f32 %v1382, %v1383
        %v1385 = vsel %vm347, %v1361, 0.0
        %v1386 = vrot.slane %v1385, 4
        %v1387 = vadd.f32 %v1385, %v1386
        %v1388 = vrot.slane %v1387, 2
        %v1389 = vadd.f32 %v1387, %v1388
        %v1390 = vrot.slane %v1389, 1
        %v1391 = vadd.f32 %v1389, %v1390
        %v1392 = vsub.f32 %v1384, %v1370
        %v1393 = vsub.f32 %v1391, %v1377
        %v1394 = vsel %vm250, %v1370, %v1392
        %v1395 = vsel %vm250, %v1377, %v1393
        %v1396 = vrcp.pop %v1394
        %v1397 = vrcp.pop %v1395
        %v1398 = vmul.f32 %v1359, %v1396
        %v1399 = vmul.f32 %v1361, %v1397
        %v1400 = vsel %vm347, %v1398, 0.0
        %v1401 = vsel %vm347, %v1399, 0.0
        %v1402 = vadd.f32 %v1400, %v1401
        %1403 = vadd.xlane.f32.xlu0 %v1402
        %v1404 = vpop.xlane.xlu0 %1403
        %v1405 = vadd.f32 %v1404, 1e-06
        %v1406 = vrcp.pop %v1405
        %v1407 = vmul.f32 1.0, %v1406
        %v1408 = vmul.f32 %v1398, %v1407
        %v1409 = vmul.f32 %v1399, %v1407
        %v1410 = vmul.f32 %v1408, %v273
        %v1411 = vmul.f32 %v1409, %v274
        %v1412 = vpack.c.bf16 %v1410, %v1410
        %v1413 = vpack.c.bf16 %v1411, %v1411
        %1414 = vmatprep.subr.bf16.mxu0 %v291
        %1415 = vmatpush1.bf16.xpose.msra.mxu0 %v290
        %1416 = vmatprep.subr.bf16.mxu0 %v293
        %1417 = vmatpush1.bf16.xpose.msra.mxu0 %v292
        %1418 = vmatprep.subr.bf16.mxu0 0
        %1419 = vmatpush1.bf16.xpose.msra.mxu0 0
        %1420 = vmatprep.subr.bf16.mxu0 0
        %1421 = vmatpush1.bf16.xpose.msra.mxu0 0
        %1422 = vmatprep.subr.bf16.mxu0 0
        %1423 = vmatpush1.bf16.xpose.msra.mxu0 0
        %1424 = vmatprep.subr.bf16.mxu0 0
        %1425 = vmatpush1.bf16.xpose.msra.mxu0 0
        %1426 = vmatprep.subr.bf16.mxu0 0
        %1427 = vmatpush1.bf16.xpose.msra.mxu0 0
        %1428 = vmatprep.subr.bf16.mxu0 0
        %1429 = vmatpush1.bf16.xpose.msra.mxu0 0
        %1430 = vmatprep.subr.bf16.mxu0 0
        %1431 = vmatpush1.bf16.xpose.msra.mxu0 0
        %1432 = vmatprep.subr.bf16.mxu0 0
        %1433 = vmatpush1.bf16.xpose.msra.mxu0 0
        %1434 = vmatprep.subr.bf16.mxu0 0
        %1435 = vmatpush1.bf16.xpose.msra.mxu0 0
        %1436 = vmatprep.subr.bf16.mxu0 0
        %1437 = vmatpush1.bf16.xpose.msra.mxu0 0
        %1438 = vmatprep.subr.bf16.mxu0 0
        %1439 = vmatpush1.bf16.xpose.msra.mxu0 0
        %1440 = vmatprep.subr.bf16.mxu0 0
        %1441 = vmatpush1.bf16.xpose.msra.mxu0 0
        %1442 = vmatprep.subr.bf16.mxu0 0
        %1443 = vmatpush1.bf16.xpose.msra.mxu0 0
        %1444 = vmatprep.subr.bf16.mxu0 0
        %1445 = vmatpush1.bf16.xpose.msra.mxu0 0
        %1446 = vmatprep.mubr.bf16.mxu0 %v1413
        %1447 = vmatmul.mubr.bf16.gmra.mrb[0].mxu0 %v1412
        %v1448 = vpop.f32.mrb[0].mxu0
        %v1449 = vadd.f32 0.0, %v1448
        %v1450 = vpop.f32.mrb[0].mxu0
        %v1451 = vpop.f32.mrb[0].mxu0
        %v1452 = vpop.f32.mrb[0].mxu0
        %1453 = vdwg.mxu0
        %v1454 = vmul.f32 %v1449, %v1449
        %v1455 = vsel %vm479, %v1454, 0.0
        %1456 = vadd.xlane.f32.xlu0 %v1455
        %v1457 = vpop.xlane.xlu0 %1456
        %v1458 = vrsqrt.pop %v1457
        %v1459 = vmul.f32 %v1457, %v1458
        %vm1460 = vcmp.eq.f32.partialorder %v1457, inf
        %v1461 = vsel %vm1460, %v1457, %v1459
        %vm1462 = vcmp.eq.f32.partialorder %v1457, 0.0
        %v1463 = vand.u32 %v1457, 2147483648
        %v1464 = vsel %vm1462, %v1463, %v1461
        %v1465 = vadd.f32 %v1464, 1e-06
        %v1466 = vrcp.pop %v1465
        %v1467 = vmul.f32 1.0, %v1466
        %v1468 = vmul.f32 %v1449, %v1467
        %v1469 = vmul.f32 %v1468, 20.0
        %v1470 = vpack.c.bf16 %v1469, %v1469
        %v1472 = vsel %vm298, %v1470, 0
        %1474 = vmatprep.subr.bf16.mxu0 %v291
        %1475 = vmatpush1.bf16.msra.mxu0 %v290
        %1476 = vmatprep.subr.bf16.mxu0 %v293
        %1477 = vmatpush1.bf16.msra.mxu0 %v292
        %1478 = vmatprep.subr.bf16.mxu0 0
        %1479 = vmatpush1.bf16.msra.mxu0 0
        %1480 = vmatprep.subr.bf16.mxu0 0
        %1481 = vmatpush1.bf16.msra.mxu0 0
        %1482 = vmatprep.subr.bf16.mxu0 0
        %1483 = vmatpush1.bf16.msra.mxu0 0
        %1484 = vmatprep.subr.bf16.mxu0 0
        %1485 = vmatpush1.bf16.msra.mxu0 0
        %1486 = vmatprep.subr.bf16.mxu0 0
        %1487 = vmatpush1.bf16.msra.mxu0 0
        %1488 = vmatprep.subr.bf16.mxu0 0
        %1489 = vmatpush1.bf16.msra.mxu0 0
        %1490 = vmatprep.subr.bf16.mxu0 0
        %1491 = vmatpush1.bf16.msra.mxu0 0
        %1492 = vmatprep.subr.bf16.mxu0 0
        %1493 = vmatpush1.bf16.msra.mxu0 0
        %1494 = vmatprep.subr.bf16.mxu0 0
        %1495 = vmatpush1.bf16.msra.mxu0 0
        %1496 = vmatprep.subr.bf16.mxu0 0
        %1497 = vmatpush1.bf16.msra.mxu0 0
        %1498 = vmatprep.subr.bf16.mxu0 0
        %1499 = vmatpush1.bf16.msra.mxu0 0
        %1500 = vmatprep.subr.bf16.mxu0 0
        %1501 = vmatpush1.bf16.msra.mxu0 0
        %1502 = vmatprep.subr.bf16.mxu0 0
        %1503 = vmatpush1.bf16.msra.mxu0 0
        %1504 = vmatprep.subr.bf16.mxu0 0
        %1505 = vmatpush1.bf16.msra.mxu0 0
        %1506 = vmatprep.mubr.bf16.mxu0 0
        %1507 = vmatmul.mubr.bf16.gmra.mrb[0].mxu0 %v1472
        %v1508 = vpop.f32.mrb[0].mxu0
        %v1509 = vadd.f32 0.0, %v1508
        %v1510 = vpop.f32.mrb[0].mxu0
        %v1511 = vadd.f32 0.0, %v1510
        %v1512 = vpop.f32.mrb[0].mxu0
        %v1513 = vpop.f32.mrb[0].mxu0
        %1514 = vdwg.mxu0
        %v1515 = vmul.f32 %v1509, %v273
        %v1516 = vmul.f32 %v1511, %v274
        %v1517 = vsel %vm250, %v1515, -inf
        %v1518 = vsel %vm250, %v1516, -inf
        %v1519 = vsel %vm347, %v1517, -inf
        %v1520 = vrot.slane %v1519, 4
        %v1521 = vmax.f32 %v1519, %v1520
        %v1522 = vrot.slane %v1521, 2
        %v1523 = vmax.f32 %v1521, %v1522
        %v1524 = vrot.slane %v1523, 1
        %v1525 = vmax.f32 %v1523, %v1524
        %v1526 = vsel %vm347, %v1518, -inf
        %v1527 = vrot.slane %v1526, 4
        %v1528 = vmax.f32 %v1526, %v1527
        %v1529 = vrot.slane %v1528, 2
        %v1530 = vmax.f32 %v1528, %v1529
        %v1531 = vrot.slane %v1530, 1
        %v1532 = vmax.f32 %v1530, %v1531
        %v1533 = vsel %vm250, -inf, %v1515
        %v1534 = vsel %vm250, -inf, %v1516
        %v1535 = vsel %vm347, %v1533, -inf
        %v1536 = vrot.slane %v1535, 4
        %v1537 = vmax.f32 %v1535, %v1536
        %v1538 = vrot.slane %v1537, 2
        %v1539 = vmax.f32 %v1537, %v1538
        %v1540 = vrot.slane %v1539, 1
        %v1541 = vmax.f32 %v1539, %v1540
        %v1542 = vsel %vm347, %v1534, -inf
        %v1543 = vrot.slane %v1542, 4
        %v1544 = vmax.f32 %v1542, %v1543
        %v1545 = vrot.slane %v1544, 2
        %v1546 = vmax.f32 %v1544, %v1545
        %v1547 = vrot.slane %v1546, 1
        %v1548 = vmax.f32 %v1546, %v1547
        %v1549 = vsel %vm250, %v1525, %v1541
        %v1550 = vsel %vm250, %v1532, %v1548
        %v1551 = vsub.f32 %v1515, %v1549
        %v1552 = vsub.f32 %v1516, %v1550
        %v1553 = vmul.f32 %v1551, 1.442695
        %v1554 = vpow.pop %v1553
        %v1555 = vmul.f32 %v1552, 1.442695
        %v1556 = vpow.pop %v1555
        %v1557 = vsel %vm250, %v1554, 0.0
        %v1558 = vsel %vm250, %v1556, 0.0
        %v1559 = vsel %vm347, %v1557, 0.0
        %v1560 = vrot.slane %v1559, 4
        %v1561 = vadd.f32 %v1559, %v1560
        %v1562 = vrot.slane %v1561, 2
        %v1563 = vadd.f32 %v1561, %v1562
        %v1564 = vrot.slane %v1563, 1
        %v1565 = vadd.f32 %v1563, %v1564
        %v1566 = vsel %vm347, %v1558, 0.0
        %v1567 = vrot.slane %v1566, 4
        %v1568 = vadd.f32 %v1566, %v1567
        %v1569 = vrot.slane %v1568, 2
        %v1570 = vadd.f32 %v1568, %v1569
        %v1571 = vrot.slane %v1570, 1
        %v1572 = vadd.f32 %v1570, %v1571
        %v1573 = vsel %vm347, %v1554, 0.0
        %v1574 = vrot.slane %v1573, 4
        %v1575 = vadd.f32 %v1573, %v1574
        %v1576 = vrot.slane %v1575, 2
        %v1577 = vadd.f32 %v1575, %v1576
        %v1578 = vrot.slane %v1577, 1
        %v1579 = vadd.f32 %v1577, %v1578
        %v1580 = vsel %vm347, %v1556, 0.0
        %v1581 = vrot.slane %v1580, 4
        %v1582 = vadd.f32 %v1580, %v1581
        %v1583 = vrot.slane %v1582, 2
        %v1584 = vadd.f32 %v1582, %v1583
        %v1585 = vrot.slane %v1584, 1
        %v1586 = vadd.f32 %v1584, %v1585
        %v1587 = vsub.f32 %v1579, %v1565
        %v1588 = vsub.f32 %v1586, %v1572
        %v1589 = vsel %vm250, %v1565, %v1587
        %v1590 = vsel %vm250, %v1572, %v1588
        %v1591 = vrcp.pop %v1589
        %v1592 = vrcp.pop %v1590
        %v1593 = vmul.f32 %v1554, %v1591
        %v1594 = vmul.f32 %v1556, %v1592
        %v1595 = vsel %vm347, %v1593, 0.0
        %v1596 = vsel %vm347, %v1594, 0.0
        %v1597 = vadd.f32 %v1595, %v1596
        %1598 = vadd.xlane.f32.xlu0 %v1597
        %v1599 = vpop.xlane.xlu0 %1598
        %v1600 = vadd.f32 %v1599, 1e-06
        %v1601 = vrcp.pop %v1600
        %v1602 = vmul.f32 1.0, %v1601
        %v1603 = vmul.f32 %v1593, %v1602
        %v1604 = vmul.f32 %v1594, %v1602
        %v1605 = vmul.f32 %v1603, %v273
        %v1606 = vmul.f32 %v1604, %v274
        %v1607 = vpack.c.bf16 %v1605, %v1605
        %v1608 = vpack.c.bf16 %v1606, %v1606
        %1609 = vmatprep.subr.bf16.mxu0 %v291
        %1610 = vmatpush1.bf16.xpose.msra.mxu0 %v290
        %1611 = vmatprep.subr.bf16.mxu0 %v293
        %1612 = vmatpush1.bf16.xpose.msra.mxu0 %v292
        %1613 = vmatprep.subr.bf16.mxu0 0
        %1614 = vmatpush1.bf16.xpose.msra.mxu0 0
        %1615 = vmatprep.subr.bf16.mxu0 0
        %1616 = vmatpush1.bf16.xpose.msra.mxu0 0
        %1617 = vmatprep.subr.bf16.mxu0 0
        %1618 = vmatpush1.bf16.xpose.msra.mxu0 0
        %1619 = vmatprep.subr.bf16.mxu0 0
        %1620 = vmatpush1.bf16.xpose.msra.mxu0 0
        %1621 = vmatprep.subr.bf16.mxu0 0
        %1622 = vmatpush1.bf16.xpose.msra.mxu0 0
        %1623 = vmatprep.subr.bf16.mxu0 0
        %1624 = vmatpush1.bf16.xpose.msra.mxu0 0
        %1625 = vmatprep.subr.bf16.mxu0 0
        %1626 = vmatpush1.bf16.xpose.msra.mxu0 0
        %1627 = vmatprep.subr.bf16.mxu0 0
        %1628 = vmatpush1.bf16.xpose.msra.mxu0 0
        %1629 = vmatprep.subr.bf16.mxu0 0
        %1630 = vmatpush1.bf16.xpose.msra.mxu0 0
        %1631 = vmatprep.subr.bf16.mxu0 0
        %1632 = vmatpush1.bf16.xpose.msra.mxu0 0
        %1633 = vmatprep.subr.bf16.mxu0 0
        %1634 = vmatpush1.bf16.xpose.msra.mxu0 0
        %1635 = vmatprep.subr.bf16.mxu0 0
        %1636 = vmatpush1.bf16.xpose.msra.mxu0 0
        %1637 = vmatprep.subr.bf16.mxu0 0
        %1638 = vmatpush1.bf16.xpose.msra.mxu0 0
        %1639 = vmatprep.subr.bf16.mxu0 0
        %1640 = vmatpush1.bf16.xpose.msra.mxu0 0
        %1641 = vmatprep.mubr.bf16.mxu0 %v1608
        %1642 = vmatmul.mubr.bf16.gmra.mrb[0].mxu0 %v1607
        %v1643 = vpop.f32.mrb[0].mxu0
        %v1644 = vadd.f32 0.0, %v1643
        %v1645 = vpop.f32.mrb[0].mxu0
        %v1646 = vpop.f32.mrb[0].mxu0
        %v1647 = vpop.f32.mrb[0].mxu0
        %1648 = vdwg.mxu0
        %v1649 = vmul.f32 %v1644, %v1644
        %v1650 = vsel %vm479, %v1649, 0.0
        %1651 = vadd.xlane.f32.xlu0 %v1650
        %v1652 = vpop.xlane.xlu0 %1651
        %v1653 = vrsqrt.pop %v1652
        %v1654 = vmul.f32 %v1652, %v1653
        %vm1655 = vcmp.eq.f32.partialorder %v1652, inf
        %v1656 = vsel %vm1655, %v1652, %v1654
        %vm1657 = vcmp.eq.f32.partialorder %v1652, 0.0
        %v1658 = vand.u32 %v1652, 2147483648
        %v1659 = vsel %vm1657, %v1658, %v1656
        %v1660 = vadd.f32 %v1659, 1e-06
        %v1661 = vrcp.pop %v1660
        %v1662 = vmul.f32 1.0, %v1661
        %v1663 = vmul.f32 %v1644, %v1662
        %v1664 = vmul.f32 %v1663, 20.0
        %v1665 = vpack.c.bf16 %v1664, %v1664
        %v1667 = vsel %vm298, %v1665, 0
        %1669 = vmatprep.subr.bf16.mxu0 %v291
        %1670 = vmatpush1.bf16.msra.mxu0 %v290
        %1671 = vmatprep.subr.bf16.mxu0 %v293
        %1672 = vmatpush1.bf16.msra.mxu0 %v292
        %1673 = vmatprep.subr.bf16.mxu0 0
        %1674 = vmatpush1.bf16.msra.mxu0 0
        %1675 = vmatprep.subr.bf16.mxu0 0
        %1676 = vmatpush1.bf16.msra.mxu0 0
        %1677 = vmatprep.subr.bf16.mxu0 0
        %1678 = vmatpush1.bf16.msra.mxu0 0
        %1679 = vmatprep.subr.bf16.mxu0 0
        %1680 = vmatpush1.bf16.msra.mxu0 0
        %1681 = vmatprep.subr.bf16.mxu0 0
        %1682 = vmatpush1.bf16.msra.mxu0 0
        %1683 = vmatprep.subr.bf16.mxu0 0
        %1684 = vmatpush1.bf16.msra.mxu0 0
        %1685 = vmatprep.subr.bf16.mxu0 0
        %1686 = vmatpush1.bf16.msra.mxu0 0
        %1687 = vmatprep.subr.bf16.mxu0 0
        %1688 = vmatpush1.bf16.msra.mxu0 0
        %1689 = vmatprep.subr.bf16.mxu0 0
        %1690 = vmatpush1.bf16.msra.mxu0 0
        %1691 = vmatprep.subr.bf16.mxu0 0
        %1692 = vmatpush1.bf16.msra.mxu0 0
        %1693 = vmatprep.subr.bf16.mxu0 0
        %1694 = vmatpush1.bf16.msra.mxu0 0
        %1695 = vmatprep.subr.bf16.mxu0 0
        %1696 = vmatpush1.bf16.msra.mxu0 0
        %1697 = vmatprep.subr.bf16.mxu0 0
        %1698 = vmatpush1.bf16.msra.mxu0 0
        %1699 = vmatprep.subr.bf16.mxu0 0
        %1700 = vmatpush1.bf16.msra.mxu0 0
        %1701 = vmatprep.mubr.bf16.mxu0 0
        %1702 = vmatmul.mubr.bf16.gmra.mrb[0].mxu0 %v1667
        %v1703 = vpop.f32.mrb[0].mxu0
        %v1704 = vadd.f32 0.0, %v1703
        %v1705 = vpop.f32.mrb[0].mxu0
        %v1706 = vadd.f32 0.0, %v1705
        %v1707 = vpop.f32.mrb[0].mxu0
        %v1708 = vpop.f32.mrb[0].mxu0
        %1709 = vdwg.mxu0
        %v1710 = vmul.f32 %v1704, %v273
        %v1711 = vmul.f32 %v1706, %v274
        %v1712 = vsel %vm250, %v1710, -inf
        %v1713 = vsel %vm250, %v1711, -inf
        %v1714 = vsel %vm347, %v1712, -inf
        %v1715 = vrot.slane %v1714, 4
        %v1716 = vmax.f32 %v1714, %v1715
        %v1717 = vrot.slane %v1716, 2
        %v1718 = vmax.f32 %v1716, %v1717
        %v1719 = vrot.slane %v1718, 1
        %v1720 = vmax.f32 %v1718, %v1719
        %v1721 = vsel %vm347, %v1713, -inf
        %v1722 = vrot.slane %v1721, 4
        %v1723 = vmax.f32 %v1721, %v1722
        %v1724 = vrot.slane %v1723, 2
        %v1725 = vmax.f32 %v1723, %v1724
        %v1726 = vrot.slane %v1725, 1
        %v1727 = vmax.f32 %v1725, %v1726
        %v1728 = vsel %vm250, -inf, %v1710
        %v1729 = vsel %vm250, -inf, %v1711
        %v1730 = vsel %vm347, %v1728, -inf
        %v1731 = vrot.slane %v1730, 4
        %v1732 = vmax.f32 %v1730, %v1731
        %v1733 = vrot.slane %v1732, 2
        %v1734 = vmax.f32 %v1732, %v1733
        %v1735 = vrot.slane %v1734, 1
        %v1736 = vmax.f32 %v1734, %v1735
        %v1737 = vsel %vm347, %v1729, -inf
        %v1738 = vrot.slane %v1737, 4
        %v1739 = vmax.f32 %v1737, %v1738
        %v1740 = vrot.slane %v1739, 2
        %v1741 = vmax.f32 %v1739, %v1740
        %v1742 = vrot.slane %v1741, 1
        %v1743 = vmax.f32 %v1741, %v1742
        %v1744 = vsel %vm250, %v1720, %v1736
        %v1745 = vsel %vm250, %v1727, %v1743
        %v1746 = vsub.f32 %v1710, %v1744
        %v1747 = vsub.f32 %v1711, %v1745
        %v1748 = vmul.f32 %v1746, 1.442695
        %v1749 = vpow.pop %v1748
        %v1750 = vmul.f32 %v1747, 1.442695
        %v1751 = vpow.pop %v1750
        %v1752 = vsel %vm250, %v1749, 0.0
        %v1753 = vsel %vm250, %v1751, 0.0
        %v1754 = vsel %vm347, %v1752, 0.0
        %v1755 = vrot.slane %v1754, 4
        %v1756 = vadd.f32 %v1754, %v1755
        %v1757 = vrot.slane %v1756, 2
        %v1758 = vadd.f32 %v1756, %v1757
        %v1759 = vrot.slane %v1758, 1
        %v1760 = vadd.f32 %v1758, %v1759
        %v1761 = vsel %vm347, %v1753, 0.0
        %v1762 = vrot.slane %v1761, 4
        %v1763 = vadd.f32 %v1761, %v1762
        %v1764 = vrot.slane %v1763, 2
        %v1765 = vadd.f32 %v1763, %v1764
        %v1766 = vrot.slane %v1765, 1
        %v1767 = vadd.f32 %v1765, %v1766
        %v1768 = vsel %vm347, %v1749, 0.0
        %v1769 = vrot.slane %v1768, 4
        %v1770 = vadd.f32 %v1768, %v1769
        %v1771 = vrot.slane %v1770, 2
        %v1772 = vadd.f32 %v1770, %v1771
        %v1773 = vrot.slane %v1772, 1
        %v1774 = vadd.f32 %v1772, %v1773
        %v1775 = vsel %vm347, %v1751, 0.0
        %v1776 = vrot.slane %v1775, 4
        %v1777 = vadd.f32 %v1775, %v1776
        %v1778 = vrot.slane %v1777, 2
        %v1779 = vadd.f32 %v1777, %v1778
        %v1780 = vrot.slane %v1779, 1
        %v1781 = vadd.f32 %v1779, %v1780
        %v1782 = vsub.f32 %v1774, %v1760
        %v1783 = vsub.f32 %v1781, %v1767
        %v1784 = vsel %vm250, %v1760, %v1782
        %v1785 = vsel %vm250, %v1767, %v1783
        %v1786 = vrcp.pop %v1784
        %v1787 = vrcp.pop %v1785
        %v1788 = vmul.f32 %v1749, %v1786
        %v1789 = vmul.f32 %v1751, %v1787
        %v1790 = vsel %vm347, %v1788, 0.0
        %v1791 = vsel %vm347, %v1789, 0.0
        %v1792 = vadd.f32 %v1790, %v1791
        %1793 = vadd.xlane.f32.xlu0 %v1792
        %v1794 = vpop.xlane.xlu0 %1793
        %v1795 = vadd.f32 %v1794, 1e-06
        %v1796 = vrcp.pop %v1795
        %v1797 = vmul.f32 1.0, %v1796
        %v1798 = vmul.f32 %v1788, %v1797
        %v1799 = vmul.f32 %v1789, %v1797
        %v1800 = vmul.f32 %v1798, %v273
        %v1801 = vmul.f32 %v1799, %v274
        %v1802 = vpack.c.bf16 %v1800, %v1800
        %v1803 = vpack.c.bf16 %v1801, %v1801
        %1804 = vmatprep.subr.bf16.mxu0 %v291
        %1805 = vmatpush1.bf16.xpose.msra.mxu0 %v290
        %1806 = vmatprep.subr.bf16.mxu0 %v293
        %1807 = vmatpush1.bf16.xpose.msra.mxu0 %v292
        %1808 = vmatprep.subr.bf16.mxu0 0
        %1809 = vmatpush1.bf16.xpose.msra.mxu0 0
        %1810 = vmatprep.subr.bf16.mxu0 0
        %1811 = vmatpush1.bf16.xpose.msra.mxu0 0
        %1812 = vmatprep.subr.bf16.mxu0 0
        %1813 = vmatpush1.bf16.xpose.msra.mxu0 0
        %1814 = vmatprep.subr.bf16.mxu0 0
        %1815 = vmatpush1.bf16.xpose.msra.mxu0 0
        %1816 = vmatprep.subr.bf16.mxu0 0
        %1817 = vmatpush1.bf16.xpose.msra.mxu0 0
        %1818 = vmatprep.subr.bf16.mxu0 0
        %1819 = vmatpush1.bf16.xpose.msra.mxu0 0
        %1820 = vmatprep.subr.bf16.mxu0 0
        %1821 = vmatpush1.bf16.xpose.msra.mxu0 0
        %1822 = vmatprep.subr.bf16.mxu0 0
        %1823 = vmatpush1.bf16.xpose.msra.mxu0 0
        %1824 = vmatprep.subr.bf16.mxu0 0
        %1825 = vmatpush1.bf16.xpose.msra.mxu0 0
        %1826 = vmatprep.subr.bf16.mxu0 0
        %1827 = vmatpush1.bf16.xpose.msra.mxu0 0
        %1828 = vmatprep.subr.bf16.mxu0 0
        %1829 = vmatpush1.bf16.xpose.msra.mxu0 0
        %1830 = vmatprep.subr.bf16.mxu0 0
        %1831 = vmatpush1.bf16.xpose.msra.mxu0 0
        %1832 = vmatprep.subr.bf16.mxu0 0
        %1833 = vmatpush1.bf16.xpose.msra.mxu0 0
        %1834 = vmatprep.subr.bf16.mxu0 0
        %1835 = vmatpush1.bf16.xpose.msra.mxu0 0
        %1836 = vmatprep.mubr.bf16.mxu0 %v1803
        %1837 = vmatmul.mubr.bf16.gmra.mrb[0].mxu0 %v1802
        %v1838 = vpop.f32.mrb[0].mxu0
        %v1839 = vadd.f32 0.0, %v1838
        %v1840 = vpop.f32.mrb[0].mxu0
        %v1841 = vpop.f32.mrb[0].mxu0
        %v1842 = vpop.f32.mrb[0].mxu0
        %1843 = vdwg.mxu0
        %v1844 = vmul.f32 %v1839, %v1839
        %v1845 = vsel %vm479, %v1844, 0.0
        %1846 = vadd.xlane.f32.xlu0 %v1845
        %v1847 = vpop.xlane.xlu0 %1846
        %v1848 = vrsqrt.pop %v1847
        %v1849 = vmul.f32 %v1847, %v1848
        %vm1850 = vcmp.eq.f32.partialorder %v1847, inf
        %v1851 = vsel %vm1850, %v1847, %v1849
        %vm1852 = vcmp.eq.f32.partialorder %v1847, 0.0
        %v1853 = vand.u32 %v1847, 2147483648
        %v1854 = vsel %vm1852, %v1853, %v1851
        %v1855 = vadd.f32 %v1854, 1e-06
        %v1856 = vrcp.pop %v1855
        %v1857 = vmul.f32 1.0, %v1856
        %v1858 = vmul.f32 %v1839, %v1857
        %v1859 = vmul.f32 %v1858, 20.0
        %v1860 = vpack.c.bf16 %v1859, %v1859
        %v1862 = vsel %vm298, %v1860, 0
        %1864 = vmatprep.subr.bf16.mxu0 %v291
        %1865 = vmatpush1.bf16.msra.mxu0 %v290
        %1866 = vmatprep.subr.bf16.mxu0 %v293
        %1867 = vmatpush1.bf16.msra.mxu0 %v292
        %1868 = vmatprep.subr.bf16.mxu0 0
        %1869 = vmatpush1.bf16.msra.mxu0 0
        %1870 = vmatprep.subr.bf16.mxu0 0
        %1871 = vmatpush1.bf16.msra.mxu0 0
        %1872 = vmatprep.subr.bf16.mxu0 0
        %1873 = vmatpush1.bf16.msra.mxu0 0
        %1874 = vmatprep.subr.bf16.mxu0 0
        %1875 = vmatpush1.bf16.msra.mxu0 0
        %1876 = vmatprep.subr.bf16.mxu0 0
        %1877 = vmatpush1.bf16.msra.mxu0 0
        %1878 = vmatprep.subr.bf16.mxu0 0
        %1879 = vmatpush1.bf16.msra.mxu0 0
        %1880 = vmatprep.subr.bf16.mxu0 0
        %1881 = vmatpush1.bf16.msra.mxu0 0
        %1882 = vmatprep.subr.bf16.mxu0 0
        %1883 = vmatpush1.bf16.msra.mxu0 0
        %1884 = vmatprep.subr.bf16.mxu0 0
        %1885 = vmatpush1.bf16.msra.mxu0 0
        %1886 = vmatprep.subr.bf16.mxu0 0
        %1887 = vmatpush1.bf16.msra.mxu0 0
        %1888 = vmatprep.subr.bf16.mxu0 0
        %1889 = vmatpush1.bf16.msra.mxu0 0
        %1890 = vmatprep.subr.bf16.mxu0 0
        %1891 = vmatpush1.bf16.msra.mxu0 0
        %1892 = vmatprep.subr.bf16.mxu0 0
        %1893 = vmatpush1.bf16.msra.mxu0 0
        %1894 = vmatprep.subr.bf16.mxu0 0
        %1895 = vmatpush1.bf16.msra.mxu0 0
        %1896 = vmatprep.mubr.bf16.mxu0 0
        %1897 = vmatmul.mubr.bf16.gmra.mrb[0].mxu0 %v1862
        %v1898 = vpop.f32.mrb[0].mxu0
        %v1899 = vadd.f32 0.0, %v1898
        %v1900 = vpop.f32.mrb[0].mxu0
        %v1901 = vadd.f32 0.0, %v1900
        %v1902 = vpop.f32.mrb[0].mxu0
        %v1903 = vpop.f32.mrb[0].mxu0
        %1904 = vdwg.mxu0
        %v1905 = vmul.f32 %v1899, %v273
        %v1906 = vmul.f32 %v1901, %v274
        %v1907 = vsel %vm250, %v1905, -inf
        %v1908 = vsel %vm250, %v1906, -inf
        %v1909 = vsel %vm347, %v1907, -inf
        %v1910 = vrot.slane %v1909, 4
        %v1911 = vmax.f32 %v1909, %v1910
        %v1912 = vrot.slane %v1911, 2
        %v1913 = vmax.f32 %v1911, %v1912
        %v1914 = vrot.slane %v1913, 1
        %v1915 = vmax.f32 %v1913, %v1914
        %v1916 = vsel %vm347, %v1908, -inf
        %v1917 = vrot.slane %v1916, 4
        %v1918 = vmax.f32 %v1916, %v1917
        %v1919 = vrot.slane %v1918, 2
        %v1920 = vmax.f32 %v1918, %v1919
        %v1921 = vrot.slane %v1920, 1
        %v1922 = vmax.f32 %v1920, %v1921
        %v1923 = vsel %vm250, -inf, %v1905
        %v1924 = vsel %vm250, -inf, %v1906
        %v1925 = vsel %vm347, %v1923, -inf
        %v1926 = vrot.slane %v1925, 4
        %v1927 = vmax.f32 %v1925, %v1926
        %v1928 = vrot.slane %v1927, 2
        %v1929 = vmax.f32 %v1927, %v1928
        %v1930 = vrot.slane %v1929, 1
        %v1931 = vmax.f32 %v1929, %v1930
        %v1932 = vsel %vm347, %v1924, -inf
        %v1933 = vrot.slane %v1932, 4
        %v1934 = vmax.f32 %v1932, %v1933
        %v1935 = vrot.slane %v1934, 2
        %v1936 = vmax.f32 %v1934, %v1935
        %v1937 = vrot.slane %v1936, 1
        %v1938 = vmax.f32 %v1936, %v1937
        %v1939 = vsel %vm250, %v1915, %v1931
        %v1940 = vsel %vm250, %v1922, %v1938
        %v1941 = vsub.f32 %v1905, %v1939
        %v1942 = vsub.f32 %v1906, %v1940
        %v1943 = vmul.f32 %v1941, 1.442695
        %v1944 = vpow.pop %v1943
        %v1945 = vmul.f32 %v1942, 1.442695
        %v1946 = vpow.pop %v1945
        %v1947 = vsel %vm250, %v1944, 0.0
        %v1948 = vsel %vm250, %v1946, 0.0
        %v1949 = vsel %vm347, %v1947, 0.0
        %v1950 = vrot.slane %v1949, 4
        %v1951 = vadd.f32 %v1949, %v1950
        %v1952 = vrot.slane %v1951, 2
        %v1953 = vadd.f32 %v1951, %v1952
        %v1954 = vrot.slane %v1953, 1
        %v1955 = vadd.f32 %v1953, %v1954
        %v1956 = vsel %vm347, %v1948, 0.0
        %v1957 = vrot.slane %v1956, 4
        %v1958 = vadd.f32 %v1956, %v1957
        %v1959 = vrot.slane %v1958, 2
        %v1960 = vadd.f32 %v1958, %v1959
        %v1961 = vrot.slane %v1960, 1
        %v1962 = vadd.f32 %v1960, %v1961
        %v1963 = vsel %vm347, %v1944, 0.0
        %v1964 = vrot.slane %v1963, 4
        %v1965 = vadd.f32 %v1963, %v1964
        %v1966 = vrot.slane %v1965, 2
        %v1967 = vadd.f32 %v1965, %v1966
        %v1968 = vrot.slane %v1967, 1
        %v1969 = vadd.f32 %v1967, %v1968
        %v1970 = vsel %vm347, %v1946, 0.0
        %v1971 = vrot.slane %v1970, 4
        %v1972 = vadd.f32 %v1970, %v1971
        %v1973 = vrot.slane %v1972, 2
        %v1974 = vadd.f32 %v1972, %v1973
        %v1975 = vrot.slane %v1974, 1
        %v1976 = vadd.f32 %v1974, %v1975
        %v1977 = vsub.f32 %v1969, %v1955
        %v1978 = vsub.f32 %v1976, %v1962
        %v1979 = vsel %vm250, %v1955, %v1977
        %v1980 = vsel %vm250, %v1962, %v1978
        %v1981 = vrcp.pop %v1979
        %v1982 = vrcp.pop %v1980
        %v1983 = vmul.f32 %v1944, %v1981
        %v1984 = vmul.f32 %v1946, %v1982
        %v1985 = vsel %vm347, %v1983, 0.0
        %v1986 = vsel %vm347, %v1984, 0.0
        %v1987 = vadd.f32 %v1985, %v1986
        %1988 = vadd.xlane.f32.xlu0 %v1987
        %v1989 = vpop.xlane.xlu0 %1988
        %v1990 = vadd.f32 %v1989, 1e-06
        %v1991 = vrcp.pop %v1990
        %v1992 = vmul.f32 1.0, %v1991
        %v1993 = vmul.f32 %v1983, %v1992
        %v1994 = vmul.f32 %v1984, %v1992
        %v1995 = vmul.f32 %v1993, %v273
        %v1996 = vmul.f32 %v1994, %v274
        %v1997 = vpack.c.bf16 %v1995, %v1995
        %v1998 = vpack.c.bf16 %v1996, %v1996
        %1999 = vmatprep.subr.bf16.mxu0 %v291
        %2000 = vmatpush1.bf16.xpose.msra.mxu0 %v290
        %2001 = vmatprep.subr.bf16.mxu0 %v293
        %2002 = vmatpush1.bf16.xpose.msra.mxu0 %v292
        %2003 = vmatprep.subr.bf16.mxu0 0
        %2004 = vmatpush1.bf16.xpose.msra.mxu0 0
        %2005 = vmatprep.subr.bf16.mxu0 0
        %2006 = vmatpush1.bf16.xpose.msra.mxu0 0
        %2007 = vmatprep.subr.bf16.mxu0 0
        %2008 = vmatpush1.bf16.xpose.msra.mxu0 0
        %2009 = vmatprep.subr.bf16.mxu0 0
        %2010 = vmatpush1.bf16.xpose.msra.mxu0 0
        %2011 = vmatprep.subr.bf16.mxu0 0
        %2012 = vmatpush1.bf16.xpose.msra.mxu0 0
        %2013 = vmatprep.subr.bf16.mxu0 0
        %2014 = vmatpush1.bf16.xpose.msra.mxu0 0
        %2015 = vmatprep.subr.bf16.mxu0 0
        %2016 = vmatpush1.bf16.xpose.msra.mxu0 0
        %2017 = vmatprep.subr.bf16.mxu0 0
        %2018 = vmatpush1.bf16.xpose.msra.mxu0 0
        %2019 = vmatprep.subr.bf16.mxu0 0
        %2020 = vmatpush1.bf16.xpose.msra.mxu0 0
        %2021 = vmatprep.subr.bf16.mxu0 0
        %2022 = vmatpush1.bf16.xpose.msra.mxu0 0
        %2023 = vmatprep.subr.bf16.mxu0 0
        %2024 = vmatpush1.bf16.xpose.msra.mxu0 0
        %2025 = vmatprep.subr.bf16.mxu0 0
        %2026 = vmatpush1.bf16.xpose.msra.mxu0 0
        %2027 = vmatprep.subr.bf16.mxu0 0
        %2028 = vmatpush1.bf16.xpose.msra.mxu0 0
        %2029 = vmatprep.subr.bf16.mxu0 0
        %2030 = vmatpush1.bf16.xpose.msra.mxu0 0
        %2031 = vmatprep.mubr.bf16.mxu0 %v1998
        %2032 = vmatmul.mubr.bf16.gmra.mrb[0].mxu0 %v1997
        %v2033 = vpop.f32.mrb[0].mxu0
        %v2034 = vadd.f32 0.0, %v2033
        %v2035 = vpop.f32.mrb[0].mxu0
        %v2036 = vpop.f32.mrb[0].mxu0
        %v2037 = vpop.f32.mrb[0].mxu0
        %2038 = vdwg.mxu0
        %v2039 = vmul.f32 %v2034, %v2034
        %v2040 = vsel %vm479, %v2039, 0.0
        %2041 = vadd.xlane.f32.xlu0 %v2040
        %v2042 = vpop.xlane.xlu0 %2041
        %v2043 = vrsqrt.pop %v2042
        %v2044 = vmul.f32 %v2042, %v2043
        %vm2045 = vcmp.eq.f32.partialorder %v2042, inf
        %v2046 = vsel %vm2045, %v2042, %v2044
        %vm2047 = vcmp.eq.f32.partialorder %v2042, 0.0
        %v2048 = vand.u32 %v2042, 2147483648
        %v2049 = vsel %vm2047, %v2048, %v2046
        %v2050 = vadd.f32 %v2049, 1e-06
        %v2051 = vrcp.pop %v2050
        %v2052 = vmul.f32 1.0, %v2051
        %v2053 = vmul.f32 %v2034, %v2052
        %v2054 = vmul.f32 %v2053, 20.0
        %v2055 = vpack.c.bf16 %v2054, %v2054
        %v2057 = vsel %vm298, %v2055, 0
        %2059 = vmatprep.subr.bf16.mxu0 %v291
        %2060 = vmatpush1.bf16.msra.mxu0 %v290
        %2061 = vmatprep.subr.bf16.mxu0 %v293
        %2062 = vmatpush1.bf16.msra.mxu0 %v292
        %2063 = vmatprep.subr.bf16.mxu0 0
        %2064 = vmatpush1.bf16.msra.mxu0 0
        %2065 = vmatprep.subr.bf16.mxu0 0
        %2066 = vmatpush1.bf16.msra.mxu0 0
        %2067 = vmatprep.subr.bf16.mxu0 0
        %2068 = vmatpush1.bf16.msra.mxu0 0
        %2069 = vmatprep.subr.bf16.mxu0 0
        %2070 = vmatpush1.bf16.msra.mxu0 0
        %2071 = vmatprep.subr.bf16.mxu0 0
        %2072 = vmatpush1.bf16.msra.mxu0 0
        %2073 = vmatprep.subr.bf16.mxu0 0
        %2074 = vmatpush1.bf16.msra.mxu0 0
        %2075 = vmatprep.subr.bf16.mxu0 0
        %2076 = vmatpush1.bf16.msra.mxu0 0
        %2077 = vmatprep.subr.bf16.mxu0 0
        %2078 = vmatpush1.bf16.msra.mxu0 0
        %2079 = vmatprep.subr.bf16.mxu0 0
        %2080 = vmatpush1.bf16.msra.mxu0 0
        %2081 = vmatprep.subr.bf16.mxu0 0
        %2082 = vmatpush1.bf16.msra.mxu0 0
        %2083 = vmatprep.subr.bf16.mxu0 0
        %2084 = vmatpush1.bf16.msra.mxu0 0
        %2085 = vmatprep.subr.bf16.mxu0 0
        %2086 = vmatpush1.bf16.msra.mxu0 0
        %2087 = vmatprep.subr.bf16.mxu0 0
        %2088 = vmatpush1.bf16.msra.mxu0 0
        %2089 = vmatprep.subr.bf16.mxu0 0
        %2090 = vmatpush1.bf16.msra.mxu0 0
        %2091 = vmatprep.mubr.bf16.mxu0 0
        %2092 = vmatmul.mubr.bf16.gmra.mrb[0].mxu0 %v2057
        %v2093 = vpop.f32.mrb[0].mxu0
        %v2094 = vadd.f32 0.0, %v2093
        %v2095 = vpop.f32.mrb[0].mxu0
        %v2096 = vadd.f32 0.0, %v2095
        %v2097 = vpop.f32.mrb[0].mxu0
        %v2098 = vpop.f32.mrb[0].mxu0
        %2099 = vdwg.mxu0
        %v2100 = vmul.f32 %v2094, %v273
        %v2101 = vmul.f32 %v2096, %v274
        %v2102 = vsel %vm250, %v2100, -inf
        %v2103 = vsel %vm250, %v2101, -inf
        %v2104 = vsel %vm347, %v2102, -inf
        %v2105 = vrot.slane %v2104, 4
        %v2106 = vmax.f32 %v2104, %v2105
        %v2107 = vrot.slane %v2106, 2
        %v2108 = vmax.f32 %v2106, %v2107
        %v2109 = vrot.slane %v2108, 1
        %v2110 = vmax.f32 %v2108, %v2109
        %v2111 = vsel %vm347, %v2103, -inf
        %v2112 = vrot.slane %v2111, 4
        %v2113 = vmax.f32 %v2111, %v2112
        %v2114 = vrot.slane %v2113, 2
        %v2115 = vmax.f32 %v2113, %v2114
        %v2116 = vrot.slane %v2115, 1
        %v2117 = vmax.f32 %v2115, %v2116
        %v2118 = vsel %vm250, -inf, %v2100
        %v2119 = vsel %vm250, -inf, %v2101
        %v2120 = vsel %vm347, %v2118, -inf
        %v2121 = vrot.slane %v2120, 4
        %v2122 = vmax.f32 %v2120, %v2121
        %v2123 = vrot.slane %v2122, 2
        %v2124 = vmax.f32 %v2122, %v2123
        %v2125 = vrot.slane %v2124, 1
        %v2126 = vmax.f32 %v2124, %v2125
        %v2127 = vsel %vm347, %v2119, -inf
        %v2128 = vrot.slane %v2127, 4
        %v2129 = vmax.f32 %v2127, %v2128
        %v2130 = vrot.slane %v2129, 2
        %v2131 = vmax.f32 %v2129, %v2130
        %v2132 = vrot.slane %v2131, 1
        %v2133 = vmax.f32 %v2131, %v2132
        %v2134 = vsel %vm250, %v2110, %v2126
        %v2135 = vsel %vm250, %v2117, %v2133
        %v2136 = vsub.f32 %v2100, %v2134
        %v2137 = vsub.f32 %v2101, %v2135
        %v2138 = vmul.f32 %v2136, 1.442695
        %v2139 = vpow.pop %v2138
        %v2140 = vmul.f32 %v2137, 1.442695
        %v2141 = vpow.pop %v2140
        %v2142 = vsel %vm250, %v2139, 0.0
        %v2143 = vsel %vm250, %v2141, 0.0
        %v2144 = vsel %vm347, %v2142, 0.0
        %v2145 = vrot.slane %v2144, 4
        %v2146 = vadd.f32 %v2144, %v2145
        %v2147 = vrot.slane %v2146, 2
        %v2148 = vadd.f32 %v2146, %v2147
        %v2149 = vrot.slane %v2148, 1
        %v2150 = vadd.f32 %v2148, %v2149
        %v2151 = vsel %vm347, %v2143, 0.0
        %v2152 = vrot.slane %v2151, 4
        %v2153 = vadd.f32 %v2151, %v2152
        %v2154 = vrot.slane %v2153, 2
        %v2155 = vadd.f32 %v2153, %v2154
        %v2156 = vrot.slane %v2155, 1
        %v2157 = vadd.f32 %v2155, %v2156
        %v2158 = vsel %vm347, %v2139, 0.0
        %v2159 = vrot.slane %v2158, 4
        %v2160 = vadd.f32 %v2158, %v2159
        %v2161 = vrot.slane %v2160, 2
        %v2162 = vadd.f32 %v2160, %v2161
        %v2163 = vrot.slane %v2162, 1
        %v2164 = vadd.f32 %v2162, %v2163
        %v2165 = vsel %vm347, %v2141, 0.0
        %v2166 = vrot.slane %v2165, 4
        %v2167 = vadd.f32 %v2165, %v2166
        %v2168 = vrot.slane %v2167, 2
        %v2169 = vadd.f32 %v2167, %v2168
        %v2170 = vrot.slane %v2169, 1
        %v2171 = vadd.f32 %v2169, %v2170
        %v2172 = vsub.f32 %v2164, %v2150
        %v2173 = vsub.f32 %v2171, %v2157
        %v2174 = vsel %vm250, %v2150, %v2172
        %v2175 = vsel %vm250, %v2157, %v2173
        %v2176 = vrcp.pop %v2174
        %v2177 = vrcp.pop %v2175
        %v2178 = vmul.f32 %v2139, %v2176
        %v2179 = vmul.f32 %v2141, %v2177
        %v2180 = vsel %vm347, %v2178, 0.0
        %v2181 = vsel %vm347, %v2179, 0.0
        %v2182 = vadd.f32 %v2180, %v2181
        %2183 = vadd.xlane.f32.xlu0 %v2182
        %v2184 = vpop.xlane.xlu0 %2183
        %v2185 = vadd.f32 %v2184, 1e-06
        %v2186 = vrcp.pop %v2185
        %v2187 = vmul.f32 1.0, %v2186
        %v2188 = vmul.f32 %v2178, %v2187
        %v2189 = vmul.f32 %v2179, %v2187
        %v2190 = vmul.f32 %v2188, %v273
        %v2191 = vmul.f32 %v2189, %v274
        %v2192 = vpack.c.bf16 %v2190, %v2190
        %v2193 = vpack.c.bf16 %v2191, %v2191
        %2194 = vmatprep.subr.bf16.mxu0 %v291
        %2195 = vmatpush1.bf16.xpose.msra.mxu0 %v290
        %2196 = vmatprep.subr.bf16.mxu0 %v293
        %2197 = vmatpush1.bf16.xpose.msra.mxu0 %v292
        %2198 = vmatprep.subr.bf16.mxu0 0
        %2199 = vmatpush1.bf16.xpose.msra.mxu0 0
        %2200 = vmatprep.subr.bf16.mxu0 0
        %2201 = vmatpush1.bf16.xpose.msra.mxu0 0
        %2202 = vmatprep.subr.bf16.mxu0 0
        %2203 = vmatpush1.bf16.xpose.msra.mxu0 0
        %2204 = vmatprep.subr.bf16.mxu0 0
        %2205 = vmatpush1.bf16.xpose.msra.mxu0 0
        %2206 = vmatprep.subr.bf16.mxu0 0
        %2207 = vmatpush1.bf16.xpose.msra.mxu0 0
        %2208 = vmatprep.subr.bf16.mxu0 0
        %2209 = vmatpush1.bf16.xpose.msra.mxu0 0
        %2210 = vmatprep.subr.bf16.mxu0 0
        %2211 = vmatpush1.bf16.xpose.msra.mxu0 0
        %2212 = vmatprep.subr.bf16.mxu0 0
        %2213 = vmatpush1.bf16.xpose.msra.mxu0 0
        %2214 = vmatprep.subr.bf16.mxu0 0
        %2215 = vmatpush1.bf16.xpose.msra.mxu0 0
        %2216 = vmatprep.subr.bf16.mxu0 0
        %2217 = vmatpush1.bf16.xpose.msra.mxu0 0
        %2218 = vmatprep.subr.bf16.mxu0 0
        %2219 = vmatpush1.bf16.xpose.msra.mxu0 0
        %2220 = vmatprep.subr.bf16.mxu0 0
        %2221 = vmatpush1.bf16.xpose.msra.mxu0 0
        %2222 = vmatprep.subr.bf16.mxu0 0
        %2223 = vmatpush1.bf16.xpose.msra.mxu0 0
        %2224 = vmatprep.subr.bf16.mxu0 0
        %2225 = vmatpush1.bf16.xpose.msra.mxu0 0
        %2226 = vmatprep.mubr.bf16.mxu0 %v2193
        %2227 = vmatmul.mubr.bf16.gmra.mrb[0].mxu0 %v2192
        %v2228 = vpop.f32.mrb[0].mxu0
        %v2229 = vadd.f32 0.0, %v2228
        %v2230 = vpop.f32.mrb[0].mxu0
        %v2231 = vpop.f32.mrb[0].mxu0
        %v2232 = vpop.f32.mrb[0].mxu0
        %2233 = vdwg.mxu0
        %v2234 = vmul.f32 %v2229, %v2229
        %v2235 = vsel %vm479, %v2234, 0.0
        %2236 = vadd.xlane.f32.xlu0 %v2235
        %v2237 = vpop.xlane.xlu0 %2236
        %v2238 = vrsqrt.pop %v2237
        %v2239 = vmul.f32 %v2237, %v2238
        %vm2240 = vcmp.eq.f32.partialorder %v2237, inf
        %v2241 = vsel %vm2240, %v2237, %v2239
        %vm2242 = vcmp.eq.f32.partialorder %v2237, 0.0
        %v2243 = vand.u32 %v2237, 2147483648
        %v2244 = vsel %vm2242, %v2243, %v2241
        %v2245 = vadd.f32 %v2244, 1e-06
        %v2246 = vrcp.pop %v2245
        %v2247 = vmul.f32 1.0, %v2246
        %v2248 = vmul.f32 %v2229, %v2247
        %2249 = vst.msk [vmem:[%s238] sm:$0x3f] %vm479, %v2248
        %p2250 = scmp.lt.s32.totalorder %s20, 1
        %s2251 = scalar_select %p2250, %s20, 1
        %s2252 = smul.addr %s2251, 8
        %s2253 = scalar_lea.vmem %s3, %s2252
        // Predicated region
        $region45: #{tpu_custom_call.1} parent=31 // pred_check
          %p2254 = pneg %p111
        $region46: #{tpu_custom_call.1} parent=31 // pred_check_branch
          %2256 = sbr.rel (%p2254) target = $region48
        $region47: #{tpu_custom_call.1} parent=31 // pred_region
          _
        $region48: #{tpu_custom_call.1} parent=31 // pred_fallthru
          _
      $region32: #{tpu_custom_call.1} parent=5 // pred_fallthru
        _
      %p2257 = scmp.le.s32.totalorder 2, %s15
      // Predicated region
      $region49: #{tpu_custom_call.1} parent=5 // pred_check
        %p2258 = pneg %p2257
      $region50: #{tpu_custom_call.1} parent=5 // pred_check_branch
        %2260 = sbr.rel (%p2258) target = $region52
      $region51: #{tpu_custom_call.1} parent=5 // pred_region
        %s2261 = ssub.s32 %s15, 2
        // Predicated region
        $region53: #{tpu_custom_call.1} parent=51 // pred_check
          %p2262 = pneg %p117
        $region54: #{tpu_custom_call.1} parent=51 // pred_check_branch
          %2264 = sbr.rel (%p2262) target = $region56
        $region55: #{tpu_custom_call.1} parent=51 // pred_region
          %p2265 = scmp.lt.s32.totalorder %s21, 1
          %s2266 = scalar_select %p2265, %s21, 1
          %s2267 = smul.addr %s2266, 8
          %s2268 = scalar_lea.vmem %s3, %s2267
        $region56: #{tpu_custom_call.1} parent=51 // pred_fallthru
          _
      $region52: #{tpu_custom_call.1} parent=5 // pred_fallthru
        _
    $region6: #{tpu_custom_call.1} parent=1 // loop_footer
      %s19 = sadd.s32 1, %s15
    $region7: #{tpu_custom_call.1} parent=1 // loop_footer_branch
      %14 = sbr.rel target = $region3
    $region8: #{tpu_custom_call.1} parent=1 // loop_exit
      _
    %2269 = vsyncpa [#allocation3], 1
    %s2270 = scalar_lea.sflag [#allocation3], 1
    %2271 = vsyncpa %s2270, 1
    %2272 = vsyncpa [#allocation5], 1
    %s2273 = scalar_lea.sflag [#allocation5], 1
    %2274 = vsyncpa %s2273, 1

</llo_original>
